<compile_context>
chip_gen: v7x
topology: tpu7x:2x2x1
jax: 0.10.0
libtpu: 0.0.40
codegen_flags: <defaults>
</compile_context>

<pallas_src>
import functools

import jax
import jax.numpy as jnp
from jax.experimental import pallas as pl
from jax.experimental.pallas import tpu as pltpu


# -----------------------------------------------------------------------------
# Fused kernel: Conv1d + ReLU + MaxPool1d + Flatten + Linear + ReLU + Linear
#               + Softmax for one batch tile (TB rows) per grid step.
# -----------------------------------------------------------------------------
def _convnet1d_kernel(xt_ref, wc_ref, bc_ref, w1_ref, b1_ref, w2_ref, b2_ref,
                      out_ref, *, K, pool):
    # xt_ref : (TB, L, C)       batch tile, time-major (sublane = time)
    # wc_ref : (C*K, depth)     conv weight, row index c*K + k
    # bc_ref : (1, depth)       conv bias
    # w1_ref : (Lp*depth, Hp)   Linear-1 weight; flatten permutation pre-folded
    #                           (rows ordered p*depth + d), lanes padded to 128
    # b1_ref : (1, Hp)
    # w2_ref : (Hp, Op)         Linear-2 weight, zero-padded to 128 x 128
    # b2_ref : (1, Op)          padded lanes carry -1e30 -> softmax prob 0
    # out_ref: (TB, Op)         one sublane+lane dense softmax tile
    TB, L, C = xt_ref.shape
    depth = wc_ref.shape[1]
    Hp = w1_ref.shape[1]
    Lc = L - K + 1
    Lp = Lc // pool

    # ---- Conv1d as C*K shifted VPU multiply-accumulates (no im2col, no MXU) ----
    acc = None
    for c in range(C):
        for k in range(K):
            xk = xt_ref[:, k:k + Lc, c:c + 1]                 # (TB, Lc, 1) shifted slice
            wk = wc_ref[c * K + k:c * K + k + 1, :][None]     # (1, 1, depth)
            term = xk * wk                                    # (TB, Lc, depth) lane-bcast MAC
            acc = term if acc is None else acc + term
    conv = jnp.maximum(acc + bc_ref[...][None], 0.0)          # bias + ReLU
    # Dropout(0.5): eval-mode identity.

    # ---- MaxPool1d(pool) fused with Flatten + Linear(768, H) ----
    # Each window max is computed in registers and contracted immediately with
    # its (depth, Hp) block of the flatten-permuted W1: no pooled intermediate
    # is ever stored, no masked narrow vst's.
    acc_h = jnp.zeros((TB, Hp), jnp.float32)
    for p in range(Lp):
        window = conv[:, p * pool:(p + 1) * pool, :]          # (TB, pool, depth)
        prow = jnp.max(window, axis=1)                        # (TB, depth)  XLU reduce
        acc_h = acc_h + jnp.dot(prow, w1_ref[p * depth:(p + 1) * depth, :],
                                preferred_element_type=jnp.float32)
    h = jnp.maximum(acc_h + b1_ref[...], 0.0)                 # (TB, Hp) ReLU

    # ---- Linear(H, O) + Softmax (padded logits get -1e30 bias -> prob 0) ----
    logits = jnp.dot(h, w2_ref[...],
                     preferred_element_type=jnp.float32) + b2_ref[...]
    m = jnp.max(logits, axis=-1, keepdims=True)
    e = jnp.exp(logits - m)
    denom = jnp.sum(e, axis=-1, keepdims=True)
    out_ref[...] = e * pl.reciprocal(denom, approx=True)      # EUP reciprocal


# -----------------------------------------------------------------------------
# Parameters (deterministic synthetic init, PyTorch tensor layouts)
# -----------------------------------------------------------------------------
def init_params(key, num_channels=1, num_outputs=10, kernel_size=5,
                num_hidden=100, depth=64, flat_dim=768):
    ks = jax.random.split(key, 6)
    return dict(
        conv_w=0.10 * jax.random.normal(ks[0], (depth, num_channels, kernel_size), jnp.float32),
        conv_b=0.10 * jax.random.normal(ks[1], (depth,), jnp.float32),
        w1=0.05 * jax.random.normal(ks[2], (num_hidden, flat_dim), jnp.float32),  # (out, in)
        b1=0.05 * jax.random.normal(ks[3], (num_hidden,), jnp.float32),
        w2=0.05 * jax.random.normal(ks[4], (num_outputs, num_hidden), jnp.float32),
        b2=0.05 * jax.random.normal(ks[5], (num_outputs,), jnp.float32),
    )


# -----------------------------------------------------------------------------
# Forward pass: single fused pallas_call + trace-time weight repacking
# -----------------------------------------------------------------------------
def convnet1d_forward(x, params, *, pool=10, batch_tile=8):
    B, C, L = x.shape
    depth, _, K = params["conv_w"].shape
    Lc = L - K + 1                       # valid conv length
    assert Lc % pool == 0, "pooling windows must tile the conv output exactly"
    Lp = Lc // pool
    H = params["w1"].shape[0]
    O = params["w2"].shape[0]
    flat = depth * Lp
    assert flat == params["w1"].shape[1], "flatten size mismatch with Linear(768,...)"

    LANE = 128
    Hp = ((H + LANE - 1) // LANE) * LANE     # 100 -> 128 (lane-dense hidden)
    Op = ((O + LANE - 1) // LANE) * LANE     # 10  -> 128 (lane-dense output)
    NEG = jnp.float32(-1e30)                 # padded logits -> softmax prob 0

    TB = batch_tile                          # sublane-dense output tile (multiple of 8)
    Bp = pl.cdiv(B, TB) * TB

    # --- trace-time repacking (all tiny; pure XLA, outside the kernel) ---
    xt = jnp.transpose(x, (0, 2, 1))                                  # (B, L, C)
    if Bp != B:                                                        # pad batch tile
        xt = jnp.pad(xt, ((0, Bp - B), (0, 0), (0, 0)))
    wc = params["conv_w"].reshape(depth, C * K).T                     # (C*K, depth)
    bc = params["conv_b"].reshape(1, depth)

    # Fold torch Flatten (feature index d*Lp + p, channel-major) into W1 so the
    # kernel consumes pooled rows in natural (p, d) order: row p*depth + d.
    w1_r = params["w1"].reshape(H, depth, Lp).transpose(2, 1, 0).reshape(flat, H)
    w1_p = jnp.zeros((flat, Hp), jnp.float32).at[:, :H].set(w1_r)
    b1_p = jnp.zeros((1, Hp), jnp.float32).at[:, :H].set(params["b1"][None, :])
    w2_p = jnp.zeros((Hp, Op), jnp.float32).at[:H, :O].set(params["w2"].T)
    b2_p = jnp.full((1, Op), NEG, jnp.float32).at[:, :O].set(params["b2"][None, :])

    probs_p = pl.pallas_call(
        functools.partial(_convnet1d_kernel, K=K, pool=pool),
        out_shape=jax.ShapeDtypeStruct((Bp, Op), jnp.float32),
        grid=(Bp // TB,),
        in_specs=[
            pl.BlockSpec((TB, L, C), lambda b: (b, 0, 0)),        # x, per batch tile
            pl.BlockSpec((C * K, depth), lambda b: (0, 0)),       # conv W (resident)
            pl.BlockSpec((1, depth), lambda b: (0, 0)),           # conv b
            pl.BlockSpec((flat, Hp), lambda b: (0, 0)),           # W1 (permuted, padded)
            pl.BlockSpec((1, Hp), lambda b: (0, 0)),              # b1
            pl.BlockSpec((Hp, Op), lambda b: (0, 0)),             # W2 (padded)
            pl.BlockSpec((1, Op), lambda b: (0, 0)),              # b2 (padded, -1e30)
        ],
        out_specs=pl.BlockSpec((TB, Op), lambda b: (b, 0)),
        compiler_params=pltpu.CompilerParams(
            dimension_semantics=("parallel",)),                   # v7x: 2 TCs share batch tiles
    )(xt, wc, bc, w1_p, b1_p, w2_p, b2_p)

    return probs_p[:B, :O]                                        # (B, num_outputs)


# -----------------------------------------------------------------------------
# Pure-JAX reference (for numerical check only)
# -----------------------------------------------------------------------------
def convnet1d_reference(x, params, *, pool=10):
    B, C, L = x.shape
    depth, _, K = params["conv_w"].shape
    Lc = L - K + 1
    Lp = Lc // pool
    conv = jax.lax.conv_general_dilated(
        x, params["conv_w"], window_strides=(1,), padding="VALID",
        dimension_numbers=("NCH", "OIH", "NCH"))
    conv = jnp.maximum(conv + params["conv_b"][None, :, None], 0.0)
    pooled = conv[:, :, :Lp * pool].reshape(B, depth, Lp, pool).max(axis=-1)
    feat = pooled.reshape(B, depth * Lp)
    h = jnp.maximum(feat @ params["w1"].T + params["b1"], 0.0)
    logits = h @ params["w2"].T + params["b2"]
    return jax.nn.softmax(logits, axis=1)


if __name__ == "__main__":
    key = jax.random.PRNGKey(0)
    kp, kx = jax.random.split(key)
    params = init_params(kp)

    # Input length 124: conv(K=5) -> 120, MaxPool1d(10) -> 12, flatten 64*12 = 768.
    x = jax.random.normal(kx, (2, 1, 124), jnp.float32)   # NCW, like PyTorch

    out = convnet1d_forward(x, params)
    out = jax.block_until_ready(out)

    ref = convnet1d_reference(x, params)
    assert out.shape == (2, 10), out.shape
    # 2e-3 tolerance accounts for the EUP approximate reciprocal in the softmax.
    assert bool(jnp.allclose(out, ref, atol=2e-3, rtol=2e-3)), "mismatch vs reference"
    print("KERNEL_OK")
</pallas_src>

<mosaic_0001>
module attributes {stable_mosaic.version = 11 : i64} {
  func.func @_convnet1d_kernel(%arg0: i32, %arg1: memref<8x124x1xf32, #tpu.memory_space<vmem>>, %arg2: memref<5x64xf32, #tpu.memory_space<vmem>>, %arg3: memref<1x64xf32, #tpu.memory_space<vmem>>, %arg4: memref<768x128xf32, #tpu.memory_space<vmem>>, %arg5: memref<1x128xf32, #tpu.memory_space<vmem>>, %arg6: memref<128x128xf32, #tpu.memory_space<vmem>>, %arg7: memref<1x128xf32, #tpu.memory_space<vmem>>, %arg8: memref<8x128xf32, #tpu.memory_space<vmem>>) attributes {dimension_semantics = [#tpu.dimension_semantics<parallel>], iteration_bounds = array<i64: 1>, scalar_prefetch = 0 : i64, scratch_operands = 0 : i64, tpu.core_type = #tpu.core_type<tc>, window_params = [{transform_indices = @transform_0, window_bounds = array<i64: 8, 124, 1>}, {pipeline_mode = #tpu.pipeline_mode<synchronous>, transform_indices = @transform_1, window_bounds = array<i64: 5, 64>}, {pipeline_mode = #tpu.pipeline_mode<synchronous>, transform_indices = @transform_2, window_bounds = array<i64: 1, 64>}, {pipeline_mode = #tpu.pipeline_mode<synchronous>, transform_indices = @transform_3, window_bounds = array<i64: 768, 128>}, {pipeline_mode = #tpu.pipeline_mode<synchronous>, transform_indices = @transform_4, window_bounds = array<i64: 1, 128>}, {pipeline_mode = #tpu.pipeline_mode<synchronous>, transform_indices = @transform_5, window_bounds = array<i64: 128, 128>}, {pipeline_mode = #tpu.pipeline_mode<synchronous>, transform_indices = @transform_6, window_bounds = array<i64: 1, 128>}, {transform_indices = @transform_7, window_bounds = array<i64: 8, 128>}]} {
    %c0 = arith.constant 0 : index
    %c0_0 = arith.constant 0 : index
    %c0_1 = arith.constant 0 : index
    %0 = vector.load %arg1[%c0, %c0_0, %c0_1] : memref<8x124x1xf32, #tpu.memory_space<vmem>>, vector<8x120x1xf32>
    %c0_2 = arith.constant 0 : index
    %c0_3 = arith.constant 0 : index
    %1 = vector.load %arg2[%c0_2, %c0_3] : memref<5x64xf32, #tpu.memory_space<vmem>>, vector<1x64xf32>
    %2 = vector.shape_cast %1 : vector<1x64xf32> to vector<1x1x64xf32>
    %3 = vector.broadcast %0 : vector<8x120x1xf32> to vector<8x120x64xf32>
    %4 = vector.broadcast %2 : vector<1x1x64xf32> to vector<8x120x64xf32>
    %5 = arith.mulf %3, %4 : vector<8x120x64xf32>
    %c0_4 = arith.constant 0 : index
    %c1 = arith.constant 1 : index
    %c0_5 = arith.constant 0 : index
    %6 = vector.load %arg1[%c0_4, %c1, %c0_5] : memref<8x124x1xf32, #tpu.memory_space<vmem>>, vector<8x120x1xf32>
    %c1_6 = arith.constant 1 : index
    %c0_7 = arith.constant 0 : index
    %7 = vector.load %arg2[%c1_6, %c0_7] : memref<5x64xf32, #tpu.memory_space<vmem>>, vector<1x64xf32>
    %8 = vector.shape_cast %7 : vector<1x64xf32> to vector<1x1x64xf32>
    %9 = vector.broadcast %6 : vector<8x120x1xf32> to vector<8x120x64xf32>
    %10 = vector.broadcast %8 : vector<1x1x64xf32> to vector<8x120x64xf32>
    %11 = arith.mulf %9, %10 : vector<8x120x64xf32>
    %12 = arith.addf %5, %11 : vector<8x120x64xf32>
    %c0_8 = arith.constant 0 : index
    %c2 = arith.constant 2 : index
    %c0_9 = arith.constant 0 : index
    %13 = vector.load %arg1[%c0_8, %c2, %c0_9] : memref<8x124x1xf32, #tpu.memory_space<vmem>>, vector<8x120x1xf32>
    %c2_10 = arith.constant 2 : index
    %c0_11 = arith.constant 0 : index
    %14 = vector.load %arg2[%c2_10, %c0_11] : memref<5x64xf32, #tpu.memory_space<vmem>>, vector<1x64xf32>
    %15 = vector.shape_cast %14 : vector<1x64xf32> to vector<1x1x64xf32>
    %16 = vector.broadcast %13 : vector<8x120x1xf32> to vector<8x120x64xf32>
    %17 = vector.broadcast %15 : vector<1x1x64xf32> to vector<8x120x64xf32>
    %18 = arith.mulf %16, %17 : vector<8x120x64xf32>
    %19 = arith.addf %12, %18 : vector<8x120x64xf32>
    %c0_12 = arith.constant 0 : index
    %c3 = arith.constant 3 : index
    %c0_13 = arith.constant 0 : index
    %20 = vector.load %arg1[%c0_12, %c3, %c0_13] : memref<8x124x1xf32, #tpu.memory_space<vmem>>, vector<8x120x1xf32>
    %c3_14 = arith.constant 3 : index
    %c0_15 = arith.constant 0 : index
    %21 = vector.load %arg2[%c3_14, %c0_15] : memref<5x64xf32, #tpu.memory_space<vmem>>, vector<1x64xf32>
    %22 = vector.shape_cast %21 : vector<1x64xf32> to vector<1x1x64xf32>
    %23 = vector.broadcast %20 : vector<8x120x1xf32> to vector<8x120x64xf32>
    %24 = vector.broadcast %22 : vector<1x1x64xf32> to vector<8x120x64xf32>
    %25 = arith.mulf %23, %24 : vector<8x120x64xf32>
    %26 = arith.addf %19, %25 : vector<8x120x64xf32>
    %c0_16 = arith.constant 0 : index
    %c4 = arith.constant 4 : index
    %c0_17 = arith.constant 0 : index
    %27 = vector.load %arg1[%c0_16, %c4, %c0_17] : memref<8x124x1xf32, #tpu.memory_space<vmem>>, vector<8x120x1xf32>
    %c4_18 = arith.constant 4 : index
    %c0_19 = arith.constant 0 : index
    %28 = vector.load %arg2[%c4_18, %c0_19] : memref<5x64xf32, #tpu.memory_space<vmem>>, vector<1x64xf32>
    %29 = vector.shape_cast %28 : vector<1x64xf32> to vector<1x1x64xf32>
    %30 = vector.broadcast %27 : vector<8x120x1xf32> to vector<8x120x64xf32>
    %31 = vector.broadcast %29 : vector<1x1x64xf32> to vector<8x120x64xf32>
    %32 = arith.mulf %30, %31 : vector<8x120x64xf32>
    %33 = arith.addf %26, %32 : vector<8x120x64xf32>
    %c0_20 = arith.constant 0 : index
    %c0_21 = arith.constant 0 : index
    %34 = vector.load %arg3[%c0_20, %c0_21] : memref<1x64xf32, #tpu.memory_space<vmem>>, vector<1x64xf32>
    %35 = vector.shape_cast %34 : vector<1x64xf32> to vector<1x1x64xf32>
    %36 = vector.broadcast %35 : vector<1x1x64xf32> to vector<8x120x64xf32>
    %37 = arith.addf %33, %36 : vector<8x120x64xf32>
    %cst = arith.constant 0.000000e+00 : f32
    %38 = vector.broadcast %cst : f32 to vector<8x120x64xf32>
    %39 = arith.maximumf %37, %38 : vector<8x120x64xf32>
    %cst_22 = arith.constant 0.000000e+00 : f32
    %40 = vector.broadcast %cst_22 : f32 to vector<8x128xf32>
    %41 = vector.extract_strided_slice %39 {offsets = [0, 0, 0], sizes = [8, 10, 64], strides = [1, 1, 1]} : vector<8x120x64xf32> to vector<8x10x64xf32>
    %cst_23 = arith.constant dense<0xFF800000> : vector<8x64xf32>
    %42 = vector.multi_reduction <maximumf>, %41, %cst_23 [1] : vector<8x10x64xf32> to vector<8x64xf32>
    %c0_24 = arith.constant 0 : index
    %c0_25 = arith.constant 0 : index
    %43 = vector.load %arg4[%c0_24, %c0_25] : memref<768x128xf32, #tpu.memory_space<vmem>>, vector<64x128xf32>
    %cst_26 = arith.constant dense<0.000000e+00> : vector<8x128xf32>
    %44 = tpu.matmul %42, %43, %cst_26 {dimension_numbers = #tpu.dot_dimension_numbers<[1], [0], [0], [1], [0, 0, 1, 1], [], []>} : vector<8x64xf32>, vector<64x128xf32>, vector<8x128xf32> -> vector<8x128xf32>
    %45 = arith.addf %40, %44 : vector<8x128xf32>
    %46 = vector.extract_strided_slice %39 {offsets = [0, 10, 0], sizes = [8, 10, 64], strides = [1, 1, 1]} : vector<8x120x64xf32> to vector<8x10x64xf32>
    %cst_27 = arith.constant dense<0xFF800000> : vector<8x64xf32>
    %47 = vector.multi_reduction <maximumf>, %46, %cst_27 [1] : vector<8x10x64xf32> to vector<8x64xf32>
    %c64 = arith.constant 64 : index
    %c0_28 = arith.constant 0 : index
    %48 = vector.load %arg4[%c64, %c0_28] : memref<768x128xf32, #tpu.memory_space<vmem>>, vector<64x128xf32>
    %cst_29 = arith.constant dense<0.000000e+00> : vector<8x128xf32>
    %49 = tpu.matmul %47, %48, %cst_29 {dimension_numbers = #tpu.dot_dimension_numbers<[1], [0], [0], [1], [0, 0, 1, 1], [], []>} : vector<8x64xf32>, vector<64x128xf32>, vector<8x128xf32> -> vector<8x128xf32>
    %50 = arith.addf %45, %49 : vector<8x128xf32>
    %51 = vector.extract_strided_slice %39 {offsets = [0, 20, 0], sizes = [8, 10, 64], strides = [1, 1, 1]} : vector<8x120x64xf32> to vector<8x10x64xf32>
    %cst_30 = arith.constant dense<0xFF800000> : vector<8x64xf32>
    %52 = vector.multi_reduction <maximumf>, %51, %cst_30 [1] : vector<8x10x64xf32> to vector<8x64xf32>
    %c128 = arith.constant 128 : index
    %c0_31 = arith.constant 0 : index
    %53 = vector.load %arg4[%c128, %c0_31] : memref<768x128xf32, #tpu.memory_space<vmem>>, vector<64x128xf32>
    %cst_32 = arith.constant dense<0.000000e+00> : vector<8x128xf32>
    %54 = tpu.matmul %52, %53, %cst_32 {dimension_numbers = #tpu.dot_dimension_numbers<[1], [0], [0], [1], [0, 0, 1, 1], [], []>} : vector<8x64xf32>, vector<64x128xf32>, vector<8x128xf32> -> vector<8x128xf32>
    %55 = arith.addf %50, %54 : vector<8x128xf32>
    %56 = vector.extract_strided_slice %39 {offsets = [0, 30, 0], sizes = [8, 10, 64], strides = [1, 1, 1]} : vector<8x120x64xf32> to vector<8x10x64xf32>
    %cst_33 = arith.constant dense<0xFF800000> : vector<8x64xf32>
    %57 = vector.multi_reduction <maximumf>, %56, %cst_33 [1] : vector<8x10x64xf32> to vector<8x64xf32>
    %c192 = arith.constant 192 : index
    %c0_34 = arith.constant 0 : index
    %58 = vector.load %arg4[%c192, %c0_34] : memref<768x128xf32, #tpu.memory_space<vmem>>, vector<64x128xf32>
    %cst_35 = arith.constant dense<0.000000e+00> : vector<8x128xf32>
    %59 = tpu.matmul %57, %58, %cst_35 {dimension_numbers = #tpu.dot_dimension_numbers<[1], [0], [0], [1], [0, 0, 1, 1], [], []>} : vector<8x64xf32>, vector<64x128xf32>, vector<8x128xf32> -> vector<8x128xf32>
    %60 = arith.addf %55, %59 : vector<8x128xf32>
    %61 = vector.extract_strided_slice %39 {offsets = [0, 40, 0], sizes = [8, 10, 64], strides = [1, 1, 1]} : vector<8x120x64xf32> to vector<8x10x64xf32>
    %cst_36 = arith.constant dense<0xFF800000> : vector<8x64xf32>
    %62 = vector.multi_reduction <maximumf>, %61, %cst_36 [1] : vector<8x10x64xf32> to vector<8x64xf32>
    %c256 = arith.constant 256 : index
    %c0_37 = arith.constant 0 : index
    %63 = vector.load %arg4[%c256, %c0_37] : memref<768x128xf32, #tpu.memory_space<vmem>>, vector<64x128xf32>
    %cst_38 = arith.constant dense<0.000000e+00> : vector<8x128xf32>
    %64 = tpu.matmul %62, %63, %cst_38 {dimension_numbers = #tpu.dot_dimension_numbers<[1], [0], [0], [1], [0, 0, 1, 1], [], []>} : vector<8x64xf32>, vector<64x128xf32>, vector<8x128xf32> -> vector<8x128xf32>
    %65 = arith.addf %60, %64 : vector<8x128xf32>
    %66 = vector.extract_strided_slice %39 {offsets = [0, 50, 0], sizes = [8, 10, 64], strides = [1, 1, 1]} : vector<8x120x64xf32> to vector<8x10x64xf32>
    %cst_39 = arith.constant dense<0xFF800000> : vector<8x64xf32>
    %67 = vector.multi_reduction <maximumf>, %66, %cst_39 [1] : vector<8x10x64xf32> to vector<8x64xf32>
    %c320 = arith.constant 320 : index
    %c0_40 = arith.constant 0 : index
    %68 = vector.load %arg4[%c320, %c0_40] : memref<768x128xf32, #tpu.memory_space<vmem>>, vector<64x128xf32>
    %cst_41 = arith.constant dense<0.000000e+00> : vector<8x128xf32>
    %69 = tpu.matmul %67, %68, %cst_41 {dimension_numbers = #tpu.dot_dimension_numbers<[1], [0], [0], [1], [0, 0, 1, 1], [], []>} : vector<8x64xf32>, vector<64x128xf32>, vector<8x128xf32> -> vector<8x128xf32>
    %70 = arith.addf %65, %69 : vector<8x128xf32>
    %71 = vector.extract_strided_slice %39 {offsets = [0, 60, 0], sizes = [8, 10, 64], strides = [1, 1, 1]} : vector<8x120x64xf32> to vector<8x10x64xf32>
    %cst_42 = arith.constant dense<0xFF800000> : vector<8x64xf32>
    %72 = vector.multi_reduction <maximumf>, %71, %cst_42 [1] : vector<8x10x64xf32> to vector<8x64xf32>
    %c384 = arith.constant 384 : index
    %c0_43 = arith.constant 0 : index
    %73 = vector.load %arg4[%c384, %c0_43] : memref<768x128xf32, #tpu.memory_space<vmem>>, vector<64x128xf32>
    %cst_44 = arith.constant dense<0.000000e+00> : vector<8x128xf32>
    %74 = tpu.matmul %72, %73, %cst_44 {dimension_numbers = #tpu.dot_dimension_numbers<[1], [0], [0], [1], [0, 0, 1, 1], [], []>} : vector<8x64xf32>, vector<64x128xf32>, vector<8x128xf32> -> vector<8x128xf32>
    %75 = arith.addf %70, %74 : vector<8x128xf32>
    %76 = vector.extract_strided_slice %39 {offsets = [0, 70, 0], sizes = [8, 10, 64], strides = [1, 1, 1]} : vector<8x120x64xf32> to vector<8x10x64xf32>
    %cst_45 = arith.constant dense<0xFF800000> : vector<8x64xf32>
    %77 = vector.multi_reduction <maximumf>, %76, %cst_45 [1] : vector<8x10x64xf32> to vector<8x64xf32>
    %c448 = arith.constant 448 : index
    %c0_46 = arith.constant 0 : index
    %78 = vector.load %arg4[%c448, %c0_46] : memref<768x128xf32, #tpu.memory_space<vmem>>, vector<64x128xf32>
    %cst_47 = arith.constant dense<0.000000e+00> : vector<8x128xf32>
    %79 = tpu.matmul %77, %78, %cst_47 {dimension_numbers = #tpu.dot_dimension_numbers<[1], [0], [0], [1], [0, 0, 1, 1], [], []>} : vector<8x64xf32>, vector<64x128xf32>, vector<8x128xf32> -> vector<8x128xf32>
    %80 = arith.addf %75, %79 : vector<8x128xf32>
    %81 = vector.extract_strided_slice %39 {offsets = [0, 80, 0], sizes = [8, 10, 64], strides = [1, 1, 1]} : vector<8x120x64xf32> to vector<8x10x64xf32>
    %cst_48 = arith.constant dense<0xFF800000> : vector<8x64xf32>
    %82 = vector.multi_reduction <maximumf>, %81, %cst_48 [1] : vector<8x10x64xf32> to vector<8x64xf32>
    %c512 = arith.constant 512 : index
    %c0_49 = arith.constant 0 : index
    %83 = vector.load %arg4[%c512, %c0_49] : memref<768x128xf32, #tpu.memory_space<vmem>>, vector<64x128xf32>
    %cst_50 = arith.constant dense<0.000000e+00> : vector<8x128xf32>
    %84 = tpu.matmul %82, %83, %cst_50 {dimension_numbers = #tpu.dot_dimension_numbers<[1], [0], [0], [1], [0, 0, 1, 1], [], []>} : vector<8x64xf32>, vector<64x128xf32>, vector<8x128xf32> -> vector<8x128xf32>
    %85 = arith.addf %80, %84 : vector<8x128xf32>
    %86 = vector.extract_strided_slice %39 {offsets = [0, 90, 0], sizes = [8, 10, 64], strides = [1, 1, 1]} : vector<8x120x64xf32> to vector<8x10x64xf32>
    %cst_51 = arith.constant dense<0xFF800000> : vector<8x64xf32>
    %87 = vector.multi_reduction <maximumf>, %86, %cst_51 [1] : vector<8x10x64xf32> to vector<8x64xf32>
    %c576 = arith.constant 576 : index
    %c0_52 = arith.constant 0 : index
    %88 = vector.load %arg4[%c576, %c0_52] : memref<768x128xf32, #tpu.memory_space<vmem>>, vector<64x128xf32>
    %cst_53 = arith.constant dense<0.000000e+00> : vector<8x128xf32>
    %89 = tpu.matmul %87, %88, %cst_53 {dimension_numbers = #tpu.dot_dimension_numbers<[1], [0], [0], [1], [0, 0, 1, 1], [], []>} : vector<8x64xf32>, vector<64x128xf32>, vector<8x128xf32> -> vector<8x128xf32>
    %90 = arith.addf %85, %89 : vector<8x128xf32>
    %91 = vector.extract_strided_slice %39 {offsets = [0, 100, 0], sizes = [8, 10, 64], strides = [1, 1, 1]} : vector<8x120x64xf32> to vector<8x10x64xf32>
    %cst_54 = arith.constant dense<0xFF800000> : vector<8x64xf32>
    %92 = vector.multi_reduction <maximumf>, %91, %cst_54 [1] : vector<8x10x64xf32> to vector<8x64xf32>
    %c640 = arith.constant 640 : index
    %c0_55 = arith.constant 0 : index
    %93 = vector.load %arg4[%c640, %c0_55] : memref<768x128xf32, #tpu.memory_space<vmem>>, vector<64x128xf32>
    %cst_56 = arith.constant dense<0.000000e+00> : vector<8x128xf32>
    %94 = tpu.matmul %92, %93, %cst_56 {dimension_numbers = #tpu.dot_dimension_numbers<[1], [0], [0], [1], [0, 0, 1, 1], [], []>} : vector<8x64xf32>, vector<64x128xf32>, vector<8x128xf32> -> vector<8x128xf32>
    %95 = arith.addf %90, %94 : vector<8x128xf32>
    %96 = vector.extract_strided_slice %39 {offsets = [0, 110, 0], sizes = [8, 10, 64], strides = [1, 1, 1]} : vector<8x120x64xf32> to vector<8x10x64xf32>
    %cst_57 = arith.constant dense<0xFF800000> : vector<8x64xf32>
    %97 = vector.multi_reduction <maximumf>, %96, %cst_57 [1] : vector<8x10x64xf32> to vector<8x64xf32>
    %c704 = arith.constant 704 : index
    %c0_58 = arith.constant 0 : index
    %98 = vector.load %arg4[%c704, %c0_58] : memref<768x128xf32, #tpu.memory_space<vmem>>, vector<64x128xf32>
    %cst_59 = arith.constant dense<0.000000e+00> : vector<8x128xf32>
    %99 = tpu.matmul %97, %98, %cst_59 {dimension_numbers = #tpu.dot_dimension_numbers<[1], [0], [0], [1], [0, 0, 1, 1], [], []>} : vector<8x64xf32>, vector<64x128xf32>, vector<8x128xf32> -> vector<8x128xf32>
    %100 = arith.addf %95, %99 : vector<8x128xf32>
    %c0_60 = arith.constant 0 : index
    %c0_61 = arith.constant 0 : index
    %101 = vector.load %arg5[%c0_60, %c0_61] : memref<1x128xf32, #tpu.memory_space<vmem>>, vector<1x128xf32>
    %102 = vector.broadcast %101 : vector<1x128xf32> to vector<8x128xf32>
    %103 = arith.addf %100, %102 : vector<8x128xf32>
    %cst_62 = arith.constant 0.000000e+00 : f32
    %104 = vector.broadcast %cst_62 : f32 to vector<8x128xf32>
    %105 = arith.maximumf %103, %104 : vector<8x128xf32>
    %c0_63 = arith.constant 0 : index
    %c0_64 = arith.constant 0 : index
    %106 = vector.load %arg6[%c0_63, %c0_64] : memref<128x128xf32, #tpu.memory_space<vmem>>, vector<128x128xf32>
    %cst_65 = arith.constant dense<0.000000e+00> : vector<8x128xf32>
    %107 = tpu.matmul %105, %106, %cst_65 {dimension_numbers = #tpu.dot_dimension_numbers<[1], [0], [0], [1], [0, 0, 1, 1], [], []>} : vector<8x128xf32>, vector<128x128xf32>, vector<8x128xf32> -> vector<8x128xf32>
    %c0_66 = arith.constant 0 : index
    %c0_67 = arith.constant 0 : index
    %108 = vector.load %arg7[%c0_66, %c0_67] : memref<1x128xf32, #tpu.memory_space<vmem>>, vector<1x128xf32>
    %109 = vector.broadcast %108 : vector<1x128xf32> to vector<8x128xf32>
    %110 = arith.addf %107, %109 : vector<8x128xf32>
    %cst_68 = arith.constant dense<0xFF800000> : vector<8xf32>
    %111 = vector.multi_reduction <maximumf>, %110, %cst_68 [1] : vector<8x128xf32> to vector<8xf32>
    %112 = vector.shape_cast %111 : vector<8xf32> to vector<8x1xf32>
    %113 = vector.broadcast %112 : vector<8x1xf32> to vector<8x128xf32>
    %114 = arith.subf %110, %113 : vector<8x128xf32>
    %115 = math.exp %114 : vector<8x128xf32>
    %cst_69 = arith.constant dense<0.000000e+00> : vector<8xf32>
    %116 = vector.multi_reduction <add>, %115, %cst_69 [1] : vector<8x128xf32> to vector<8xf32>
    %117 = vector.shape_cast %116 : vector<8xf32> to vector<8x1xf32>
    %118 = tpu.reciprocal %117 {approx = true} : vector<8x1xf32> -> vector<8x1xf32>
    %119 = vector.broadcast %118 : vector<8x1xf32> to vector<8x128xf32>
    %120 = arith.mulf %115, %119 : vector<8x128xf32>
    %c0_70 = arith.constant 0 : index
    %c0_71 = arith.constant 0 : index
    %121 = vector.load %arg8[%c0_70, %c0_71] : memref<8x128xf32, #tpu.memory_space<vmem>>, vector<8x128xf32>
    tpu.vector_store %arg8[%c0_70, %c0_71], %120 {strides = array<i32>} : memref<8x128xf32, #tpu.memory_space<vmem>>, vector<8x128xf32>,
    return
  }
  func.func @transform_0(%arg0: i32) -> (i32, i32, i32) {
    %c0_i32 = arith.constant 0 : i32
    %c0_i32_0 = arith.constant 0 : i32
    %c0_i32_1 = arith.constant 0 : i32
    return %arg0, %c0_i32, %c0_i32_0 : i32, i32, i32
  }
  func.func @transform_1(%arg0: i32) -> (i32, i32) {
    %c0_i32 = arith.constant 0 : i32
    %c0_i32_0 = arith.constant 0 : i32
    %c0_i32_1 = arith.constant 0 : i32
    return %c0_i32, %c0_i32_0 : i32, i32
  }
  func.func @transform_2(%arg0: i32) -> (i32, i32) {
    %c0_i32 = arith.constant 0 : i32
    %c0_i32_0 = arith.constant 0 : i32
    %c0_i32_1 = arith.constant 0 : i32
    return %c0_i32, %c0_i32_0 : i32, i32
  }
  func.func @transform_3(%arg0: i32) -> (i32, i32) {
    %c0_i32 = arith.constant 0 : i32
    %c0_i32_0 = arith.constant 0 : i32
    %c0_i32_1 = arith.constant 0 : i32
    return %c0_i32, %c0_i32_0 : i32, i32
  }
  func.func @transform_4(%arg0: i32) -> (i32, i32) {
    %c0_i32 = arith.constant 0 : i32
    %c0_i32_0 = arith.constant 0 : i32
    %c0_i32_1 = arith.constant 0 : i32
    return %c0_i32, %c0_i32_0 : i32, i32
  }
  func.func @transform_5(%arg0: i32) -> (i32, i32) {
    %c0_i32 = arith.constant 0 : i32
    %c0_i32_0 = arith.constant 0 : i32
    %c0_i32_1 = arith.constant 0 : i32
    return %c0_i32, %c0_i32_0 : i32, i32
  }
  func.func @transform_6(%arg0: i32) -> (i32, i32) {
    %c0_i32 = arith.constant 0 : i32
    %c0_i32_0 = arith.constant 0 : i32
    %c0_i32_1 = arith.constant 0 : i32
    return %c0_i32, %c0_i32_0 : i32, i32
  }
  func.func @transform_7(%arg0: i32) -> (i32, i32) {
    %c0_i32 = arith.constant 0 : i32
    %c0_i32_0 = arith.constant 0 : i32
    return %arg0, %c0_i32 : i32, i32
  }
}

</mosaic_0001>

<llo_original>
// kernel: tpu_custom_call.1
$region0: #{tpu_custom_call.1}
  #allocation0 [shape = 'u32[]', space=smem, size = 0x4, offset = 0x4, fixed_abs, tag = 'smem constant byte address 0x4 - core index']
  #allocation1 [shape = 'u32[144,128]{1,0:T(1,128)}', space=vmem, size = 0x12000, scoped, tag = 'internal scratch']
  %s0 = inlined_call_operand.vmem [shape: f32[8,124,1], index: 0, kind: input, shape index: {}]
  %s1 = inlined_call_operand.vmem [shape: f32[5,64], index: 1, kind: input, shape index: {}]
  %s2 = inlined_call_operand.vmem [shape: f32[1,64], index: 2, kind: input, shape index: {}]
  %s3 = inlined_call_operand.vmem [shape: f32[768,128], index: 3, kind: input, shape index: {}]
  %s4 = inlined_call_operand.vmem [shape: f32[1,128], index: 4, kind: input, shape index: {}]
  %s5 = inlined_call_operand.vmem [shape: f32[128,128], index: 5, kind: input, shape index: {}]
  %s6 = inlined_call_operand.vmem [shape: f32[1,128], index: 6, kind: input, shape index: {}]
  %s7 = inlined_call_operand.hbm [shape: f32[8,128], index: 7, kind: output, shape index: {}]
  %s8 = sld [smem:[#allocation0]]
  $region38: #{tpu_custom_call.1} parent=0
    _
  %s10 = ssub.s32 1, %s8
  %s11 = scalar_select 0, %s10, %s8
  $region1: #{tpu_custom_call.1} parent=0
    #allocation2 [shape = 'u8[4096]{0}', space=vmem, size = 0x1000, scoped, tag = 'output window, operand 0, single buffered']
    #allocation3 [shape = 's32[1]{0}', space=sflag, size = 0x4, scoped, tag = 'scoped memory for tpu_custom_call.1']
    %12 = vsyncpa [#allocation3], 0
    // Predicated region
    $region2: #{tpu_custom_call.1} parent=1 // pred_check
      _
    $region3: #{tpu_custom_call.1} parent=1 // pred_check_branch
      %14 = sbr.rel (0) target = $region5
    $region4: #{tpu_custom_call.1} parent=1 // pred_region
      _
    $region5: #{tpu_custom_call.1} parent=1 // pred_fallthru
      _
    // Predicated region
    $region6: #{tpu_custom_call.1} parent=1 // pred_check
      _
    $region7: #{tpu_custom_call.1} parent=1 // pred_check_branch
      %16 = sbr.rel (0) target = $region9
    $region8: #{tpu_custom_call.1} parent=1 // pred_region
      _
    $region9: #{tpu_custom_call.1} parent=1 // pred_fallthru
      _
    // Predicated region
    $region10: #{tpu_custom_call.1} parent=1 // pred_check
      _
    $region11: #{tpu_custom_call.1} parent=1 // pred_check_branch
      %18 = sbr.rel (0) target = $region13
    $region12: #{tpu_custom_call.1} parent=1 // pred_region
      _
    $region13: #{tpu_custom_call.1} parent=1 // pred_fallthru
      _
    // Predicated region
    $region14: #{tpu_custom_call.1} parent=1 // pred_check
      _
    $region15: #{tpu_custom_call.1} parent=1 // pred_check_branch
      %20 = sbr.rel (0) target = $region17
    $region16: #{tpu_custom_call.1} parent=1 // pred_region
      _
    $region17: #{tpu_custom_call.1} parent=1 // pred_fallthru
      _
    // Predicated region
    $region18: #{tpu_custom_call.1} parent=1 // pred_check
      _
    $region19: #{tpu_custom_call.1} parent=1 // pred_check_branch
      %22 = sbr.rel (0) target = $region21
    $region20: #{tpu_custom_call.1} parent=1 // pred_region
      _
    $region21: #{tpu_custom_call.1} parent=1 // pred_fallthru
      _
    // Predicated region
    $region22: #{tpu_custom_call.1} parent=1 // pred_check
      _
    $region23: #{tpu_custom_call.1} parent=1 // pred_check_branch
      %24 = sbr.rel (0) target = $region25
    $region24: #{tpu_custom_call.1} parent=1 // pred_region
      _
    $region25: #{tpu_custom_call.1} parent=1 // pred_fallthru
      _
    // Predicated region
    $region26: #{tpu_custom_call.1} parent=1 // pred_check
      _
    $region27: #{tpu_custom_call.1} parent=1 // pred_check_branch
      %26 = sbr.rel (0) target = $region29
    $region28: #{tpu_custom_call.1} parent=1 // pred_region
      _
    $region29: #{tpu_custom_call.1} parent=1 // pred_fallthru
      _
    %v27 = vld [vmem:[%s0] sm:$0xff]
    %v28 = vld [vmem:[%s0 + $0x8] sm:$0xff]
    %v29 = vld [vmem:[%s0 + $0x10] sm:$0xff]
    %v30 = vld [vmem:[%s0 + $0x18] sm:$0xff]
    %v31 = vld [vmem:[%s0 + $0x20] sm:$0xff]
    %v32 = vld [vmem:[%s0 + $0x28] sm:$0xff]
    %v33 = vld [vmem:[%s0 + $0x30] sm:$0xff]
    %v34 = vld [vmem:[%s0 + $0x38] sm:$0xff]
    %v35 = vld [vmem:[%s0 + $0x40] sm:$0xff]
    %v36 = vld [vmem:[%s0 + $0x48] sm:$0xff]
    %v37 = vld [vmem:[%s0 + $0x50] sm:$0xff]
    %v38 = vld [vmem:[%s0 + $0x58] sm:$0xff]
    %v39 = vld [vmem:[%s0 + $0x60] sm:$0xff]
    %v40 = vld [vmem:[%s0 + $0x68] sm:$0xff]
    %v41 = vld [vmem:[%s0 + $0x70] sm:$0xff]
    %v42 = vld [vmem:[%s0 + $0x80] sm:$0xff]
    %v43 = vld [vmem:[%s0 + $0x88] sm:$0xff]
    %v44 = vld [vmem:[%s0 + $0x90] sm:$0xff]
    %v45 = vld [vmem:[%s0 + $0x98] sm:$0xff]
    %v46 = vld [vmem:[%s0 + $0xa0] sm:$0xff]
    %v47 = vld [vmem:[%s0 + $0xa8] sm:$0xff]
    %v48 = vld [vmem:[%s0 + $0xb0] sm:$0xff]
    %v49 = vld [vmem:[%s0 + $0xb8] sm:$0xff]
    %v50 = vld [vmem:[%s0 + $0xc0] sm:$0xff]
    %v51 = vld [vmem:[%s0 + $0xc8] sm:$0xff]
    %v52 = vld [vmem:[%s0 + $0xd0] sm:$0xff]
    %v53 = vld [vmem:[%s0 + $0xd8] sm:$0xff]
    %v54 = vld [vmem:[%s0 + $0xe0] sm:$0xff]
    %v55 = vld [vmem:[%s0 + $0xe8] sm:$0xff]
    %v56 = vld [vmem:[%s0 + $0xf0] sm:$0xff]
    %v57 = vld [vmem:[%s0 + $0x100] sm:$0xff]
    %v58 = vld [vmem:[%s0 + $0x108] sm:$0xff]
    %v59 = vld [vmem:[%s0 + $0x110] sm:$0xff]
    %v60 = vld [vmem:[%s0 + $0x118] sm:$0xff]
    %v61 = vld [vmem:[%s0 + $0x120] sm:$0xff]
    %v62 = vld [vmem:[%s0 + $0x128] sm:$0xff]
    %v63 = vld [vmem:[%s0 + $0x130] sm:$0xff]
    %v64 = vld [vmem:[%s0 + $0x138] sm:$0xff]
    %v65 = vld [vmem:[%s0 + $0x140] sm:$0xff]
    %v66 = vld [vmem:[%s0 + $0x148] sm:$0xff]
    %v67 = vld [vmem:[%s0 + $0x150] sm:$0xff]
    %v68 = vld [vmem:[%s0 + $0x158] sm:$0xff]
    %v69 = vld [vmem:[%s0 + $0x160] sm:$0xff]
    %v70 = vld [vmem:[%s0 + $0x168] sm:$0xff]
    %v71 = vld [vmem:[%s0 + $0x170] sm:$0xff]
    %v72 = vld [vmem:[%s0 + $0x180] sm:$0xff]
    %v73 = vld [vmem:[%s0 + $0x188] sm:$0xff]
    %v74 = vld [vmem:[%s0 + $0x190] sm:$0xff]
    %v75 = vld [vmem:[%s0 + $0x198] sm:$0xff]
    %v76 = vld [vmem:[%s0 + $0x1a0] sm:$0xff]
    %v77 = vld [vmem:[%s0 + $0x1a8] sm:$0xff]
    %v78 = vld [vmem:[%s0 + $0x1b0] sm:$0xff]
    %v79 = vld [vmem:[%s0 + $0x1b8] sm:$0xff]
    %v80 = vld [vmem:[%s0 + $0x1c0] sm:$0xff]
    %v81 = vld [vmem:[%s0 + $0x1c8] sm:$0xff]
    %v82 = vld [vmem:[%s0 + $0x1d0] sm:$0xff]
    %v83 = vld [vmem:[%s0 + $0x1d8] sm:$0xff]
    %v84 = vld [vmem:[%s0 + $0x1e0] sm:$0xff]
    %v85 = vld [vmem:[%s0 + $0x1e8] sm:$0xff]
    %v86 = vld [vmem:[%s0 + $0x1f0] sm:$0xff]
    %v87 = vld [vmem:[%s0 + $0x200] sm:$0xff]
    %v88 = vld [vmem:[%s0 + $0x208] sm:$0xff]
    %v89 = vld [vmem:[%s0 + $0x210] sm:$0xff]
    %v90 = vld [vmem:[%s0 + $0x218] sm:$0xff]
    %v91 = vld [vmem:[%s0 + $0x220] sm:$0xff]
    %v92 = vld [vmem:[%s0 + $0x228] sm:$0xff]
    %v93 = vld [vmem:[%s0 + $0x230] sm:$0xff]
    %v94 = vld [vmem:[%s0 + $0x238] sm:$0xff]
    %v95 = vld [vmem:[%s0 + $0x240] sm:$0xff]
    %v96 = vld [vmem:[%s0 + $0x248] sm:$0xff]
    %v97 = vld [vmem:[%s0 + $0x250] sm:$0xff]
    %v98 = vld [vmem:[%s0 + $0x258] sm:$0xff]
    %v99 = vld [vmem:[%s0 + $0x260] sm:$0xff]
    %v100 = vld [vmem:[%s0 + $0x268] sm:$0xff]
    %v101 = vld [vmem:[%s0 + $0x270] sm:$0xff]
    %v102 = vld [vmem:[%s0 + $0x280] sm:$0xff]
    %v103 = vld [vmem:[%s0 + $0x288] sm:$0xff]
    %v104 = vld [vmem:[%s0 + $0x290] sm:$0xff]
    %v105 = vld [vmem:[%s0 + $0x298] sm:$0xff]
    %v106 = vld [vmem:[%s0 + $0x2a0] sm:$0xff]
    %v107 = vld [vmem:[%s0 + $0x2a8] sm:$0xff]
    %v108 = vld [vmem:[%s0 + $0x2b0] sm:$0xff]
    %v109 = vld [vmem:[%s0 + $0x2b8] sm:$0xff]
    %v110 = vld [vmem:[%s0 + $0x2c0] sm:$0xff]
    %v111 = vld [vmem:[%s0 + $0x2c8] sm:$0xff]
    %v112 = vld [vmem:[%s0 + $0x2d0] sm:$0xff]
    %v113 = vld [vmem:[%s0 + $0x2d8] sm:$0xff]
    %v114 = vld [vmem:[%s0 + $0x2e0] sm:$0xff]
    %v115 = vld [vmem:[%s0 + $0x2e8] sm:$0xff]
    %v116 = vld [vmem:[%s0 + $0x2f0] sm:$0xff]
    %v117 = vld [vmem:[%s0 + $0x300] sm:$0xff]
    %v118 = vld [vmem:[%s0 + $0x308] sm:$0xff]
    %v119 = vld [vmem:[%s0 + $0x310] sm:$0xff]
    %v120 = vld [vmem:[%s0 + $0x318] sm:$0xff]
    %v121 = vld [vmem:[%s0 + $0x320] sm:$0xff]
    %v122 = vld [vmem:[%s0 + $0x328] sm:$0xff]
    %v123 = vld [vmem:[%s0 + $0x330] sm:$0xff]
    %v124 = vld [vmem:[%s0 + $0x338] sm:$0xff]
    %v125 = vld [vmem:[%s0 + $0x340] sm:$0xff]
    %v126 = vld [vmem:[%s0 + $0x348] sm:$0xff]
    %v127 = vld [vmem:[%s0 + $0x350] sm:$0xff]
    %v128 = vld [vmem:[%s0 + $0x358] sm:$0xff]
    %v129 = vld [vmem:[%s0 + $0x360] sm:$0xff]
    %v130 = vld [vmem:[%s0 + $0x368] sm:$0xff]
    %v131 = vld [vmem:[%s0 + $0x370] sm:$0xff]
    %v132 = vld [vmem:[%s0 + $0x380] sm:$0xff]
    %v133 = vld [vmem:[%s0 + $0x388] sm:$0xff]
    %v134 = vld [vmem:[%s0 + $0x390] sm:$0xff]
    %v135 = vld [vmem:[%s0 + $0x398] sm:$0xff]
    %v136 = vld [vmem:[%s0 + $0x3a0] sm:$0xff]
    %v137 = vld [vmem:[%s0 + $0x3a8] sm:$0xff]
    %v138 = vld [vmem:[%s0 + $0x3b0] sm:$0xff]
    %v139 = vld [vmem:[%s0 + $0x3b8] sm:$0xff]
    %v140 = vld [vmem:[%s0 + $0x3c0] sm:$0xff]
    %v141 = vld [vmem:[%s0 + $0x3c8] sm:$0xff]
    %v142 = vld [vmem:[%s0 + $0x3d0] sm:$0xff]
    %v143 = vld [vmem:[%s0 + $0x3d8] sm:$0xff]
    %v144 = vld [vmem:[%s0 + $0x3e0] sm:$0xff]
    %v145 = vld [vmem:[%s0 + $0x3e8] sm:$0xff]
    %v146 = vld [vmem:[%s0 + $0x3f0] sm:$0xff]
    %v147 = vld [vmem:[%s1] sm:$0x1]
    %149 = vset.pattern.permute.xlu0 0
    %150 = vperm.xlu0 %149, %v27
    %v151 = vpop.permute.xlu0 %150
    %154 = vset.pattern.permute.xlu0 0
    %155 = vperm.xlu0 %154, %v28
    %v156 = vpop.permute.xlu0 %155
    %159 = vset.pattern.permute.xlu0 0
    %160 = vperm.xlu0 %159, %v29
    %v161 = vpop.permute.xlu0 %160
    %164 = vset.pattern.permute.xlu0 0
    %165 = vperm.xlu0 %164, %v30
    %v166 = vpop.permute.xlu0 %165
    %169 = vset.pattern.permute.xlu0 0
    %170 = vperm.xlu0 %169, %v31
    %v171 = vpop.permute.xlu0 %170
    %174 = vset.pattern.permute.xlu0 0
    %175 = vperm.xlu0 %174, %v32
    %v176 = vpop.permute.xlu0 %175
    %179 = vset.pattern.permute.xlu0 0
    %180 = vperm.xlu0 %179, %v33
    %v181 = vpop.permute.xlu0 %180
    %184 = vset.pattern.permute.xlu0 0
    %185 = vperm.xlu0 %184, %v34
    %v186 = vpop.permute.xlu0 %185
    %189 = vset.pattern.permute.xlu0 0
    %190 = vperm.xlu0 %189, %v35
    %v191 = vpop.permute.xlu0 %190
    %194 = vset.pattern.permute.xlu0 0
    %195 = vperm.xlu0 %194, %v36
    %v196 = vpop.permute.xlu0 %195
    %199 = vset.pattern.permute.xlu0 0
    %200 = vperm.xlu0 %199, %v37
    %v201 = vpop.permute.xlu0 %200
    %204 = vset.pattern.permute.xlu0 0
    %205 = vperm.xlu0 %204, %v38
    %v206 = vpop.permute.xlu0 %205
    %209 = vset.pattern.permute.xlu0 0
    %210 = vperm.xlu0 %209, %v39
    %v211 = vpop.permute.xlu0 %210
    %214 = vset.pattern.permute.xlu0 0
    %215 = vperm.xlu0 %214, %v40
    %v216 = vpop.permute.xlu0 %215
    %219 = vset.pattern.permute.xlu0 0
    %220 = vperm.xlu0 %219, %v41
    %v221 = vpop.permute.xlu0 %220
    %224 = vset.pattern.permute.xlu0 0
    %225 = vperm.xlu0 %224, %v42
    %v226 = vpop.permute.xlu0 %225
    %229 = vset.pattern.permute.xlu0 0
    %230 = vperm.xlu0 %229, %v43
    %v231 = vpop.permute.xlu0 %230
    %234 = vset.pattern.permute.xlu0 0
    %235 = vperm.xlu0 %234, %v44
    %v236 = vpop.permute.xlu0 %235
    %239 = vset.pattern.permute.xlu0 0
    %240 = vperm.xlu0 %239, %v45
    %v241 = vpop.permute.xlu0 %240
    %244 = vset.pattern.permute.xlu0 0
    %245 = vperm.xlu0 %244, %v46
    %v246 = vpop.permute.xlu0 %245
    %249 = vset.pattern.permute.xlu0 0
    %250 = vperm.xlu0 %249, %v47
    %v251 = vpop.permute.xlu0 %250
    %254 = vset.pattern.permute.xlu0 0
    %255 = vperm.xlu0 %254, %v48
    %v256 = vpop.permute.xlu0 %255
    %259 = vset.pattern.permute.xlu0 0
    %260 = vperm.xlu0 %259, %v49
    %v261 = vpop.permute.xlu0 %260
    %264 = vset.pattern.permute.xlu0 0
    %265 = vperm.xlu0 %264, %v50
    %v266 = vpop.permute.xlu0 %265
    %269 = vset.pattern.permute.xlu0 0
    %270 = vperm.xlu0 %269, %v51
    %v271 = vpop.permute.xlu0 %270
    %274 = vset.pattern.permute.xlu0 0
    %275 = vperm.xlu0 %274, %v52
    %v276 = vpop.permute.xlu0 %275
    %279 = vset.pattern.permute.xlu0 0
    %280 = vperm.xlu0 %279, %v53
    %v281 = vpop.permute.xlu0 %280
    %284 = vset.pattern.permute.xlu0 0
    %285 = vperm.xlu0 %284, %v54
    %v286 = vpop.permute.xlu0 %285
    %289 = vset.pattern.permute.xlu0 0
    %290 = vperm.xlu0 %289, %v55
    %v291 = vpop.permute.xlu0 %290
    %294 = vset.pattern.permute.xlu0 0
    %295 = vperm.xlu0 %294, %v56
    %v296 = vpop.permute.xlu0 %295
    %299 = vset.pattern.permute.xlu0 0
    %300 = vperm.xlu0 %299, %v57
    %v301 = vpop.permute.xlu0 %300
    %304 = vset.pattern.permute.xlu0 0
    %305 = vperm.xlu0 %304, %v58
    %v306 = vpop.permute.xlu0 %305
    %309 = vset.pattern.permute.xlu0 0
    %310 = vperm.xlu0 %309, %v59
    %v311 = vpop.permute.xlu0 %310
    %314 = vset.pattern.permute.xlu0 0
    %315 = vperm.xlu0 %314, %v60
    %v316 = vpop.permute.xlu0 %315
    %319 = vset.pattern.permute.xlu0 0
    %320 = vperm.xlu0 %319, %v61
    %v321 = vpop.permute.xlu0 %320
    %324 = vset.pattern.permute.xlu0 0
    %325 = vperm.xlu0 %324, %v62
    %v326 = vpop.permute.xlu0 %325
    %329 = vset.pattern.permute.xlu0 0
    %330 = vperm.xlu0 %329, %v63
    %v331 = vpop.permute.xlu0 %330
    %334 = vset.pattern.permute.xlu0 0
    %335 = vperm.xlu0 %334, %v64
    %v336 = vpop.permute.xlu0 %335
    %339 = vset.pattern.permute.xlu0 0
    %340 = vperm.xlu0 %339, %v65
    %v341 = vpop.permute.xlu0 %340
    %344 = vset.pattern.permute.xlu0 0
    %345 = vperm.xlu0 %344, %v66
    %v346 = vpop.permute.xlu0 %345
    %349 = vset.pattern.permute.xlu0 0
    %350 = vperm.xlu0 %349, %v67
    %v351 = vpop.permute.xlu0 %350
    %354 = vset.pattern.permute.xlu0 0
    %355 = vperm.xlu0 %354, %v68
    %v356 = vpop.permute.xlu0 %355
    %359 = vset.pattern.permute.xlu0 0
    %360 = vperm.xlu0 %359, %v69
    %v361 = vpop.permute.xlu0 %360
    %364 = vset.pattern.permute.xlu0 0
    %365 = vperm.xlu0 %364, %v70
    %v366 = vpop.permute.xlu0 %365
    %369 = vset.pattern.permute.xlu0 0
    %370 = vperm.xlu0 %369, %v71
    %v371 = vpop.permute.xlu0 %370
    %374 = vset.pattern.permute.xlu0 0
    %375 = vperm.xlu0 %374, %v72
    %v376 = vpop.permute.xlu0 %375
    %379 = vset.pattern.permute.xlu0 0
    %380 = vperm.xlu0 %379, %v73
    %v381 = vpop.permute.xlu0 %380
    %384 = vset.pattern.permute.xlu0 0
    %385 = vperm.xlu0 %384, %v74
    %v386 = vpop.permute.xlu0 %385
    %389 = vset.pattern.permute.xlu0 0
    %390 = vperm.xlu0 %389, %v75
    %v391 = vpop.permute.xlu0 %390
    %394 = vset.pattern.permute.xlu0 0
    %395 = vperm.xlu0 %394, %v76
    %v396 = vpop.permute.xlu0 %395
    %399 = vset.pattern.permute.xlu0 0
    %400 = vperm.xlu0 %399, %v77
    %v401 = vpop.permute.xlu0 %400
    %404 = vset.pattern.permute.xlu0 0
    %405 = vperm.xlu0 %404, %v78
    %v406 = vpop.permute.xlu0 %405
    %409 = vset.pattern.permute.xlu0 0
    %410 = vperm.xlu0 %409, %v79
    %v411 = vpop.permute.xlu0 %410
    %414 = vset.pattern.permute.xlu0 0
    %415 = vperm.xlu0 %414, %v80
    %v416 = vpop.permute.xlu0 %415
    %419 = vset.pattern.permute.xlu0 0
    %420 = vperm.xlu0 %419, %v81
    %v421 = vpop.permute.xlu0 %420
    %424 = vset.pattern.permute.xlu0 0
    %425 = vperm.xlu0 %424, %v82
    %v426 = vpop.permute.xlu0 %425
    %429 = vset.pattern.permute.xlu0 0
    %430 = vperm.xlu0 %429, %v83
    %v431 = vpop.permute.xlu0 %430
    %434 = vset.pattern.permute.xlu0 0
    %435 = vperm.xlu0 %434, %v84
    %v436 = vpop.permute.xlu0 %435
    %439 = vset.pattern.permute.xlu0 0
    %440 = vperm.xlu0 %439, %v85
    %v441 = vpop.permute.xlu0 %440
    %444 = vset.pattern.permute.xlu0 0
    %445 = vperm.xlu0 %444, %v86
    %v446 = vpop.permute.xlu0 %445
    %449 = vset.pattern.permute.xlu0 0
    %450 = vperm.xlu0 %449, %v87
    %v451 = vpop.permute.xlu0 %450
    %454 = vset.pattern.permute.xlu0 0
    %455 = vperm.xlu0 %454, %v88
    %v456 = vpop.permute.xlu0 %455
    %459 = vset.pattern.permute.xlu0 0
    %460 = vperm.xlu0 %459, %v89
    %v461 = vpop.permute.xlu0 %460
    %464 = vset.pattern.permute.xlu0 0
    %465 = vperm.xlu0 %464, %v90
    %v466 = vpop.permute.xlu0 %465
    %469 = vset.pattern.permute.xlu0 0
    %470 = vperm.xlu0 %469, %v91
    %v471 = vpop.permute.xlu0 %470
    %474 = vset.pattern.permute.xlu0 0
    %475 = vperm.xlu0 %474, %v92
    %v476 = vpop.permute.xlu0 %475
    %479 = vset.pattern.permute.xlu0 0
    %480 = vperm.xlu0 %479, %v93
    %v481 = vpop.permute.xlu0 %480
    %484 = vset.pattern.permute.xlu0 0
    %485 = vperm.xlu0 %484, %v94
    %v486 = vpop.permute.xlu0 %485
    %489 = vset.pattern.permute.xlu0 0
    %490 = vperm.xlu0 %489, %v95
    %v491 = vpop.permute.xlu0 %490
    %494 = vset.pattern.permute.xlu0 0
    %495 = vperm.xlu0 %494, %v96
    %v496 = vpop.permute.xlu0 %495
    %499 = vset.pattern.permute.xlu0 0
    %500 = vperm.xlu0 %499, %v97
    %v501 = vpop.permute.xlu0 %500
    %504 = vset.pattern.permute.xlu0 0
    %505 = vperm.xlu0 %504, %v98
    %v506 = vpop.permute.xlu0 %505
    %509 = vset.pattern.permute.xlu0 0
    %510 = vperm.xlu0 %509, %v99
    %v511 = vpop.permute.xlu0 %510
    %514 = vset.pattern.permute.xlu0 0
    %515 = vperm.xlu0 %514, %v100
    %v516 = vpop.permute.xlu0 %515
    %519 = vset.pattern.permute.xlu0 0
    %520 = vperm.xlu0 %519, %v101
    %v521 = vpop.permute.xlu0 %520
    %524 = vset.pattern.permute.xlu0 0
    %525 = vperm.xlu0 %524, %v102
    %v526 = vpop.permute.xlu0 %525
    %529 = vset.pattern.permute.xlu0 0
    %530 = vperm.xlu0 %529, %v103
    %v531 = vpop.permute.xlu0 %530
    %534 = vset.pattern.permute.xlu0 0
    %535 = vperm.xlu0 %534, %v104
    %v536 = vpop.permute.xlu0 %535
    %539 = vset.pattern.permute.xlu0 0
    %540 = vperm.xlu0 %539, %v105
    %v541 = vpop.permute.xlu0 %540
    %544 = vset.pattern.permute.xlu0 0
    %545 = vperm.xlu0 %544, %v106
    %v546 = vpop.permute.xlu0 %545
    %549 = vset.pattern.permute.xlu0 0
    %550 = vperm.xlu0 %549, %v107
    %v551 = vpop.permute.xlu0 %550
    %554 = vset.pattern.permute.xlu0 0
    %555 = vperm.xlu0 %554, %v108
    %v556 = vpop.permute.xlu0 %555
    %559 = vset.pattern.permute.xlu0 0
    %560 = vperm.xlu0 %559, %v109
    %v561 = vpop.permute.xlu0 %560
    %564 = vset.pattern.permute.xlu0 0
    %565 = vperm.xlu0 %564, %v110
    %v566 = vpop.permute.xlu0 %565
    %569 = vset.pattern.permute.xlu0 0
    %570 = vperm.xlu0 %569, %v111
    %v571 = vpop.permute.xlu0 %570
    %574 = vset.pattern.permute.xlu0 0
    %575 = vperm.xlu0 %574, %v112
    %v576 = vpop.permute.xlu0 %575
    %579 = vset.pattern.permute.xlu0 0
    %580 = vperm.xlu0 %579, %v113
    %v581 = vpop.permute.xlu0 %580
    %584 = vset.pattern.permute.xlu0 0
    %585 = vperm.xlu0 %584, %v114
    %v586 = vpop.permute.xlu0 %585
    %589 = vset.pattern.permute.xlu0 0
    %590 = vperm.xlu0 %589, %v115
    %v591 = vpop.permute.xlu0 %590
    %594 = vset.pattern.permute.xlu0 0
    %595 = vperm.xlu0 %594, %v116
    %v596 = vpop.permute.xlu0 %595
    %599 = vset.pattern.permute.xlu0 0
    %600 = vperm.xlu0 %599, %v117
    %v601 = vpop.permute.xlu0 %600
    %604 = vset.pattern.permute.xlu0 0
    %605 = vperm.xlu0 %604, %v118
    %v606 = vpop.permute.xlu0 %605
    %609 = vset.pattern.permute.xlu0 0
    %610 = vperm.xlu0 %609, %v119
    %v611 = vpop.permute.xlu0 %610
    %614 = vset.pattern.permute.xlu0 0
    %615 = vperm.xlu0 %614, %v120
    %v616 = vpop.permute.xlu0 %615
    %619 = vset.pattern.permute.xlu0 0
    %620 = vperm.xlu0 %619, %v121
    %v621 = vpop.permute.xlu0 %620
    %624 = vset.pattern.permute.xlu0 0
    %625 = vperm.xlu0 %624, %v122
    %v626 = vpop.permute.xlu0 %625
    %629 = vset.pattern.permute.xlu0 0
    %630 = vperm.xlu0 %629, %v123
    %v631 = vpop.permute.xlu0 %630
    %634 = vset.pattern.permute.xlu0 0
    %635 = vperm.xlu0 %634, %v124
    %v636 = vpop.permute.xlu0 %635
    %639 = vset.pattern.permute.xlu0 0
    %640 = vperm.xlu0 %639, %v125
    %v641 = vpop.permute.xlu0 %640
    %644 = vset.pattern.permute.xlu0 0
    %645 = vperm.xlu0 %644, %v126
    %v646 = vpop.permute.xlu0 %645
    %649 = vset.pattern.permute.xlu0 0
    %650 = vperm.xlu0 %649, %v127
    %v651 = vpop.permute.xlu0 %650
    %654 = vset.pattern.permute.xlu0 0
    %655 = vperm.xlu0 %654, %v128
    %v656 = vpop.permute.xlu0 %655
    %659 = vset.pattern.permute.xlu0 0
    %660 = vperm.xlu0 %659, %v129
    %v661 = vpop.permute.xlu0 %660
    %664 = vset.pattern.permute.xlu0 0
    %665 = vperm.xlu0 %664, %v130
    %v666 = vpop.permute.xlu0 %665
    %669 = vset.pattern.permute.xlu0 0
    %670 = vperm.xlu0 %669, %v131
    %v671 = vpop.permute.xlu0 %670
    %674 = vset.pattern.permute.xlu0 0
    %675 = vperm.xlu0 %674, %v132
    %v676 = vpop.permute.xlu0 %675
    %679 = vset.pattern.permute.xlu0 0
    %680 = vperm.xlu0 %679, %v133
    %v681 = vpop.permute.xlu0 %680
    %684 = vset.pattern.permute.xlu0 0
    %685 = vperm.xlu0 %684, %v134
    %v686 = vpop.permute.xlu0 %685
    %689 = vset.pattern.permute.xlu0 0
    %690 = vperm.xlu0 %689, %v135
    %v691 = vpop.permute.xlu0 %690
    %694 = vset.pattern.permute.xlu0 0
    %695 = vperm.xlu0 %694, %v136
    %v696 = vpop.permute.xlu0 %695
    %699 = vset.pattern.permute.xlu0 0
    %700 = vperm.xlu0 %699, %v137
    %v701 = vpop.permute.xlu0 %700
    %704 = vset.pattern.permute.xlu0 0
    %705 = vperm.xlu0 %704, %v138
    %v706 = vpop.permute.xlu0 %705
    %709 = vset.pattern.permute.xlu0 0
    %710 = vperm.xlu0 %709, %v139
    %v711 = vpop.permute.xlu0 %710
    %714 = vset.pattern.permute.xlu0 0
    %715 = vperm.xlu0 %714, %v140
    %v716 = vpop.permute.xlu0 %715
    %719 = vset.pattern.permute.xlu0 0
    %720 = vperm.xlu0 %719, %v141
    %v721 = vpop.permute.xlu0 %720
    %724 = vset.pattern.permute.xlu0 0
    %725 = vperm.xlu0 %724, %v142
    %v726 = vpop.permute.xlu0 %725
    %729 = vset.pattern.permute.xlu0 0
    %730 = vperm.xlu0 %729, %v143
    %v731 = vpop.permute.xlu0 %730
    %734 = vset.pattern.permute.xlu0 0
    %735 = vperm.xlu0 %734, %v144
    %v736 = vpop.permute.xlu0 %735
    %739 = vset.pattern.permute.xlu0 0
    %740 = vperm.xlu0 %739, %v145
    %v741 = vpop.permute.xlu0 %740
    %744 = vset.pattern.permute.xlu0 0
    %745 = vperm.xlu0 %744, %v146
    %v746 = vpop.permute.xlu0 %745
    %v748 = vlaneseq
    %v749 = vshrl.u32 %v748, 7
    %v750 = vsub.s32 0, %v749
    %v751 = vrot.slane %v147, %v750
    %v752 = vmul.f32 %v151, %v751
    %v753 = vmul.f32 %v156, %v751
    %v754 = vmul.f32 %v161, %v751
    %v755 = vmul.f32 %v166, %v751
    %v756 = vmul.f32 %v171, %v751
    %v757 = vmul.f32 %v176, %v751
    %v758 = vmul.f32 %v181, %v751
    %v759 = vmul.f32 %v186, %v751
    %v760 = vmul.f32 %v191, %v751
    %v761 = vmul.f32 %v196, %v751
    %v762 = vmul.f32 %v201, %v751
    %v763 = vmul.f32 %v206, %v751
    %v764 = vmul.f32 %v211, %v751
    %v765 = vmul.f32 %v216, %v751
    %v766 = vmul.f32 %v221, %v751
    %v767 = vmul.f32 %v226, %v751
    %v768 = vmul.f32 %v231, %v751
    %v769 = vmul.f32 %v236, %v751
    %v770 = vmul.f32 %v241, %v751
    %v771 = vmul.f32 %v246, %v751
    %v772 = vmul.f32 %v251, %v751
    %v773 = vmul.f32 %v256, %v751
    %v774 = vmul.f32 %v261, %v751
    %v775 = vmul.f32 %v266, %v751
    %v776 = vmul.f32 %v271, %v751
    %v777 = vmul.f32 %v276, %v751
    %v778 = vmul.f32 %v281, %v751
    %v779 = vmul.f32 %v286, %v751
    %v780 = vmul.f32 %v291, %v751
    %v781 = vmul.f32 %v296, %v751
    %v782 = vmul.f32 %v301, %v751
    %v783 = vmul.f32 %v306, %v751
    %v784 = vmul.f32 %v311, %v751
    %v785 = vmul.f32 %v316, %v751
    %v786 = vmul.f32 %v321, %v751
    %v787 = vmul.f32 %v326, %v751
    %v788 = vmul.f32 %v331, %v751
    %v789 = vmul.f32 %v336, %v751
    %v790 = vmul.f32 %v341, %v751
    %v791 = vmul.f32 %v346, %v751
    %v792 = vmul.f32 %v351, %v751
    %v793 = vmul.f32 %v356, %v751
    %v794 = vmul.f32 %v361, %v751
    %v795 = vmul.f32 %v366, %v751
    %v796 = vmul.f32 %v371, %v751
    %v797 = vmul.f32 %v376, %v751
    %v798 = vmul.f32 %v381, %v751
    %v799 = vmul.f32 %v386, %v751
    %v800 = vmul.f32 %v391, %v751
    %v801 = vmul.f32 %v396, %v751
    %v802 = vmul.f32 %v401, %v751
    %v803 = vmul.f32 %v406, %v751
    %v804 = vmul.f32 %v411, %v751
    %v805 = vmul.f32 %v416, %v751
    %v806 = vmul.f32 %v421, %v751
    %v807 = vmul.f32 %v426, %v751
    %v808 = vmul.f32 %v431, %v751
    %v809 = vmul.f32 %v436, %v751
    %v810 = vmul.f32 %v441, %v751
    %v811 = vmul.f32 %v446, %v751
    %v812 = vmul.f32 %v451, %v751
    %v813 = vmul.f32 %v456, %v751
    %v814 = vmul.f32 %v461, %v751
    %v815 = vmul.f32 %v466, %v751
    %v816 = vmul.f32 %v471, %v751
    %v817 = vmul.f32 %v476, %v751
    %v818 = vmul.f32 %v481, %v751
    %v819 = vmul.f32 %v486, %v751
    %v820 = vmul.f32 %v491, %v751
    %v821 = vmul.f32 %v496, %v751
    %v822 = vmul.f32 %v501, %v751
    %v823 = vmul.f32 %v506, %v751
    %v824 = vmul.f32 %v511, %v751
    %v825 = vmul.f32 %v516, %v751
    %v826 = vmul.f32 %v521, %v751
    %v827 = vmul.f32 %v526, %v751
    %v828 = vmul.f32 %v531, %v751
    %v829 = vmul.f32 %v536, %v751
    %v830 = vmul.f32 %v541, %v751
    %v831 = vmul.f32 %v546, %v751
    %v832 = vmul.f32 %v551, %v751
    %v833 = vmul.f32 %v556, %v751
    %v834 = vmul.f32 %v561, %v751
    %v835 = vmul.f32 %v566, %v751
    %v836 = vmul.f32 %v571, %v751
    %v837 = vmul.f32 %v576, %v751
    %v838 = vmul.f32 %v581, %v751
    %v839 = vmul.f32 %v586, %v751
    %v840 = vmul.f32 %v591, %v751
    %v841 = vmul.f32 %v596, %v751
    %v842 = vmul.f32 %v601, %v751
    %v843 = vmul.f32 %v606, %v751
    %v844 = vmul.f32 %v611, %v751
    %v845 = vmul.f32 %v616, %v751
    %v846 = vmul.f32 %v621, %v751
    %v847 = vmul.f32 %v626, %v751
    %v848 = vmul.f32 %v631, %v751
    %v849 = vmul.f32 %v636, %v751
    %v850 = vmul.f32 %v641, %v751
    %v851 = vmul.f32 %v646, %v751
    %v852 = vmul.f32 %v651, %v751
    %v853 = vmul.f32 %v656, %v751
    %v854 = vmul.f32 %v661, %v751
    %v855 = vmul.f32 %v666, %v751
    %v856 = vmul.f32 %v671, %v751
    %v857 = vmul.f32 %v676, %v751
    %v858 = vmul.f32 %v681, %v751
    %v859 = vmul.f32 %v686, %v751
    %v860 = vmul.f32 %v691, %v751
    %v861 = vmul.f32 %v696, %v751
    %v862 = vmul.f32 %v701, %v751
    %v863 = vmul.f32 %v706, %v751
    %v864 = vmul.f32 %v711, %v751
    %v865 = vmul.f32 %v716, %v751
    %v866 = vmul.f32 %v721, %v751
    %v867 = vmul.f32 %v726, %v751
    %v868 = vmul.f32 %v731, %v751
    %v869 = vmul.f32 %v736, %v751
    %v870 = vmul.f32 %v741, %v751
    %v871 = vmul.f32 %v746, %v751
    %v872 = vld [vmem:[%s0 + $0x1] sm:$0xff]
    %v873 = vld [vmem:[%s0 + $0x9] sm:$0xff]
    %v874 = vld [vmem:[%s0 + $0x11] sm:$0xff]
    %v875 = vld [vmem:[%s0 + $0x19] sm:$0xff]
    %v876 = vld [vmem:[%s0 + $0x21] sm:$0xff]
    %v877 = vld [vmem:[%s0 + $0x29] sm:$0xff]
    %v878 = vld [vmem:[%s0 + $0x31] sm:$0xff]
    %v879 = vld [vmem:[%s0 + $0x39] sm:$0xff]
    %v880 = vld [vmem:[%s0 + $0x41] sm:$0xff]
    %v881 = vld [vmem:[%s0 + $0x49] sm:$0xff]
    %v882 = vld [vmem:[%s0 + $0x51] sm:$0xff]
    %v883 = vld [vmem:[%s0 + $0x59] sm:$0xff]
    %v884 = vld [vmem:[%s0 + $0x61] sm:$0xff]
    %v885 = vld [vmem:[%s0 + $0x69] sm:$0xff]
    %v886 = vld [vmem:[%s0 + $0x71] sm:$0xff]
    %v887 = vld [vmem:[%s0 + $0x81] sm:$0xff]
    %v888 = vld [vmem:[%s0 + $0x89] sm:$0xff]
    %v889 = vld [vmem:[%s0 + $0x91] sm:$0xff]
    %v890 = vld [vmem:[%s0 + $0x99] sm:$0xff]
    %v891 = vld [vmem:[%s0 + $0xa1] sm:$0xff]
    %v892 = vld [vmem:[%s0 + $0xa9] sm:$0xff]
    %v893 = vld [vmem:[%s0 + $0xb1] sm:$0xff]
    %v894 = vld [vmem:[%s0 + $0xb9] sm:$0xff]
    %v895 = vld [vmem:[%s0 + $0xc1] sm:$0xff]
    %v896 = vld [vmem:[%s0 + $0xc9] sm:$0xff]
    %v897 = vld [vmem:[%s0 + $0xd1] sm:$0xff]
    %v898 = vld [vmem:[%s0 + $0xd9] sm:$0xff]
    %v899 = vld [vmem:[%s0 + $0xe1] sm:$0xff]
    %v900 = vld [vmem:[%s0 + $0xe9] sm:$0xff]
    %v901 = vld [vmem:[%s0 + $0xf1] sm:$0xff]
    %v902 = vld [vmem:[%s0 + $0x101] sm:$0xff]
    %v903 = vld [vmem:[%s0 + $0x109] sm:$0xff]
    %v904 = vld [vmem:[%s0 + $0x111] sm:$0xff]
    %v905 = vld [vmem:[%s0 + $0x119] sm:$0xff]
    %v906 = vld [vmem:[%s0 + $0x121] sm:$0xff]
    %v907 = vld [vmem:[%s0 + $0x129] sm:$0xff]
    %v908 = vld [vmem:[%s0 + $0x131] sm:$0xff]
    %v909 = vld [vmem:[%s0 + $0x139] sm:$0xff]
    %v910 = vld [vmem:[%s0 + $0x141] sm:$0xff]
    %v911 = vld [vmem:[%s0 + $0x149] sm:$0xff]
    %v912 = vld [vmem:[%s0 + $0x151] sm:$0xff]
    %v913 = vld [vmem:[%s0 + $0x159] sm:$0xff]
    %v914 = vld [vmem:[%s0 + $0x161] sm:$0xff]
    %v915 = vld [vmem:[%s0 + $0x169] sm:$0xff]
    %v916 = vld [vmem:[%s0 + $0x171] sm:$0xff]
    %v917 = vld [vmem:[%s0 + $0x181] sm:$0xff]
    %v918 = vld [vmem:[%s0 + $0x189] sm:$0xff]
    %v919 = vld [vmem:[%s0 + $0x191] sm:$0xff]
    %v920 = vld [vmem:[%s0 + $0x199] sm:$0xff]
    %v921 = vld [vmem:[%s0 + $0x1a1] sm:$0xff]
    %v922 = vld [vmem:[%s0 + $0x1a9] sm:$0xff]
    %v923 = vld [vmem:[%s0 + $0x1b1] sm:$0xff]
    %v924 = vld [vmem:[%s0 + $0x1b9] sm:$0xff]
    %v925 = vld [vmem:[%s0 + $0x1c1] sm:$0xff]
    %v926 = vld [vmem:[%s0 + $0x1c9] sm:$0xff]
    %v927 = vld [vmem:[%s0 + $0x1d1] sm:$0xff]
    %v928 = vld [vmem:[%s0 + $0x1d9] sm:$0xff]
    %v929 = vld [vmem:[%s0 + $0x1e1] sm:$0xff]
    %v930 = vld [vmem:[%s0 + $0x1e9] sm:$0xff]
    %v931 = vld [vmem:[%s0 + $0x1f1] sm:$0xff]
    %v932 = vld [vmem:[%s0 + $0x201] sm:$0xff]
    %v933 = vld [vmem:[%s0 + $0x209] sm:$0xff]
    %v934 = vld [vmem:[%s0 + $0x211] sm:$0xff]
    %v935 = vld [vmem:[%s0 + $0x219] sm:$0xff]
    %v936 = vld [vmem:[%s0 + $0x221] sm:$0xff]
    %v937 = vld [vmem:[%s0 + $0x229] sm:$0xff]
    %v938 = vld [vmem:[%s0 + $0x231] sm:$0xff]
    %v939 = vld [vmem:[%s0 + $0x239] sm:$0xff]
    %v940 = vld [vmem:[%s0 + $0x241] sm:$0xff]
    %v941 = vld [vmem:[%s0 + $0x249] sm:$0xff]
    %v942 = vld [vmem:[%s0 + $0x251] sm:$0xff]
    %v943 = vld [vmem:[%s0 + $0x259] sm:$0xff]
    %v944 = vld [vmem:[%s0 + $0x261] sm:$0xff]
    %v945 = vld [vmem:[%s0 + $0x269] sm:$0xff]
    %v946 = vld [vmem:[%s0 + $0x271] sm:$0xff]
    %v947 = vld [vmem:[%s0 + $0x281] sm:$0xff]
    %v948 = vld [vmem:[%s0 + $0x289] sm:$0xff]
    %v949 = vld [vmem:[%s0 + $0x291] sm:$0xff]
    %v950 = vld [vmem:[%s0 + $0x299] sm:$0xff]
    %v951 = vld [vmem:[%s0 + $0x2a1] sm:$0xff]
    %v952 = vld [vmem:[%s0 + $0x2a9] sm:$0xff]
    %v953 = vld [vmem:[%s0 + $0x2b1] sm:$0xff]
    %v954 = vld [vmem:[%s0 + $0x2b9] sm:$0xff]
    %v955 = vld [vmem:[%s0 + $0x2c1] sm:$0xff]
    %v956 = vld [vmem:[%s0 + $0x2c9] sm:$0xff]
    %v957 = vld [vmem:[%s0 + $0x2d1] sm:$0xff]
    %v958 = vld [vmem:[%s0 + $0x2d9] sm:$0xff]
    %v959 = vld [vmem:[%s0 + $0x2e1] sm:$0xff]
    %v960 = vld [vmem:[%s0 + $0x2e9] sm:$0xff]
    %v961 = vld [vmem:[%s0 + $0x2f1] sm:$0xff]
    %v962 = vld [vmem:[%s0 + $0x301] sm:$0xff]
    %v963 = vld [vmem:[%s0 + $0x309] sm:$0xff]
    %v964 = vld [vmem:[%s0 + $0x311] sm:$0xff]
    %v965 = vld [vmem:[%s0 + $0x319] sm:$0xff]
    %v966 = vld [vmem:[%s0 + $0x321] sm:$0xff]
    %v967 = vld [vmem:[%s0 + $0x329] sm:$0xff]
    %v968 = vld [vmem:[%s0 + $0x331] sm:$0xff]
    %v969 = vld [vmem:[%s0 + $0x339] sm:$0xff]
    %v970 = vld [vmem:[%s0 + $0x341] sm:$0xff]
    %v971 = vld [vmem:[%s0 + $0x349] sm:$0xff]
    %v972 = vld [vmem:[%s0 + $0x351] sm:$0xff]
    %v973 = vld [vmem:[%s0 + $0x359] sm:$0xff]
    %v974 = vld [vmem:[%s0 + $0x361] sm:$0xff]
    %v975 = vld [vmem:[%s0 + $0x369] sm:$0xff]
    %v976 = vld [vmem:[%s0 + $0x371] sm:$0xff]
    %v977 = vld [vmem:[%s0 + $0x381] sm:$0xff]
    %v978 = vld [vmem:[%s0 + $0x389] sm:$0xff]
    %v979 = vld [vmem:[%s0 + $0x391] sm:$0xff]
    %v980 = vld [vmem:[%s0 + $0x399] sm:$0xff]
    %v981 = vld [vmem:[%s0 + $0x3a1] sm:$0xff]
    %v982 = vld [vmem:[%s0 + $0x3a9] sm:$0xff]
    %v983 = vld [vmem:[%s0 + $0x3b1] sm:$0xff]
    %v984 = vld [vmem:[%s0 + $0x3b9] sm:$0xff]
    %v985 = vld [vmem:[%s0 + $0x3c1] sm:$0xff]
    %v986 = vld [vmem:[%s0 + $0x3c9] sm:$0xff]
    %v987 = vld [vmem:[%s0 + $0x3d1] sm:$0xff]
    %v988 = vld [vmem:[%s0 + $0x3d9] sm:$0xff]
    %v989 = vld [vmem:[%s0 + $0x3e1] sm:$0xff]
    %v990 = vld [vmem:[%s0 + $0x3e9] sm:$0xff]
    %v991 = vld [vmem:[%s0 + $0x3f1] sm:$0xff]
    %v992 = vld [vmem:[%s1 + $0x1] sm:$0x1]
    %994 = vset.pattern.permute.xlu0 0
    %995 = vperm.xlu0 %994, %v872
    %v996 = vpop.permute.xlu0 %995
    %999 = vset.pattern.permute.xlu0 0
    %1000 = vperm.xlu0 %999, %v873
    %v1001 = vpop.permute.xlu0 %1000
    %1004 = vset.pattern.permute.xlu0 0
    %1005 = vperm.xlu0 %1004, %v874
    %v1006 = vpop.permute.xlu0 %1005
    %1009 = vset.pattern.permute.xlu0 0
    %1010 = vperm.xlu0 %1009, %v875
    %v1011 = vpop.permute.xlu0 %1010
    %1014 = vset.pattern.permute.xlu0 0
    %1015 = vperm.xlu0 %1014, %v876
    %v1016 = vpop.permute.xlu0 %1015
    %1019 = vset.pattern.permute.xlu0 0
    %1020 = vperm.xlu0 %1019, %v877
    %v1021 = vpop.permute.xlu0 %1020
    %1024 = vset.pattern.permute.xlu0 0
    %1025 = vperm.xlu0 %1024, %v878
    %v1026 = vpop.permute.xlu0 %1025
    %1029 = vset.pattern.permute.xlu0 0
    %1030 = vperm.xlu0 %1029, %v879
    %v1031 = vpop.permute.xlu0 %1030
    %1034 = vset.pattern.permute.xlu0 0
    %1035 = vperm.xlu0 %1034, %v880
    %v1036 = vpop.permute.xlu0 %1035
    %1039 = vset.pattern.permute.xlu0 0
    %1040 = vperm.xlu0 %1039, %v881
    %v1041 = vpop.permute.xlu0 %1040
    %1044 = vset.pattern.permute.xlu0 0
    %1045 = vperm.xlu0 %1044, %v882
    %v1046 = vpop.permute.xlu0 %1045
    %1049 = vset.pattern.permute.xlu0 0
    %1050 = vperm.xlu0 %1049, %v883
    %v1051 = vpop.permute.xlu0 %1050
    %1054 = vset.pattern.permute.xlu0 0
    %1055 = vperm.xlu0 %1054, %v884
    %v1056 = vpop.permute.xlu0 %1055
    %1059 = vset.pattern.permute.xlu0 0
    %1060 = vperm.xlu0 %1059, %v885
    %v1061 = vpop.permute.xlu0 %1060
    %1064 = vset.pattern.permute.xlu0 0
    %1065 = vperm.xlu0 %1064, %v886
    %v1066 = vpop.permute.xlu0 %1065
    %1069 = vset.pattern.permute.xlu0 0
    %1070 = vperm.xlu0 %1069, %v887
    %v1071 = vpop.permute.xlu0 %1070
    %1074 = vset.pattern.permute.xlu0 0
    %1075 = vperm.xlu0 %1074, %v888
    %v1076 = vpop.permute.xlu0 %1075
    %1079 = vset.pattern.permute.xlu0 0
    %1080 = vperm.xlu0 %1079, %v889
    %v1081 = vpop.permute.xlu0 %1080
    %1084 = vset.pattern.permute.xlu0 0
    %1085 = vperm.xlu0 %1084, %v890
    %v1086 = vpop.permute.xlu0 %1085
    %1089 = vset.pattern.permute.xlu0 0
    %1090 = vperm.xlu0 %1089, %v891
    %v1091 = vpop.permute.xlu0 %1090
    %1094 = vset.pattern.permute.xlu0 0
    %1095 = vperm.xlu0 %1094, %v892
    %v1096 = vpop.permute.xlu0 %1095
    %1099 = vset.pattern.permute.xlu0 0
    %1100 = vperm.xlu0 %1099, %v893
    %v1101 = vpop.permute.xlu0 %1100
    %1104 = vset.pattern.permute.xlu0 0
    %1105 = vperm.xlu0 %1104, %v894
    %v1106 = vpop.permute.xlu0 %1105
    %1109 = vset.pattern.permute.xlu0 0
    %1110 = vperm.xlu0 %1109, %v895
    %v1111 = vpop.permute.xlu0 %1110
    %1114 = vset.pattern.permute.xlu0 0
    %1115 = vperm.xlu0 %1114, %v896
    %v1116 = vpop.permute.xlu0 %1115
    %1119 = vset.pattern.permute.xlu0 0
    %1120 = vperm.xlu0 %1119, %v897
    %v1121 = vpop.permute.xlu0 %1120
    %1124 = vset.pattern.permute.xlu0 0
    %1125 = vperm.xlu0 %1124, %v898
    %v1126 = vpop.permute.xlu0 %1125
    %1129 = vset.pattern.permute.xlu0 0
    %1130 = vperm.xlu0 %1129, %v899
    %v1131 = vpop.permute.xlu0 %1130
    %1134 = vset.pattern.permute.xlu0 0
    %1135 = vperm.xlu0 %1134, %v900
    %v1136 = vpop.permute.xlu0 %1135
    %1139 = vset.pattern.permute.xlu0 0
    %1140 = vperm.xlu0 %1139, %v901
    %v1141 = vpop.permute.xlu0 %1140
    %1144 = vset.pattern.permute.xlu0 0
    %1145 = vperm.xlu0 %1144, %v902
    %v1146 = vpop.permute.xlu0 %1145
    %1149 = vset.pattern.permute.xlu0 0
    %1150 = vperm.xlu0 %1149, %v903
    %v1151 = vpop.permute.xlu0 %1150
    %1154 = vset.pattern.permute.xlu0 0
    %1155 = vperm.xlu0 %1154, %v904
    %v1156 = vpop.permute.xlu0 %1155
    %1159 = vset.pattern.permute.xlu0 0
    %1160 = vperm.xlu0 %1159, %v905
    %v1161 = vpop.permute.xlu0 %1160
    %1164 = vset.pattern.permute.xlu0 0
    %1165 = vperm.xlu0 %1164, %v906
    %v1166 = vpop.permute.xlu0 %1165
    %1169 = vset.pattern.permute.xlu0 0
    %1170 = vperm.xlu0 %1169, %v907
    %v1171 = vpop.permute.xlu0 %1170
    %1174 = vset.pattern.permute.xlu0 0
    %1175 = vperm.xlu0 %1174, %v908
    %v1176 = vpop.permute.xlu0 %1175
    %1179 = vset.pattern.permute.xlu0 0
    %1180 = vperm.xlu0 %1179, %v909
    %v1181 = vpop.permute.xlu0 %1180
    %1184 = vset.pattern.permute.xlu0 0
    %1185 = vperm.xlu0 %1184, %v910
    %v1186 = vpop.permute.xlu0 %1185
    %1189 = vset.pattern.permute.xlu0 0
    %1190 = vperm.xlu0 %1189, %v911
    %v1191 = vpop.permute.xlu0 %1190
    %1194 = vset.pattern.permute.xlu0 0
    %1195 = vperm.xlu0 %1194, %v912
    %v1196 = vpop.permute.xlu0 %1195
    %1199 = vset.pattern.permute.xlu0 0
    %1200 = vperm.xlu0 %1199, %v913
    %v1201 = vpop.permute.xlu0 %1200
    %1204 = vset.pattern.permute.xlu0 0
    %1205 = vperm.xlu0 %1204, %v914
    %v1206 = vpop.permute.xlu0 %1205
    %1209 = vset.pattern.permute.xlu0 0
    %1210 = vperm.xlu0 %1209, %v915
    %v1211 = vpop.permute.xlu0 %1210
    %1214 = vset.pattern.permute.xlu0 0
    %1215 = vperm.xlu0 %1214, %v916
    %v1216 = vpop.permute.xlu0 %1215
    %1219 = vset.pattern.permute.xlu0 0
    %1220 = vperm.xlu0 %1219, %v917
    %v1221 = vpop.permute.xlu0 %1220
    %1224 = vset.pattern.permute.xlu0 0
    %1225 = vperm.xlu0 %1224, %v918
    %v1226 = vpop.permute.xlu0 %1225
    %1229 = vset.pattern.permute.xlu0 0
    %1230 = vperm.xlu0 %1229, %v919
    %v1231 = vpop.permute.xlu0 %1230
    %1234 = vset.pattern.permute.xlu0 0
    %1235 = vperm.xlu0 %1234, %v920
    %v1236 = vpop.permute.xlu0 %1235
    %1239 = vset.pattern.permute.xlu0 0
    %1240 = vperm.xlu0 %1239, %v921
    %v1241 = vpop.permute.xlu0 %1240
    %1244 = vset.pattern.permute.xlu0 0
    %1245 = vperm.xlu0 %1244, %v922
    %v1246 = vpop.permute.xlu0 %1245
    %1249 = vset.pattern.permute.xlu0 0
    %1250 = vperm.xlu0 %1249, %v923
    %v1251 = vpop.permute.xlu0 %1250
    %1254 = vset.pattern.permute.xlu0 0
    %1255 = vperm.xlu0 %1254, %v924
    %v1256 = vpop.permute.xlu0 %1255
    %1259 = vset.pattern.permute.xlu0 0
    %1260 = vperm.xlu0 %1259, %v925
    %v1261 = vpop.permute.xlu0 %1260
    %1264 = vset.pattern.permute.xlu0 0
    %1265 = vperm.xlu0 %1264, %v926
    %v1266 = vpop.permute.xlu0 %1265
    %1269 = vset.pattern.permute.xlu0 0
    %1270 = vperm.xlu0 %1269, %v927
    %v1271 = vpop.permute.xlu0 %1270
    %1274 = vset.pattern.permute.xlu0 0
    %1275 = vperm.xlu0 %1274, %v928
    %v1276 = vpop.permute.xlu0 %1275
    %1279 = vset.pattern.permute.xlu0 0
    %1280 = vperm.xlu0 %1279, %v929
    %v1281 = vpop.permute.xlu0 %1280
    %1284 = vset.pattern.permute.xlu0 0
    %1285 = vperm.xlu0 %1284, %v930
    %v1286 = vpop.permute.xlu0 %1285
    %1289 = vset.pattern.permute.xlu0 0
    %1290 = vperm.xlu0 %1289, %v931
    %v1291 = vpop.permute.xlu0 %1290
    %1294 = vset.pattern.permute.xlu0 0
    %1295 = vperm.xlu0 %1294, %v932
    %v1296 = vpop.permute.xlu0 %1295
    %1299 = vset.pattern.permute.xlu0 0
    %1300 = vperm.xlu0 %1299, %v933
    %v1301 = vpop.permute.xlu0 %1300
    %1304 = vset.pattern.permute.xlu0 0
    %1305 = vperm.xlu0 %1304, %v934
    %v1306 = vpop.permute.xlu0 %1305
    %1309 = vset.pattern.permute.xlu0 0
    %1310 = vperm.xlu0 %1309, %v935
    %v1311 = vpop.permute.xlu0 %1310
    %1314 = vset.pattern.permute.xlu0 0
    %1315 = vperm.xlu0 %1314, %v936
    %v1316 = vpop.permute.xlu0 %1315
    %1319 = vset.pattern.permute.xlu0 0
    %1320 = vperm.xlu0 %1319, %v937
    %v1321 = vpop.permute.xlu0 %1320
    %1324 = vset.pattern.permute.xlu0 0
    %1325 = vperm.xlu0 %1324, %v938
    %v1326 = vpop.permute.xlu0 %1325
    %1329 = vset.pattern.permute.xlu0 0
    %1330 = vperm.xlu0 %1329, %v939
    %v1331 = vpop.permute.xlu0 %1330
    %1334 = vset.pattern.permute.xlu0 0
    %1335 = vperm.xlu0 %1334, %v940
    %v1336 = vpop.permute.xlu0 %1335
    %1339 = vset.pattern.permute.xlu0 0
    %1340 = vperm.xlu0 %1339, %v941
    %v1341 = vpop.permute.xlu0 %1340
    %1344 = vset.pattern.permute.xlu0 0
    %1345 = vperm.xlu0 %1344, %v942
    %v1346 = vpop.permute.xlu0 %1345
    %1349 = vset.pattern.permute.xlu0 0
    %1350 = vperm.xlu0 %1349, %v943
    %v1351 = vpop.permute.xlu0 %1350
    %1354 = vset.pattern.permute.xlu0 0
    %1355 = vperm.xlu0 %1354, %v944
    %v1356 = vpop.permute.xlu0 %1355
    %1359 = vset.pattern.permute.xlu0 0
    %1360 = vperm.xlu0 %1359, %v945
    %v1361 = vpop.permute.xlu0 %1360
    %1364 = vset.pattern.permute.xlu0 0
    %1365 = vperm.xlu0 %1364, %v946
    %v1366 = vpop.permute.xlu0 %1365
    %1369 = vset.pattern.permute.xlu0 0
    %1370 = vperm.xlu0 %1369, %v947
    %v1371 = vpop.permute.xlu0 %1370
    %1374 = vset.pattern.permute.xlu0 0
    %1375 = vperm.xlu0 %1374, %v948
    %v1376 = vpop.permute.xlu0 %1375
    %1379 = vset.pattern.permute.xlu0 0
    %1380 = vperm.xlu0 %1379, %v949
    %v1381 = vpop.permute.xlu0 %1380
    %1384 = vset.pattern.permute.xlu0 0
    %1385 = vperm.xlu0 %1384, %v950
    %v1386 = vpop.permute.xlu0 %1385
    %1389 = vset.pattern.permute.xlu0 0
    %1390 = vperm.xlu0 %1389, %v951
    %v1391 = vpop.permute.xlu0 %1390
    %1394 = vset.pattern.permute.xlu0 0
    %1395 = vperm.xlu0 %1394, %v952
    %v1396 = vpop.permute.xlu0 %1395
    %1399 = vset.pattern.permute.xlu0 0
    %1400 = vperm.xlu0 %1399, %v953
    %v1401 = vpop.permute.xlu0 %1400
    %1404 = vset.pattern.permute.xlu0 0
    %1405 = vperm.xlu0 %1404, %v954
    %v1406 = vpop.permute.xlu0 %1405
    %1409 = vset.pattern.permute.xlu0 0
    %1410 = vperm.xlu0 %1409, %v955
    %v1411 = vpop.permute.xlu0 %1410
    %1414 = vset.pattern.permute.xlu0 0
    %1415 = vperm.xlu0 %1414, %v956
    %v1416 = vpop.permute.xlu0 %1415
    %1419 = vset.pattern.permute.xlu0 0
    %1420 = vperm.xlu0 %1419, %v957
    %v1421 = vpop.permute.xlu0 %1420
    %1424 = vset.pattern.permute.xlu0 0
    %1425 = vperm.xlu0 %1424, %v958
    %v1426 = vpop.permute.xlu0 %1425
    %1429 = vset.pattern.permute.xlu0 0
    %1430 = vperm.xlu0 %1429, %v959
    %v1431 = vpop.permute.xlu0 %1430
    %1434 = vset.pattern.permute.xlu0 0
    %1435 = vperm.xlu0 %1434, %v960
    %v1436 = vpop.permute.xlu0 %1435
    %1439 = vset.pattern.permute.xlu0 0
    %1440 = vperm.xlu0 %1439, %v961
    %v1441 = vpop.permute.xlu0 %1440
    %1444 = vset.pattern.permute.xlu0 0
    %1445 = vperm.xlu0 %1444, %v962
    %v1446 = vpop.permute.xlu0 %1445
    %1449 = vset.pattern.permute.xlu0 0
    %1450 = vperm.xlu0 %1449, %v963
    %v1451 = vpop.permute.xlu0 %1450
    %1454 = vset.pattern.permute.xlu0 0
    %1455 = vperm.xlu0 %1454, %v964
    %v1456 = vpop.permute.xlu0 %1455
    %1459 = vset.pattern.permute.xlu0 0
    %1460 = vperm.xlu0 %1459, %v965
    %v1461 = vpop.permute.xlu0 %1460
    %1464 = vset.pattern.permute.xlu0 0
    %1465 = vperm.xlu0 %1464, %v966
    %v1466 = vpop.permute.xlu0 %1465
    %1469 = vset.pattern.permute.xlu0 0
    %1470 = vperm.xlu0 %1469, %v967
    %v1471 = vpop.permute.xlu0 %1470
    %1474 = vset.pattern.permute.xlu0 0
    %1475 = vperm.xlu0 %1474, %v968
    %v1476 = vpop.permute.xlu0 %1475
    %1479 = vset.pattern.permute.xlu0 0
    %1480 = vperm.xlu0 %1479, %v969
    %v1481 = vpop.permute.xlu0 %1480
    %1484 = vset.pattern.permute.xlu0 0
    %1485 = vperm.xlu0 %1484, %v970
    %v1486 = vpop.permute.xlu0 %1485
    %1489 = vset.pattern.permute.xlu0 0
    %1490 = vperm.xlu0 %1489, %v971
    %v1491 = vpop.permute.xlu0 %1490
    %1494 = vset.pattern.permute.xlu0 0
    %1495 = vperm.xlu0 %1494, %v972
    %v1496 = vpop.permute.xlu0 %1495
    %1499 = vset.pattern.permute.xlu0 0
    %1500 = vperm.xlu0 %1499, %v973
    %v1501 = vpop.permute.xlu0 %1500
    %1504 = vset.pattern.permute.xlu0 0
    %1505 = vperm.xlu0 %1504, %v974
    %v1506 = vpop.permute.xlu0 %1505
    %1509 = vset.pattern.permute.xlu0 0
    %1510 = vperm.xlu0 %1509, %v975
    %v1511 = vpop.permute.xlu0 %1510
    %1514 = vset.pattern.permute.xlu0 0
    %1515 = vperm.xlu0 %1514, %v976
    %v1516 = vpop.permute.xlu0 %1515
    %1519 = vset.pattern.permute.xlu0 0
    %1520 = vperm.xlu0 %1519, %v977
    %v1521 = vpop.permute.xlu0 %1520
    %1524 = vset.pattern.permute.xlu0 0
    %1525 = vperm.xlu0 %1524, %v978
    %v1526 = vpop.permute.xlu0 %1525
    %1529 = vset.pattern.permute.xlu0 0
    %1530 = vperm.xlu0 %1529, %v979
    %v1531 = vpop.permute.xlu0 %1530
    %1534 = vset.pattern.permute.xlu0 0
    %1535 = vperm.xlu0 %1534, %v980
    %v1536 = vpop.permute.xlu0 %1535
    %1539 = vset.pattern.permute.xlu0 0
    %1540 = vperm.xlu0 %1539, %v981
    %v1541 = vpop.permute.xlu0 %1540
    %1544 = vset.pattern.permute.xlu0 0
    %1545 = vperm.xlu0 %1544, %v982
    %v1546 = vpop.permute.xlu0 %1545
    %1549 = vset.pattern.permute.xlu0 0
    %1550 = vperm.xlu0 %1549, %v983
    %v1551 = vpop.permute.xlu0 %1550
    %1554 = vset.pattern.permute.xlu0 0
    %1555 = vperm.xlu0 %1554, %v984
    %v1556 = vpop.permute.xlu0 %1555
    %1559 = vset.pattern.permute.xlu0 0
    %1560 = vperm.xlu0 %1559, %v985
    %v1561 = vpop.permute.xlu0 %1560
    %1564 = vset.pattern.permute.xlu0 0
    %1565 = vperm.xlu0 %1564, %v986
    %v1566 = vpop.permute.xlu0 %1565
    %1569 = vset.pattern.permute.xlu0 0
    %1570 = vperm.xlu0 %1569, %v987
    %v1571 = vpop.permute.xlu0 %1570
    %1574 = vset.pattern.permute.xlu0 0
    %1575 = vperm.xlu0 %1574, %v988
    %v1576 = vpop.permute.xlu0 %1575
    %1579 = vset.pattern.permute.xlu0 0
    %1580 = vperm.xlu0 %1579, %v989
    %v1581 = vpop.permute.xlu0 %1580
    %1584 = vset.pattern.permute.xlu0 0
    %1585 = vperm.xlu0 %1584, %v990
    %v1586 = vpop.permute.xlu0 %1585
    %1589 = vset.pattern.permute.xlu0 0
    %1590 = vperm.xlu0 %1589, %v991
    %v1591 = vpop.permute.xlu0 %1590
    %v1593 = vlaneseq
    %v1594 = vshrl.u32 %v1593, 7
    %v1595 = vsub.s32 0, %v1594
    %v1596 = vrot.slane %v992, %v1595
    %v1597 = vmul.f32 %v996, %v1596
    %v1598 = vmul.f32 %v1001, %v1596
    %v1599 = vmul.f32 %v1006, %v1596
    %v1600 = vmul.f32 %v1011, %v1596
    %v1601 = vmul.f32 %v1016, %v1596
    %v1602 = vmul.f32 %v1021, %v1596
    %v1603 = vmul.f32 %v1026, %v1596
    %v1604 = vmul.f32 %v1031, %v1596
    %v1605 = vmul.f32 %v1036, %v1596
    %v1606 = vmul.f32 %v1041, %v1596
    %v1607 = vmul.f32 %v1046, %v1596
    %v1608 = vmul.f32 %v1051, %v1596
    %v1609 = vmul.f32 %v1056, %v1596
    %v1610 = vmul.f32 %v1061, %v1596
    %v1611 = vmul.f32 %v1066, %v1596
    %v1612 = vmul.f32 %v1071, %v1596
    %v1613 = vmul.f32 %v1076, %v1596
    %v1614 = vmul.f32 %v1081, %v1596
    %v1615 = vmul.f32 %v1086, %v1596
    %v1616 = vmul.f32 %v1091, %v1596
    %v1617 = vmul.f32 %v1096, %v1596
    %v1618 = vmul.f32 %v1101, %v1596
    %v1619 = vmul.f32 %v1106, %v1596
    %v1620 = vmul.f32 %v1111, %v1596
    %v1621 = vmul.f32 %v1116, %v1596
    %v1622 = vmul.f32 %v1121, %v1596
    %v1623 = vmul.f32 %v1126, %v1596
    %v1624 = vmul.f32 %v1131, %v1596
    %v1625 = vmul.f32 %v1136, %v1596
    %v1626 = vmul.f32 %v1141, %v1596
    %v1627 = vmul.f32 %v1146, %v1596
    %v1628 = vmul.f32 %v1151, %v1596
    %v1629 = vmul.f32 %v1156, %v1596
    %v1630 = vmul.f32 %v1161, %v1596
    %v1631 = vmul.f32 %v1166, %v1596
    %v1632 = vmul.f32 %v1171, %v1596
    %v1633 = vmul.f32 %v1176, %v1596
    %v1634 = vmul.f32 %v1181, %v1596
    %v1635 = vmul.f32 %v1186, %v1596
    %v1636 = vmul.f32 %v1191, %v1596
    %v1637 = vmul.f32 %v1196, %v1596
    %v1638 = vmul.f32 %v1201, %v1596
    %v1639 = vmul.f32 %v1206, %v1596
    %v1640 = vmul.f32 %v1211, %v1596
    %v1641 = vmul.f32 %v1216, %v1596
    %v1642 = vmul.f32 %v1221, %v1596
    %v1643 = vmul.f32 %v1226, %v1596
    %v1644 = vmul.f32 %v1231, %v1596
    %v1645 = vmul.f32 %v1236, %v1596
    %v1646 = vmul.f32 %v1241, %v1596
    %v1647 = vmul.f32 %v1246, %v1596
    %v1648 = vmul.f32 %v1251, %v1596
    %v1649 = vmul.f32 %v1256, %v1596
    %v1650 = vmul.f32 %v1261, %v1596
    %v1651 = vmul.f32 %v1266, %v1596
    %v1652 = vmul.f32 %v1271, %v1596
    %v1653 = vmul.f32 %v1276, %v1596
    %v1654 = vmul.f32 %v1281, %v1596
    %v1655 = vmul.f32 %v1286, %v1596
    %v1656 = vmul.f32 %v1291, %v1596
    %v1657 = vmul.f32 %v1296, %v1596
    %v1658 = vmul.f32 %v1301, %v1596
    %v1659 = vmul.f32 %v1306, %v1596
    %v1660 = vmul.f32 %v1311, %v1596
    %v1661 = vmul.f32 %v1316, %v1596
    %v1662 = vmul.f32 %v1321, %v1596
    %v1663 = vmul.f32 %v1326, %v1596
    %v1664 = vmul.f32 %v1331, %v1596
    %v1665 = vmul.f32 %v1336, %v1596
    %v1666 = vmul.f32 %v1341, %v1596
    %v1667 = vmul.f32 %v1346, %v1596
    %v1668 = vmul.f32 %v1351, %v1596
    %v1669 = vmul.f32 %v1356, %v1596
    %v1670 = vmul.f32 %v1361, %v1596
    %v1671 = vmul.f32 %v1366, %v1596
    %v1672 = vmul.f32 %v1371, %v1596
    %v1673 = vmul.f32 %v1376, %v1596
    %v1674 = vmul.f32 %v1381, %v1596
    %v1675 = vmul.f32 %v1386, %v1596
    %v1676 = vmul.f32 %v1391, %v1596
    %v1677 = vmul.f32 %v1396, %v1596
    %v1678 = vmul.f32 %v1401, %v1596
    %v1679 = vmul.f32 %v1406, %v1596
    %v1680 = vmul.f32 %v1411, %v1596
    %v1681 = vmul.f32 %v1416, %v1596
    %v1682 = vmul.f32 %v1421, %v1596
    %v1683 = vmul.f32 %v1426, %v1596
    %v1684 = vmul.f32 %v1431, %v1596
    %v1685 = vmul.f32 %v1436, %v1596
    %v1686 = vmul.f32 %v1441, %v1596
    %v1687 = vmul.f32 %v1446, %v1596
    %v1688 = vmul.f32 %v1451, %v1596
    %v1689 = vmul.f32 %v1456, %v1596
    %v1690 = vmul.f32 %v1461, %v1596
    %v1691 = vmul.f32 %v1466, %v1596
    %v1692 = vmul.f32 %v1471, %v1596
    %v1693 = vmul.f32 %v1476, %v1596
    %v1694 = vmul.f32 %v1481, %v1596
    %v1695 = vmul.f32 %v1486, %v1596
    %v1696 = vmul.f32 %v1491, %v1596
    %v1697 = vmul.f32 %v1496, %v1596
    %v1698 = vmul.f32 %v1501, %v1596
    %v1699 = vmul.f32 %v1506, %v1596
    %v1700 = vmul.f32 %v1511, %v1596
    %v1701 = vmul.f32 %v1516, %v1596
    %v1702 = vmul.f32 %v1521, %v1596
    %v1703 = vmul.f32 %v1526, %v1596
    %v1704 = vmul.f32 %v1531, %v1596
    %v1705 = vmul.f32 %v1536, %v1596
    %v1706 = vmul.f32 %v1541, %v1596
    %v1707 = vmul.f32 %v1546, %v1596
    %v1708 = vmul.f32 %v1551, %v1596
    %v1709 = vmul.f32 %v1556, %v1596
    %v1710 = vmul.f32 %v1561, %v1596
    %v1711 = vmul.f32 %v1566, %v1596
    %v1712 = vmul.f32 %v1571, %v1596
    %v1713 = vmul.f32 %v1576, %v1596
    %v1714 = vmul.f32 %v1581, %v1596
    %v1715 = vmul.f32 %v1586, %v1596
    %v1716 = vmul.f32 %v1591, %v1596
    %v1717 = vadd.f32 %v752, %v1597
    %v1718 = vadd.f32 %v753, %v1598
    %v1719 = vadd.f32 %v754, %v1599
    %v1720 = vadd.f32 %v755, %v1600
    %v1721 = vadd.f32 %v756, %v1601
    %v1722 = vadd.f32 %v757, %v1602
    %v1723 = vadd.f32 %v758, %v1603
    %v1724 = vadd.f32 %v759, %v1604
    %v1725 = vadd.f32 %v760, %v1605
    %v1726 = vadd.f32 %v761, %v1606
    %v1727 = vadd.f32 %v762, %v1607
    %v1728 = vadd.f32 %v763, %v1608
    %v1729 = vadd.f32 %v764, %v1609
    %v1730 = vadd.f32 %v765, %v1610
    %v1731 = vadd.f32 %v766, %v1611
    %v1732 = vadd.f32 %v767, %v1612
    %v1733 = vadd.f32 %v768, %v1613
    %v1734 = vadd.f32 %v769, %v1614
    %v1735 = vadd.f32 %v770, %v1615
    %v1736 = vadd.f32 %v771, %v1616
    %v1737 = vadd.f32 %v772, %v1617
    %v1738 = vadd.f32 %v773, %v1618
    %v1739 = vadd.f32 %v774, %v1619
    %v1740 = vadd.f32 %v775, %v1620
    %v1741 = vadd.f32 %v776, %v1621
    %v1742 = vadd.f32 %v777, %v1622
    %v1743 = vadd.f32 %v778, %v1623
    %v1744 = vadd.f32 %v779, %v1624
    %v1745 = vadd.f32 %v780, %v1625
    %v1746 = vadd.f32 %v781, %v1626
    %v1747 = vadd.f32 %v782, %v1627
    %v1748 = vadd.f32 %v783, %v1628
    %v1749 = vadd.f32 %v784, %v1629
    %v1750 = vadd.f32 %v785, %v1630
    %v1751 = vadd.f32 %v786, %v1631
    %v1752 = vadd.f32 %v787, %v1632
    %v1753 = vadd.f32 %v788, %v1633
    %v1754 = vadd.f32 %v789, %v1634
    %v1755 = vadd.f32 %v790, %v1635
    %v1756 = vadd.f32 %v791, %v1636
    %v1757 = vadd.f32 %v792, %v1637
    %v1758 = vadd.f32 %v793, %v1638
    %v1759 = vadd.f32 %v794, %v1639
    %v1760 = vadd.f32 %v795, %v1640
    %v1761 = vadd.f32 %v796, %v1641
    %v1762 = vadd.f32 %v797, %v1642
    %v1763 = vadd.f32 %v798, %v1643
    %v1764 = vadd.f32 %v799, %v1644
    %v1765 = vadd.f32 %v800, %v1645
    %v1766 = vadd.f32 %v801, %v1646
    %v1767 = vadd.f32 %v802, %v1647
    %v1768 = vadd.f32 %v803, %v1648
    %v1769 = vadd.f32 %v804, %v1649
    %v1770 = vadd.f32 %v805, %v1650
    %v1771 = vadd.f32 %v806, %v1651
    %v1772 = vadd.f32 %v807, %v1652
    %v1773 = vadd.f32 %v808, %v1653
    %v1774 = vadd.f32 %v809, %v1654
    %v1775 = vadd.f32 %v810, %v1655
    %v1776 = vadd.f32 %v811, %v1656
    %v1777 = vadd.f32 %v812, %v1657
    %v1778 = vadd.f32 %v813, %v1658
    %v1779 = vadd.f32 %v814, %v1659
    %v1780 = vadd.f32 %v815, %v1660
    %v1781 = vadd.f32 %v816, %v1661
    %v1782 = vadd.f32 %v817, %v1662
    %v1783 = vadd.f32 %v818, %v1663
    %v1784 = vadd.f32 %v819, %v1664
    %v1785 = vadd.f32 %v820, %v1665
    %v1786 = vadd.f32 %v821, %v1666
    %v1787 = vadd.f32 %v822, %v1667
    %v1788 = vadd.f32 %v823, %v1668
    %v1789 = vadd.f32 %v824, %v1669
    %v1790 = vadd.f32 %v825, %v1670
    %v1791 = vadd.f32 %v826, %v1671
    %v1792 = vadd.f32 %v827, %v1672
    %v1793 = vadd.f32 %v828, %v1673
    %v1794 = vadd.f32 %v829, %v1674
    %v1795 = vadd.f32 %v830, %v1675
    %v1796 = vadd.f32 %v831, %v1676
    %v1797 = vadd.f32 %v832, %v1677
    %v1798 = vadd.f32 %v833, %v1678
    %v1799 = vadd.f32 %v834, %v1679
    %v1800 = vadd.f32 %v835, %v1680
    %v1801 = vadd.f32 %v836, %v1681
    %v1802 = vadd.f32 %v837, %v1682
    %v1803 = vadd.f32 %v838, %v1683
    %v1804 = vadd.f32 %v839, %v1684
    %v1805 = vadd.f32 %v840, %v1685
    %v1806 = vadd.f32 %v841, %v1686
    %v1807 = vadd.f32 %v842, %v1687
    %v1808 = vadd.f32 %v843, %v1688
    %v1809 = vadd.f32 %v844, %v1689
    %v1810 = vadd.f32 %v845, %v1690
    %v1811 = vadd.f32 %v846, %v1691
    %v1812 = vadd.f32 %v847, %v1692
    %v1813 = vadd.f32 %v848, %v1693
    %v1814 = vadd.f32 %v849, %v1694
    %v1815 = vadd.f32 %v850, %v1695
    %v1816 = vadd.f32 %v851, %v1696
    %v1817 = vadd.f32 %v852, %v1697
    %v1818 = vadd.f32 %v853, %v1698
    %v1819 = vadd.f32 %v854, %v1699
    %v1820 = vadd.f32 %v855, %v1700
    %v1821 = vadd.f32 %v856, %v1701
    %v1822 = vadd.f32 %v857, %v1702
    %v1823 = vadd.f32 %v858, %v1703
    %v1824 = vadd.f32 %v859, %v1704
    %v1825 = vadd.f32 %v860, %v1705
    %v1826 = vadd.f32 %v861, %v1706
    %v1827 = vadd.f32 %v862, %v1707
    %v1828 = vadd.f32 %v863, %v1708
    %v1829 = vadd.f32 %v864, %v1709
    %v1830 = vadd.f32 %v865, %v1710
    %v1831 = vadd.f32 %v866, %v1711
    %v1832 = vadd.f32 %v867, %v1712
    %v1833 = vadd.f32 %v868, %v1713
    %v1834 = vadd.f32 %v869, %v1714
    %v1835 = vadd.f32 %v870, %v1715
    %v1836 = vadd.f32 %v871, %v1716
    %v1837 = vld [vmem:[%s0 + $0x2] sm:$0xff]
    %v1838 = vld [vmem:[%s0 + $0xa] sm:$0xff]
    %v1839 = vld [vmem:[%s0 + $0x12] sm:$0xff]
    %v1840 = vld [vmem:[%s0 + $0x1a] sm:$0xff]
    %v1841 = vld [vmem:[%s0 + $0x22] sm:$0xff]
    %v1842 = vld [vmem:[%s0 + $0x2a] sm:$0xff]
    %v1843 = vld [vmem:[%s0 + $0x32] sm:$0xff]
    %v1844 = vld [vmem:[%s0 + $0x3a] sm:$0xff]
    %v1845 = vld [vmem:[%s0 + $0x42] sm:$0xff]
    %v1846 = vld [vmem:[%s0 + $0x4a] sm:$0xff]
    %v1847 = vld [vmem:[%s0 + $0x52] sm:$0xff]
    %v1848 = vld [vmem:[%s0 + $0x5a] sm:$0xff]
    %v1849 = vld [vmem:[%s0 + $0x62] sm:$0xff]
    %v1850 = vld [vmem:[%s0 + $0x6a] sm:$0xff]
    %v1851 = vld [vmem:[%s0 + $0x72] sm:$0xff]
    %v1852 = vld [vmem:[%s0 + $0x82] sm:$0xff]
    %v1853 = vld [vmem:[%s0 + $0x8a] sm:$0xff]
    %v1854 = vld [vmem:[%s0 + $0x92] sm:$0xff]
    %v1855 = vld [vmem:[%s0 + $0x9a] sm:$0xff]
    %v1856 = vld [vmem:[%s0 + $0xa2] sm:$0xff]
    %v1857 = vld [vmem:[%s0 + $0xaa] sm:$0xff]
    %v1858 = vld [vmem:[%s0 + $0xb2] sm:$0xff]
    %v1859 = vld [vmem:[%s0 + $0xba] sm:$0xff]
    %v1860 = vld [vmem:[%s0 + $0xc2] sm:$0xff]
    %v1861 = vld [vmem:[%s0 + $0xca] sm:$0xff]
    %v1862 = vld [vmem:[%s0 + $0xd2] sm:$0xff]
    %v1863 = vld [vmem:[%s0 + $0xda] sm:$0xff]
    %v1864 = vld [vmem:[%s0 + $0xe2] sm:$0xff]
    %v1865 = vld [vmem:[%s0 + $0xea] sm:$0xff]
    %v1866 = vld [vmem:[%s0 + $0xf2] sm:$0xff]
    %v1867 = vld [vmem:[%s0 + $0x102] sm:$0xff]
    %v1868 = vld [vmem:[%s0 + $0x10a] sm:$0xff]
    %v1869 = vld [vmem:[%s0 + $0x112] sm:$0xff]
    %v1870 = vld [vmem:[%s0 + $0x11a] sm:$0xff]
    %v1871 = vld [vmem:[%s0 + $0x122] sm:$0xff]
    %v1872 = vld [vmem:[%s0 + $0x12a] sm:$0xff]
    %v1873 = vld [vmem:[%s0 + $0x132] sm:$0xff]
    %v1874 = vld [vmem:[%s0 + $0x13a] sm:$0xff]
    %v1875 = vld [vmem:[%s0 + $0x142] sm:$0xff]
    %v1876 = vld [vmem:[%s0 + $0x14a] sm:$0xff]
    %v1877 = vld [vmem:[%s0 + $0x152] sm:$0xff]
    %v1878 = vld [vmem:[%s0 + $0x15a] sm:$0xff]
    %v1879 = vld [vmem:[%s0 + $0x162] sm:$0xff]
    %v1880 = vld [vmem:[%s0 + $0x16a] sm:$0xff]
    %v1881 = vld [vmem:[%s0 + $0x172] sm:$0xff]
    %v1882 = vld [vmem:[%s0 + $0x182] sm:$0xff]
    %v1883 = vld [vmem:[%s0 + $0x18a] sm:$0xff]
    %v1884 = vld [vmem:[%s0 + $0x192] sm:$0xff]
    %v1885 = vld [vmem:[%s0 + $0x19a] sm:$0xff]
    %v1886 = vld [vmem:[%s0 + $0x1a2] sm:$0xff]
    %v1887 = vld [vmem:[%s0 + $0x1aa] sm:$0xff]
    %v1888 = vld [vmem:[%s0 + $0x1b2] sm:$0xff]
    %v1889 = vld [vmem:[%s0 + $0x1ba] sm:$0xff]
    %v1890 = vld [vmem:[%s0 + $0x1c2] sm:$0xff]
    %v1891 = vld [vmem:[%s0 + $0x1ca] sm:$0xff]
    %v1892 = vld [vmem:[%s0 + $0x1d2] sm:$0xff]
    %v1893 = vld [vmem:[%s0 + $0x1da] sm:$0xff]
    %v1894 = vld [vmem:[%s0 + $0x1e2] sm:$0xff]
    %v1895 = vld [vmem:[%s0 + $0x1ea] sm:$0xff]
    %v1896 = vld [vmem:[%s0 + $0x1f2] sm:$0xff]
    %v1897 = vld [vmem:[%s0 + $0x202] sm:$0xff]
    %v1898 = vld [vmem:[%s0 + $0x20a] sm:$0xff]
    %v1899 = vld [vmem:[%s0 + $0x212] sm:$0xff]
    %v1900 = vld [vmem:[%s0 + $0x21a] sm:$0xff]
    %v1901 = vld [vmem:[%s0 + $0x222] sm:$0xff]
    %v1902 = vld [vmem:[%s0 + $0x22a] sm:$0xff]
    %v1903 = vld [vmem:[%s0 + $0x232] sm:$0xff]
    %v1904 = vld [vmem:[%s0 + $0x23a] sm:$0xff]
    %v1905 = vld [vmem:[%s0 + $0x242] sm:$0xff]
    %v1906 = vld [vmem:[%s0 + $0x24a] sm:$0xff]
    %v1907 = vld [vmem:[%s0 + $0x252] sm:$0xff]
    %v1908 = vld [vmem:[%s0 + $0x25a] sm:$0xff]
    %v1909 = vld [vmem:[%s0 + $0x262] sm:$0xff]
    %v1910 = vld [vmem:[%s0 + $0x26a] sm:$0xff]
    %v1911 = vld [vmem:[%s0 + $0x272] sm:$0xff]
    %v1912 = vld [vmem:[%s0 + $0x282] sm:$0xff]
    %v1913 = vld [vmem:[%s0 + $0x28a] sm:$0xff]
    %v1914 = vld [vmem:[%s0 + $0x292] sm:$0xff]
    %v1915 = vld [vmem:[%s0 + $0x29a] sm:$0xff]
    %v1916 = vld [vmem:[%s0 + $0x2a2] sm:$0xff]
    %v1917 = vld [vmem:[%s0 + $0x2aa] sm:$0xff]
    %v1918 = vld [vmem:[%s0 + $0x2b2] sm:$0xff]
    %v1919 = vld [vmem:[%s0 + $0x2ba] sm:$0xff]
    %v1920 = vld [vmem:[%s0 + $0x2c2] sm:$0xff]
    %v1921 = vld [vmem:[%s0 + $0x2ca] sm:$0xff]
    %v1922 = vld [vmem:[%s0 + $0x2d2] sm:$0xff]
    %v1923 = vld [vmem:[%s0 + $0x2da] sm:$0xff]
    %v1924 = vld [vmem:[%s0 + $0x2e2] sm:$0xff]
    %v1925 = vld [vmem:[%s0 + $0x2ea] sm:$0xff]
    %v1926 = vld [vmem:[%s0 + $0x2f2] sm:$0xff]
    %v1927 = vld [vmem:[%s0 + $0x302] sm:$0xff]
    %v1928 = vld [vmem:[%s0 + $0x30a] sm:$0xff]
    %v1929 = vld [vmem:[%s0 + $0x312] sm:$0xff]
    %v1930 = vld [vmem:[%s0 + $0x31a] sm:$0xff]
    %v1931 = vld [vmem:[%s0 + $0x322] sm:$0xff]
    %v1932 = vld [vmem:[%s0 + $0x32a] sm:$0xff]
    %v1933 = vld [vmem:[%s0 + $0x332] sm:$0xff]
    %v1934 = vld [vmem:[%s0 + $0x33a] sm:$0xff]
    %v1935 = vld [vmem:[%s0 + $0x342] sm:$0xff]
    %v1936 = vld [vmem:[%s0 + $0x34a] sm:$0xff]
    %v1937 = vld [vmem:[%s0 + $0x352] sm:$0xff]
    %v1938 = vld [vmem:[%s0 + $0x35a] sm:$0xff]
    %v1939 = vld [vmem:[%s0 + $0x362] sm:$0xff]
    %v1940 = vld [vmem:[%s0 + $0x36a] sm:$0xff]
    %v1941 = vld [vmem:[%s0 + $0x372] sm:$0xff]
    %v1942 = vld [vmem:[%s0 + $0x382] sm:$0xff]
    %v1943 = vld [vmem:[%s0 + $0x38a] sm:$0xff]
    %v1944 = vld [vmem:[%s0 + $0x392] sm:$0xff]
    %v1945 = vld [vmem:[%s0 + $0x39a] sm:$0xff]
    %v1946 = vld [vmem:[%s0 + $0x3a2] sm:$0xff]
    %v1947 = vld [vmem:[%s0 + $0x3aa] sm:$0xff]
    %v1948 = vld [vmem:[%s0 + $0x3b2] sm:$0xff]
    %v1949 = vld [vmem:[%s0 + $0x3ba] sm:$0xff]
    %v1950 = vld [vmem:[%s0 + $0x3c2] sm:$0xff]
    %v1951 = vld [vmem:[%s0 + $0x3ca] sm:$0xff]
    %v1952 = vld [vmem:[%s0 + $0x3d2] sm:$0xff]
    %v1953 = vld [vmem:[%s0 + $0x3da] sm:$0xff]
    %v1954 = vld [vmem:[%s0 + $0x3e2] sm:$0xff]
    %v1955 = vld [vmem:[%s0 + $0x3ea] sm:$0xff]
    %v1956 = vld [vmem:[%s0 + $0x3f2] sm:$0xff]
    %v1957 = vld [vmem:[%s1 + $0x2] sm:$0x1]
    %1959 = vset.pattern.permute.xlu0 0
    %1960 = vperm.xlu0 %1959, %v1837
    %v1961 = vpop.permute.xlu0 %1960
    %1964 = vset.pattern.permute.xlu0 0
    %1965 = vperm.xlu0 %1964, %v1838
    %v1966 = vpop.permute.xlu0 %1965
    %1969 = vset.pattern.permute.xlu0 0
    %1970 = vperm.xlu0 %1969, %v1839
    %v1971 = vpop.permute.xlu0 %1970
    %1974 = vset.pattern.permute.xlu0 0
    %1975 = vperm.xlu0 %1974, %v1840
    %v1976 = vpop.permute.xlu0 %1975
    %1979 = vset.pattern.permute.xlu0 0
    %1980 = vperm.xlu0 %1979, %v1841
    %v1981 = vpop.permute.xlu0 %1980
    %1984 = vset.pattern.permute.xlu0 0
    %1985 = vperm.xlu0 %1984, %v1842
    %v1986 = vpop.permute.xlu0 %1985
    %1989 = vset.pattern.permute.xlu0 0
    %1990 = vperm.xlu0 %1989, %v1843
    %v1991 = vpop.permute.xlu0 %1990
    %1994 = vset.pattern.permute.xlu0 0
    %1995 = vperm.xlu0 %1994, %v1844
    %v1996 = vpop.permute.xlu0 %1995
    %1999 = vset.pattern.permute.xlu0 0
    %2000 = vperm.xlu0 %1999, %v1845
    %v2001 = vpop.permute.xlu0 %2000
    %2004 = vset.pattern.permute.xlu0 0
    %2005 = vperm.xlu0 %2004, %v1846
    %v2006 = vpop.permute.xlu0 %2005
    %2009 = vset.pattern.permute.xlu0 0
    %2010 = vperm.xlu0 %2009, %v1847
    %v2011 = vpop.permute.xlu0 %2010
    %2014 = vset.pattern.permute.xlu0 0
    %2015 = vperm.xlu0 %2014, %v1848
    %v2016 = vpop.permute.xlu0 %2015
    %2019 = vset.pattern.permute.xlu0 0
    %2020 = vperm.xlu0 %2019, %v1849
    %v2021 = vpop.permute.xlu0 %2020
    %2024 = vset.pattern.permute.xlu0 0
    %2025 = vperm.xlu0 %2024, %v1850
    %v2026 = vpop.permute.xlu0 %2025
    %2029 = vset.pattern.permute.xlu0 0
    %2030 = vperm.xlu0 %2029, %v1851
    %v2031 = vpop.permute.xlu0 %2030
    %2034 = vset.pattern.permute.xlu0 0
    %2035 = vperm.xlu0 %2034, %v1852
    %v2036 = vpop.permute.xlu0 %2035
    %2039 = vset.pattern.permute.xlu0 0
    %2040 = vperm.xlu0 %2039, %v1853
    %v2041 = vpop.permute.xlu0 %2040
    %2044 = vset.pattern.permute.xlu0 0
    %2045 = vperm.xlu0 %2044, %v1854
    %v2046 = vpop.permute.xlu0 %2045
    %2049 = vset.pattern.permute.xlu0 0
    %2050 = vperm.xlu0 %2049, %v1855
    %v2051 = vpop.permute.xlu0 %2050
    %2054 = vset.pattern.permute.xlu0 0
    %2055 = vperm.xlu0 %2054, %v1856
    %v2056 = vpop.permute.xlu0 %2055
    %2059 = vset.pattern.permute.xlu0 0
    %2060 = vperm.xlu0 %2059, %v1857
    %v2061 = vpop.permute.xlu0 %2060
    %2064 = vset.pattern.permute.xlu0 0
    %2065 = vperm.xlu0 %2064, %v1858
    %v2066 = vpop.permute.xlu0 %2065
    %2069 = vset.pattern.permute.xlu0 0
    %2070 = vperm.xlu0 %2069, %v1859
    %v2071 = vpop.permute.xlu0 %2070
    %2074 = vset.pattern.permute.xlu0 0
    %2075 = vperm.xlu0 %2074, %v1860
    %v2076 = vpop.permute.xlu0 %2075
    %2079 = vset.pattern.permute.xlu0 0
    %2080 = vperm.xlu0 %2079, %v1861
    %v2081 = vpop.permute.xlu0 %2080
    %2084 = vset.pattern.permute.xlu0 0
    %2085 = vperm.xlu0 %2084, %v1862
    %v2086 = vpop.permute.xlu0 %2085
    %2089 = vset.pattern.permute.xlu0 0
    %2090 = vperm.xlu0 %2089, %v1863
    %v2091 = vpop.permute.xlu0 %2090
    %2094 = vset.pattern.permute.xlu0 0
    %2095 = vperm.xlu0 %2094, %v1864
    %v2096 = vpop.permute.xlu0 %2095
    %2099 = vset.pattern.permute.xlu0 0
    %2100 = vperm.xlu0 %2099, %v1865
    %v2101 = vpop.permute.xlu0 %2100
    %2104 = vset.pattern.permute.xlu0 0
    %2105 = vperm.xlu0 %2104, %v1866
    %v2106 = vpop.permute.xlu0 %2105
    %2109 = vset.pattern.permute.xlu0 0
    %2110 = vperm.xlu0 %2109, %v1867
    %v2111 = vpop.permute.xlu0 %2110
    %2114 = vset.pattern.permute.xlu0 0
    %2115 = vperm.xlu0 %2114, %v1868
    %v2116 = vpop.permute.xlu0 %2115
    %2119 = vset.pattern.permute.xlu0 0
    %2120 = vperm.xlu0 %2119, %v1869
    %v2121 = vpop.permute.xlu0 %2120
    %2124 = vset.pattern.permute.xlu0 0
    %2125 = vperm.xlu0 %2124, %v1870
    %v2126 = vpop.permute.xlu0 %2125
    %2129 = vset.pattern.permute.xlu0 0
    %2130 = vperm.xlu0 %2129, %v1871
    %v2131 = vpop.permute.xlu0 %2130
    %2134 = vset.pattern.permute.xlu0 0
    %2135 = vperm.xlu0 %2134, %v1872
    %v2136 = vpop.permute.xlu0 %2135
    %2139 = vset.pattern.permute.xlu0 0
    %2140 = vperm.xlu0 %2139, %v1873
    %v2141 = vpop.permute.xlu0 %2140
    %2144 = vset.pattern.permute.xlu0 0
    %2145 = vperm.xlu0 %2144, %v1874
    %v2146 = vpop.permute.xlu0 %2145
    %2149 = vset.pattern.permute.xlu0 0
    %2150 = vperm.xlu0 %2149, %v1875
    %v2151 = vpop.permute.xlu0 %2150
    %2154 = vset.pattern.permute.xlu0 0
    %2155 = vperm.xlu0 %2154, %v1876
    %v2156 = vpop.permute.xlu0 %2155
    %2159 = vset.pattern.permute.xlu0 0
    %2160 = vperm.xlu0 %2159, %v1877
    %v2161 = vpop.permute.xlu0 %2160
    %2164 = vset.pattern.permute.xlu0 0
    %2165 = vperm.xlu0 %2164, %v1878
    %v2166 = vpop.permute.xlu0 %2165
    %2169 = vset.pattern.permute.xlu0 0
    %2170 = vperm.xlu0 %2169, %v1879
    %v2171 = vpop.permute.xlu0 %2170
    %2174 = vset.pattern.permute.xlu0 0
    %2175 = vperm.xlu0 %2174, %v1880
    %v2176 = vpop.permute.xlu0 %2175
    %2179 = vset.pattern.permute.xlu0 0
    %2180 = vperm.xlu0 %2179, %v1881
    %v2181 = vpop.permute.xlu0 %2180
    %2184 = vset.pattern.permute.xlu0 0
    %2185 = vperm.xlu0 %2184, %v1882
    %v2186 = vpop.permute.xlu0 %2185
    %2189 = vset.pattern.permute.xlu0 0
    %2190 = vperm.xlu0 %2189, %v1883
    %v2191 = vpop.permute.xlu0 %2190
    %2194 = vset.pattern.permute.xlu0 0
    %2195 = vperm.xlu0 %2194, %v1884
    %v2196 = vpop.permute.xlu0 %2195
    %2199 = vset.pattern.permute.xlu0 0
    %2200 = vperm.xlu0 %2199, %v1885
    %v2201 = vpop.permute.xlu0 %2200
    %2204 = vset.pattern.permute.xlu0 0
    %2205 = vperm.xlu0 %2204, %v1886
    %v2206 = vpop.permute.xlu0 %2205
    %2209 = vset.pattern.permute.xlu0 0
    %2210 = vperm.xlu0 %2209, %v1887
    %v2211 = vpop.permute.xlu0 %2210
    %2214 = vset.pattern.permute.xlu0 0
    %2215 = vperm.xlu0 %2214, %v1888
    %v2216 = vpop.permute.xlu0 %2215
    %2219 = vset.pattern.permute.xlu0 0
    %2220 = vperm.xlu0 %2219, %v1889
    %v2221 = vpop.permute.xlu0 %2220
    %2224 = vset.pattern.permute.xlu0 0
    %2225 = vperm.xlu0 %2224, %v1890
    %v2226 = vpop.permute.xlu0 %2225
    %2229 = vset.pattern.permute.xlu0 0
    %2230 = vperm.xlu0 %2229, %v1891
    %v2231 = vpop.permute.xlu0 %2230
    %2234 = vset.pattern.permute.xlu0 0
    %2235 = vperm.xlu0 %2234, %v1892
    %v2236 = vpop.permute.xlu0 %2235
    %2239 = vset.pattern.permute.xlu0 0
    %2240 = vperm.xlu0 %2239, %v1893
    %v2241 = vpop.permute.xlu0 %2240
    %2244 = vset.pattern.permute.xlu0 0
    %2245 = vperm.xlu0 %2244, %v1894
    %v2246 = vpop.permute.xlu0 %2245
    %2249 = vset.pattern.permute.xlu0 0
    %2250 = vperm.xlu0 %2249, %v1895
    %v2251 = vpop.permute.xlu0 %2250
    %2254 = vset.pattern.permute.xlu0 0
    %2255 = vperm.xlu0 %2254, %v1896
    %v2256 = vpop.permute.xlu0 %2255
    %2259 = vset.pattern.permute.xlu0 0
    %2260 = vperm.xlu0 %2259, %v1897
    %v2261 = vpop.permute.xlu0 %2260
    %2264 = vset.pattern.permute.xlu0 0
    %2265 = vperm.xlu0 %2264, %v1898
    %v2266 = vpop.permute.xlu0 %2265
    %2269 = vset.pattern.permute.xlu0 0
    %2270 = vperm.xlu0 %2269, %v1899
    %v2271 = vpop.permute.xlu0 %2270
    %2274 = vset.pattern.permute.xlu0 0
    %2275 = vperm.xlu0 %2274, %v1900
    %v2276 = vpop.permute.xlu0 %2275
    %2279 = vset.pattern.permute.xlu0 0
    %2280 = vperm.xlu0 %2279, %v1901
    %v2281 = vpop.permute.xlu0 %2280
    %2284 = vset.pattern.permute.xlu0 0
    %2285 = vperm.xlu0 %2284, %v1902
    %v2286 = vpop.permute.xlu0 %2285
    %2289 = vset.pattern.permute.xlu0 0
    %2290 = vperm.xlu0 %2289, %v1903
    %v2291 = vpop.permute.xlu0 %2290
    %2294 = vset.pattern.permute.xlu0 0
    %2295 = vperm.xlu0 %2294, %v1904
    %v2296 = vpop.permute.xlu0 %2295
    %2299 = vset.pattern.permute.xlu0 0
    %2300 = vperm.xlu0 %2299, %v1905
    %v2301 = vpop.permute.xlu0 %2300
    %2304 = vset.pattern.permute.xlu0 0
    %2305 = vperm.xlu0 %2304, %v1906
    %v2306 = vpop.permute.xlu0 %2305
    %2309 = vset.pattern.permute.xlu0 0
    %2310 = vperm.xlu0 %2309, %v1907
    %v2311 = vpop.permute.xlu0 %2310
    %2314 = vset.pattern.permute.xlu0 0
    %2315 = vperm.xlu0 %2314, %v1908
    %v2316 = vpop.permute.xlu0 %2315
    %2319 = vset.pattern.permute.xlu0 0
    %2320 = vperm.xlu0 %2319, %v1909
    %v2321 = vpop.permute.xlu0 %2320
    %2324 = vset.pattern.permute.xlu0 0
    %2325 = vperm.xlu0 %2324, %v1910
    %v2326 = vpop.permute.xlu0 %2325
    %2329 = vset.pattern.permute.xlu0 0
    %2330 = vperm.xlu0 %2329, %v1911
    %v2331 = vpop.permute.xlu0 %2330
    %2334 = vset.pattern.permute.xlu0 0
    %2335 = vperm.xlu0 %2334, %v1912
    %v2336 = vpop.permute.xlu0 %2335
    %2339 = vset.pattern.permute.xlu0 0
    %2340 = vperm.xlu0 %2339, %v1913
    %v2341 = vpop.permute.xlu0 %2340
    %2344 = vset.pattern.permute.xlu0 0
    %2345 = vperm.xlu0 %2344, %v1914
    %v2346 = vpop.permute.xlu0 %2345
    %2349 = vset.pattern.permute.xlu0 0
    %2350 = vperm.xlu0 %2349, %v1915
    %v2351 = vpop.permute.xlu0 %2350
    %2354 = vset.pattern.permute.xlu0 0
    %2355 = vperm.xlu0 %2354, %v1916
    %v2356 = vpop.permute.xlu0 %2355
    %2359 = vset.pattern.permute.xlu0 0
    %2360 = vperm.xlu0 %2359, %v1917
    %v2361 = vpop.permute.xlu0 %2360
    %2364 = vset.pattern.permute.xlu0 0
    %2365 = vperm.xlu0 %2364, %v1918
    %v2366 = vpop.permute.xlu0 %2365
    %2369 = vset.pattern.permute.xlu0 0
    %2370 = vperm.xlu0 %2369, %v1919
    %v2371 = vpop.permute.xlu0 %2370
    %2374 = vset.pattern.permute.xlu0 0
    %2375 = vperm.xlu0 %2374, %v1920
    %v2376 = vpop.permute.xlu0 %2375
    %2379 = vset.pattern.permute.xlu0 0
    %2380 = vperm.xlu0 %2379, %v1921
    %v2381 = vpop.permute.xlu0 %2380
    %2384 = vset.pattern.permute.xlu0 0
    %2385 = vperm.xlu0 %2384, %v1922
    %v2386 = vpop.permute.xlu0 %2385
    %2389 = vset.pattern.permute.xlu0 0
    %2390 = vperm.xlu0 %2389, %v1923
    %v2391 = vpop.permute.xlu0 %2390
    %2394 = vset.pattern.permute.xlu0 0
    %2395 = vperm.xlu0 %2394, %v1924
    %v2396 = vpop.permute.xlu0 %2395
    %2399 = vset.pattern.permute.xlu0 0
    %2400 = vperm.xlu0 %2399, %v1925
    %v2401 = vpop.permute.xlu0 %2400
    %2404 = vset.pattern.permute.xlu0 0
    %2405 = vperm.xlu0 %2404, %v1926
    %v2406 = vpop.permute.xlu0 %2405
    %2409 = vset.pattern.permute.xlu0 0
    %2410 = vperm.xlu0 %2409, %v1927
    %v2411 = vpop.permute.xlu0 %2410
    %2414 = vset.pattern.permute.xlu0 0
    %2415 = vperm.xlu0 %2414, %v1928
    %v2416 = vpop.permute.xlu0 %2415
    %2419 = vset.pattern.permute.xlu0 0
    %2420 = vperm.xlu0 %2419, %v1929
    %v2421 = vpop.permute.xlu0 %2420
    %2424 = vset.pattern.permute.xlu0 0
    %2425 = vperm.xlu0 %2424, %v1930
    %v2426 = vpop.permute.xlu0 %2425
    %2429 = vset.pattern.permute.xlu0 0
    %2430 = vperm.xlu0 %2429, %v1931
    %v2431 = vpop.permute.xlu0 %2430
    %2434 = vset.pattern.permute.xlu0 0
    %2435 = vperm.xlu0 %2434, %v1932
    %v2436 = vpop.permute.xlu0 %2435
    %2439 = vset.pattern.permute.xlu0 0
    %2440 = vperm.xlu0 %2439, %v1933
    %v2441 = vpop.permute.xlu0 %2440
    %2444 = vset.pattern.permute.xlu0 0
    %2445 = vperm.xlu0 %2444, %v1934
    %v2446 = vpop.permute.xlu0 %2445
    %2449 = vset.pattern.permute.xlu0 0
    %2450 = vperm.xlu0 %2449, %v1935
    %v2451 = vpop.permute.xlu0 %2450
    %2454 = vset.pattern.permute.xlu0 0
    %2455 = vperm.xlu0 %2454, %v1936
    %v2456 = vpop.permute.xlu0 %2455
    %2459 = vset.pattern.permute.xlu0 0
    %2460 = vperm.xlu0 %2459, %v1937
    %v2461 = vpop.permute.xlu0 %2460
    %2464 = vset.pattern.permute.xlu0 0
    %2465 = vperm.xlu0 %2464, %v1938
    %v2466 = vpop.permute.xlu0 %2465
    %2469 = vset.pattern.permute.xlu0 0
    %2470 = vperm.xlu0 %2469, %v1939
    %v2471 = vpop.permute.xlu0 %2470
    %2474 = vset.pattern.permute.xlu0 0
    %2475 = vperm.xlu0 %2474, %v1940
    %v2476 = vpop.permute.xlu0 %2475
    %2479 = vset.pattern.permute.xlu0 0
    %2480 = vperm.xlu0 %2479, %v1941
    %v2481 = vpop.permute.xlu0 %2480
    %2484 = vset.pattern.permute.xlu0 0
    %2485 = vperm.xlu0 %2484, %v1942
    %v2486 = vpop.permute.xlu0 %2485
    %2489 = vset.pattern.permute.xlu0 0
    %2490 = vperm.xlu0 %2489, %v1943
    %v2491 = vpop.permute.xlu0 %2490
    %2494 = vset.pattern.permute.xlu0 0
    %2495 = vperm.xlu0 %2494, %v1944
    %v2496 = vpop.permute.xlu0 %2495
    %2499 = vset.pattern.permute.xlu0 0
    %2500 = vperm.xlu0 %2499, %v1945
    %v2501 = vpop.permute.xlu0 %2500
    %2504 = vset.pattern.permute.xlu0 0
    %2505 = vperm.xlu0 %2504, %v1946
    %v2506 = vpop.permute.xlu0 %2505
    %2509 = vset.pattern.permute.xlu0 0
    %2510 = vperm.xlu0 %2509, %v1947
    %v2511 = vpop.permute.xlu0 %2510
    %2514 = vset.pattern.permute.xlu0 0
    %2515 = vperm.xlu0 %2514, %v1948
    %v2516 = vpop.permute.xlu0 %2515
    %2519 = vset.pattern.permute.xlu0 0
    %2520 = vperm.xlu0 %2519, %v1949
    %v2521 = vpop.permute.xlu0 %2520
    %2524 = vset.pattern.permute.xlu0 0
    %2525 = vperm.xlu0 %2524, %v1950
    %v2526 = vpop.permute.xlu0 %2525
    %2529 = vset.pattern.permute.xlu0 0
    %2530 = vperm.xlu0 %2529, %v1951
    %v2531 = vpop.permute.xlu0 %2530
    %2534 = vset.pattern.permute.xlu0 0
    %2535 = vperm.xlu0 %2534, %v1952
    %v2536 = vpop.permute.xlu0 %2535
    %2539 = vset.pattern.permute.xlu0 0
    %2540 = vperm.xlu0 %2539, %v1953
    %v2541 = vpop.permute.xlu0 %2540
    %2544 = vset.pattern.permute.xlu0 0
    %2545 = vperm.xlu0 %2544, %v1954
    %v2546 = vpop.permute.xlu0 %2545
    %2549 = vset.pattern.permute.xlu0 0
    %2550 = vperm.xlu0 %2549, %v1955
    %v2551 = vpop.permute.xlu0 %2550
    %2554 = vset.pattern.permute.xlu0 0
    %2555 = vperm.xlu0 %2554, %v1956
    %v2556 = vpop.permute.xlu0 %2555
    %v2558 = vlaneseq
    %v2559 = vshrl.u32 %v2558, 7
    %v2560 = vsub.s32 0, %v2559
    %v2561 = vrot.slane %v1957, %v2560
    %v2562 = vmul.f32 %v1961, %v2561
    %v2563 = vmul.f32 %v1966, %v2561
    %v2564 = vmul.f32 %v1971, %v2561
    %v2565 = vmul.f32 %v1976, %v2561
    %v2566 = vmul.f32 %v1981, %v2561
    %v2567 = vmul.f32 %v1986, %v2561
    %v2568 = vmul.f32 %v1991, %v2561
    %v2569 = vmul.f32 %v1996, %v2561
    %v2570 = vmul.f32 %v2001, %v2561
    %v2571 = vmul.f32 %v2006, %v2561
    %v2572 = vmul.f32 %v2011, %v2561
    %v2573 = vmul.f32 %v2016, %v2561
    %v2574 = vmul.f32 %v2021, %v2561
    %v2575 = vmul.f32 %v2026, %v2561
    %v2576 = vmul.f32 %v2031, %v2561
    %v2577 = vmul.f32 %v2036, %v2561
    %v2578 = vmul.f32 %v2041, %v2561
    %v2579 = vmul.f32 %v2046, %v2561
    %v2580 = vmul.f32 %v2051, %v2561
    %v2581 = vmul.f32 %v2056, %v2561
    %v2582 = vmul.f32 %v2061, %v2561
    %v2583 = vmul.f32 %v2066, %v2561
    %v2584 = vmul.f32 %v2071, %v2561
    %v2585 = vmul.f32 %v2076, %v2561
    %v2586 = vmul.f32 %v2081, %v2561
    %v2587 = vmul.f32 %v2086, %v2561
    %v2588 = vmul.f32 %v2091, %v2561
    %v2589 = vmul.f32 %v2096, %v2561
    %v2590 = vmul.f32 %v2101, %v2561
    %v2591 = vmul.f32 %v2106, %v2561
    %v2592 = vmul.f32 %v2111, %v2561
    %v2593 = vmul.f32 %v2116, %v2561
    %v2594 = vmul.f32 %v2121, %v2561
    %v2595 = vmul.f32 %v2126, %v2561
    %v2596 = vmul.f32 %v2131, %v2561
    %v2597 = vmul.f32 %v2136, %v2561
    %v2598 = vmul.f32 %v2141, %v2561
    %v2599 = vmul.f32 %v2146, %v2561
    %v2600 = vmul.f32 %v2151, %v2561
    %v2601 = vmul.f32 %v2156, %v2561
    %v2602 = vmul.f32 %v2161, %v2561
    %v2603 = vmul.f32 %v2166, %v2561
    %v2604 = vmul.f32 %v2171, %v2561
    %v2605 = vmul.f32 %v2176, %v2561
    %v2606 = vmul.f32 %v2181, %v2561
    %v2607 = vmul.f32 %v2186, %v2561
    %v2608 = vmul.f32 %v2191, %v2561
    %v2609 = vmul.f32 %v2196, %v2561
    %v2610 = vmul.f32 %v2201, %v2561
    %v2611 = vmul.f32 %v2206, %v2561
    %v2612 = vmul.f32 %v2211, %v2561
    %v2613 = vmul.f32 %v2216, %v2561
    %v2614 = vmul.f32 %v2221, %v2561
    %v2615 = vmul.f32 %v2226, %v2561
    %v2616 = vmul.f32 %v2231, %v2561
    %v2617 = vmul.f32 %v2236, %v2561
    %v2618 = vmul.f32 %v2241, %v2561
    %v2619 = vmul.f32 %v2246, %v2561
    %v2620 = vmul.f32 %v2251, %v2561
    %v2621 = vmul.f32 %v2256, %v2561
    %v2622 = vmul.f32 %v2261, %v2561
    %v2623 = vmul.f32 %v2266, %v2561
    %v2624 = vmul.f32 %v2271, %v2561
    %v2625 = vmul.f32 %v2276, %v2561
    %v2626 = vmul.f32 %v2281, %v2561
    %v2627 = vmul.f32 %v2286, %v2561
    %v2628 = vmul.f32 %v2291, %v2561
    %v2629 = vmul.f32 %v2296, %v2561
    %v2630 = vmul.f32 %v2301, %v2561
    %v2631 = vmul.f32 %v2306, %v2561
    %v2632 = vmul.f32 %v2311, %v2561
    %v2633 = vmul.f32 %v2316, %v2561
    %v2634 = vmul.f32 %v2321, %v2561
    %v2635 = vmul.f32 %v2326, %v2561
    %v2636 = vmul.f32 %v2331, %v2561
    %v2637 = vmul.f32 %v2336, %v2561
    %v2638 = vmul.f32 %v2341, %v2561
    %v2639 = vmul.f32 %v2346, %v2561
    %v2640 = vmul.f32 %v2351, %v2561
    %v2641 = vmul.f32 %v2356, %v2561
    %v2642 = vmul.f32 %v2361, %v2561
    %v2643 = vmul.f32 %v2366, %v2561
    %v2644 = vmul.f32 %v2371, %v2561
    %v2645 = vmul.f32 %v2376, %v2561
    %v2646 = vmul.f32 %v2381, %v2561
    %v2647 = vmul.f32 %v2386, %v2561
    %v2648 = vmul.f32 %v2391, %v2561
    %v2649 = vmul.f32 %v2396, %v2561
    %v2650 = vmul.f32 %v2401, %v2561
    %v2651 = vmul.f32 %v2406, %v2561
    %v2652 = vmul.f32 %v2411, %v2561
    %v2653 = vmul.f32 %v2416, %v2561
    %v2654 = vmul.f32 %v2421, %v2561
    %v2655 = vmul.f32 %v2426, %v2561
    %v2656 = vmul.f32 %v2431, %v2561
    %v2657 = vmul.f32 %v2436, %v2561
    %v2658 = vmul.f32 %v2441, %v2561
    %v2659 = vmul.f32 %v2446, %v2561
    %v2660 = vmul.f32 %v2451, %v2561
    %v2661 = vmul.f32 %v2456, %v2561
    %v2662 = vmul.f32 %v2461, %v2561
    %v2663 = vmul.f32 %v2466, %v2561
    %v2664 = vmul.f32 %v2471, %v2561
    %v2665 = vmul.f32 %v2476, %v2561
    %v2666 = vmul.f32 %v2481, %v2561
    %v2667 = vmul.f32 %v2486, %v2561
    %v2668 = vmul.f32 %v2491, %v2561
    %v2669 = vmul.f32 %v2496, %v2561
    %v2670 = vmul.f32 %v2501, %v2561
    %v2671 = vmul.f32 %v2506, %v2561
    %v2672 = vmul.f32 %v2511, %v2561
    %v2673 = vmul.f32 %v2516, %v2561
    %v2674 = vmul.f32 %v2521, %v2561
    %v2675 = vmul.f32 %v2526, %v2561
    %v2676 = vmul.f32 %v2531, %v2561
    %v2677 = vmul.f32 %v2536, %v2561
    %v2678 = vmul.f32 %v2541, %v2561
    %v2679 = vmul.f32 %v2546, %v2561
    %v2680 = vmul.f32 %v2551, %v2561
    %v2681 = vmul.f32 %v2556, %v2561
    %v2682 = vadd.f32 %v1717, %v2562
    %v2683 = vadd.f32 %v1718, %v2563
    %v2684 = vadd.f32 %v1719, %v2564
    %v2685 = vadd.f32 %v1720, %v2565
    %v2686 = vadd.f32 %v1721, %v2566
    %v2687 = vadd.f32 %v1722, %v2567
    %v2688 = vadd.f32 %v1723, %v2568
    %v2689 = vadd.f32 %v1724, %v2569
    %v2690 = vadd.f32 %v1725, %v2570
    %v2691 = vadd.f32 %v1726, %v2571
    %v2692 = vadd.f32 %v1727, %v2572
    %v2693 = vadd.f32 %v1728, %v2573
    %v2694 = vadd.f32 %v1729, %v2574
    %v2695 = vadd.f32 %v1730, %v2575
    %v2696 = vadd.f32 %v1731, %v2576
    %v2697 = vadd.f32 %v1732, %v2577
    %v2698 = vadd.f32 %v1733, %v2578
    %v2699 = vadd.f32 %v1734, %v2579
    %v2700 = vadd.f32 %v1735, %v2580
    %v2701 = vadd.f32 %v1736, %v2581
    %v2702 = vadd.f32 %v1737, %v2582
    %v2703 = vadd.f32 %v1738, %v2583
    %v2704 = vadd.f32 %v1739, %v2584
    %v2705 = vadd.f32 %v1740, %v2585
    %v2706 = vadd.f32 %v1741, %v2586
    %v2707 = vadd.f32 %v1742, %v2587
    %v2708 = vadd.f32 %v1743, %v2588
    %v2709 = vadd.f32 %v1744, %v2589
    %v2710 = vadd.f32 %v1745, %v2590
    %v2711 = vadd.f32 %v1746, %v2591
    %v2712 = vadd.f32 %v1747, %v2592
    %v2713 = vadd.f32 %v1748, %v2593
    %v2714 = vadd.f32 %v1749, %v2594
    %v2715 = vadd.f32 %v1750, %v2595
    %v2716 = vadd.f32 %v1751, %v2596
    %v2717 = vadd.f32 %v1752, %v2597
    %v2718 = vadd.f32 %v1753, %v2598
    %v2719 = vadd.f32 %v1754, %v2599
    %v2720 = vadd.f32 %v1755, %v2600
    %v2721 = vadd.f32 %v1756, %v2601
    %v2722 = vadd.f32 %v1757, %v2602
    %v2723 = vadd.f32 %v1758, %v2603
    %v2724 = vadd.f32 %v1759, %v2604
    %v2725 = vadd.f32 %v1760, %v2605
    %v2726 = vadd.f32 %v1761, %v2606
    %v2727 = vadd.f32 %v1762, %v2607
    %v2728 = vadd.f32 %v1763, %v2608
    %v2729 = vadd.f32 %v1764, %v2609
    %v2730 = vadd.f32 %v1765, %v2610
    %v2731 = vadd.f32 %v1766, %v2611
    %v2732 = vadd.f32 %v1767, %v2612
    %v2733 = vadd.f32 %v1768, %v2613
    %v2734 = vadd.f32 %v1769, %v2614
    %v2735 = vadd.f32 %v1770, %v2615
    %v2736 = vadd.f32 %v1771, %v2616
    %v2737 = vadd.f32 %v1772, %v2617
    %v2738 = vadd.f32 %v1773, %v2618
    %v2739 = vadd.f32 %v1774, %v2619
    %v2740 = vadd.f32 %v1775, %v2620
    %v2741 = vadd.f32 %v1776, %v2621
    %v2742 = vadd.f32 %v1777, %v2622
    %v2743 = vadd.f32 %v1778, %v2623
    %v2744 = vadd.f32 %v1779, %v2624
    %v2745 = vadd.f32 %v1780, %v2625
    %v2746 = vadd.f32 %v1781, %v2626
    %v2747 = vadd.f32 %v1782, %v2627
    %v2748 = vadd.f32 %v1783, %v2628
    %v2749 = vadd.f32 %v1784, %v2629
    %v2750 = vadd.f32 %v1785, %v2630
    %v2751 = vadd.f32 %v1786, %v2631
    %v2752 = vadd.f32 %v1787, %v2632
    %v2753 = vadd.f32 %v1788, %v2633
    %v2754 = vadd.f32 %v1789, %v2634
    %v2755 = vadd.f32 %v1790, %v2635
    %v2756 = vadd.f32 %v1791, %v2636
    %v2757 = vadd.f32 %v1792, %v2637
    %v2758 = vadd.f32 %v1793, %v2638
    %v2759 = vadd.f32 %v1794, %v2639
    %v2760 = vadd.f32 %v1795, %v2640
    %v2761 = vadd.f32 %v1796, %v2641
    %v2762 = vadd.f32 %v1797, %v2642
    %v2763 = vadd.f32 %v1798, %v2643
    %v2764 = vadd.f32 %v1799, %v2644
    %v2765 = vadd.f32 %v1800, %v2645
    %v2766 = vadd.f32 %v1801, %v2646
    %v2767 = vadd.f32 %v1802, %v2647
    %v2768 = vadd.f32 %v1803, %v2648
    %v2769 = vadd.f32 %v1804, %v2649
    %v2770 = vadd.f32 %v1805, %v2650
    %v2771 = vadd.f32 %v1806, %v2651
    %v2772 = vadd.f32 %v1807, %v2652
    %v2773 = vadd.f32 %v1808, %v2653
    %v2774 = vadd.f32 %v1809, %v2654
    %v2775 = vadd.f32 %v1810, %v2655
    %v2776 = vadd.f32 %v1811, %v2656
    %v2777 = vadd.f32 %v1812, %v2657
    %v2778 = vadd.f32 %v1813, %v2658
    %v2779 = vadd.f32 %v1814, %v2659
    %v2780 = vadd.f32 %v1815, %v2660
    %v2781 = vadd.f32 %v1816, %v2661
    %v2782 = vadd.f32 %v1817, %v2662
    %v2783 = vadd.f32 %v1818, %v2663
    %v2784 = vadd.f32 %v1819, %v2664
    %v2785 = vadd.f32 %v1820, %v2665
    %v2786 = vadd.f32 %v1821, %v2666
    %v2787 = vadd.f32 %v1822, %v2667
    %v2788 = vadd.f32 %v1823, %v2668
    %v2789 = vadd.f32 %v1824, %v2669
    %v2790 = vadd.f32 %v1825, %v2670
    %v2791 = vadd.f32 %v1826, %v2671
    %v2792 = vadd.f32 %v1827, %v2672
    %v2793 = vadd.f32 %v1828, %v2673
    %v2794 = vadd.f32 %v1829, %v2674
    %v2795 = vadd.f32 %v1830, %v2675
    %v2796 = vadd.f32 %v1831, %v2676
    %v2797 = vadd.f32 %v1832, %v2677
    %v2798 = vadd.f32 %v1833, %v2678
    %v2799 = vadd.f32 %v1834, %v2679
    %v2800 = vadd.f32 %v1835, %v2680
    %v2801 = vadd.f32 %v1836, %v2681
    %v2802 = vld [vmem:[%s0 + $0x3] sm:$0xff]
    %v2803 = vld [vmem:[%s0 + $0xb] sm:$0xff]
    %v2804 = vld [vmem:[%s0 + $0x13] sm:$0xff]
    %v2805 = vld [vmem:[%s0 + $0x1b] sm:$0xff]
    %v2806 = vld [vmem:[%s0 + $0x23] sm:$0xff]
    %v2807 = vld [vmem:[%s0 + $0x2b] sm:$0xff]
    %v2808 = vld [vmem:[%s0 + $0x33] sm:$0xff]
    %v2809 = vld [vmem:[%s0 + $0x3b] sm:$0xff]
    %v2810 = vld [vmem:[%s0 + $0x43] sm:$0xff]
    %v2811 = vld [vmem:[%s0 + $0x4b] sm:$0xff]
    %v2812 = vld [vmem:[%s0 + $0x53] sm:$0xff]
    %v2813 = vld [vmem:[%s0 + $0x5b] sm:$0xff]
    %v2814 = vld [vmem:[%s0 + $0x63] sm:$0xff]
    %v2815 = vld [vmem:[%s0 + $0x6b] sm:$0xff]
    %v2816 = vld [vmem:[%s0 + $0x73] sm:$0xff]
    %v2817 = vld [vmem:[%s0 + $0x83] sm:$0xff]
    %v2818 = vld [vmem:[%s0 + $0x8b] sm:$0xff]
    %v2819 = vld [vmem:[%s0 + $0x93] sm:$0xff]
    %v2820 = vld [vmem:[%s0 + $0x9b] sm:$0xff]
    %v2821 = vld [vmem:[%s0 + $0xa3] sm:$0xff]
    %v2822 = vld [vmem:[%s0 + $0xab] sm:$0xff]
    %v2823 = vld [vmem:[%s0 + $0xb3] sm:$0xff]
    %v2824 = vld [vmem:[%s0 + $0xbb] sm:$0xff]
    %v2825 = vld [vmem:[%s0 + $0xc3] sm:$0xff]
    %v2826 = vld [vmem:[%s0 + $0xcb] sm:$0xff]
    %v2827 = vld [vmem:[%s0 + $0xd3] sm:$0xff]
    %v2828 = vld [vmem:[%s0 + $0xdb] sm:$0xff]
    %v2829 = vld [vmem:[%s0 + $0xe3] sm:$0xff]
    %v2830 = vld [vmem:[%s0 + $0xeb] sm:$0xff]
    %v2831 = vld [vmem:[%s0 + $0xf3] sm:$0xff]
    %v2832 = vld [vmem:[%s0 + $0x103] sm:$0xff]
    %v2833 = vld [vmem:[%s0 + $0x10b] sm:$0xff]
    %v2834 = vld [vmem:[%s0 + $0x113] sm:$0xff]
    %v2835 = vld [vmem:[%s0 + $0x11b] sm:$0xff]
    %v2836 = vld [vmem:[%s0 + $0x123] sm:$0xff]
    %v2837 = vld [vmem:[%s0 + $0x12b] sm:$0xff]
    %v2838 = vld [vmem:[%s0 + $0x133] sm:$0xff]
    %v2839 = vld [vmem:[%s0 + $0x13b] sm:$0xff]
    %v2840 = vld [vmem:[%s0 + $0x143] sm:$0xff]
    %v2841 = vld [vmem:[%s0 + $0x14b] sm:$0xff]
    %v2842 = vld [vmem:[%s0 + $0x153] sm:$0xff]
    %v2843 = vld [vmem:[%s0 + $0x15b] sm:$0xff]
    %v2844 = vld [vmem:[%s0 + $0x163] sm:$0xff]
    %v2845 = vld [vmem:[%s0 + $0x16b] sm:$0xff]
    %v2846 = vld [vmem:[%s0 + $0x173] sm:$0xff]
    %v2847 = vld [vmem:[%s0 + $0x183] sm:$0xff]
    %v2848 = vld [vmem:[%s0 + $0x18b] sm:$0xff]
    %v2849 = vld [vmem:[%s0 + $0x193] sm:$0xff]
    %v2850 = vld [vmem:[%s0 + $0x19b] sm:$0xff]
    %v2851 = vld [vmem:[%s0 + $0x1a3] sm:$0xff]
    %v2852 = vld [vmem:[%s0 + $0x1ab] sm:$0xff]
    %v2853 = vld [vmem:[%s0 + $0x1b3] sm:$0xff]
    %v2854 = vld [vmem:[%s0 + $0x1bb] sm:$0xff]
    %v2855 = vld [vmem:[%s0 + $0x1c3] sm:$0xff]
    %v2856 = vld [vmem:[%s0 + $0x1cb] sm:$0xff]
    %v2857 = vld [vmem:[%s0 + $0x1d3] sm:$0xff]
    %v2858 = vld [vmem:[%s0 + $0x1db] sm:$0xff]
    %v2859 = vld [vmem:[%s0 + $0x1e3] sm:$0xff]
    %v2860 = vld [vmem:[%s0 + $0x1eb] sm:$0xff]
    %v2861 = vld [vmem:[%s0 + $0x1f3] sm:$0xff]
    %v2862 = vld [vmem:[%s0 + $0x203] sm:$0xff]
    %v2863 = vld [vmem:[%s0 + $0x20b] sm:$0xff]
    %v2864 = vld [vmem:[%s0 + $0x213] sm:$0xff]
    %v2865 = vld [vmem:[%s0 + $0x21b] sm:$0xff]
    %v2866 = vld [vmem:[%s0 + $0x223] sm:$0xff]
    %v2867 = vld [vmem:[%s0 + $0x22b] sm:$0xff]
    %v2868 = vld [vmem:[%s0 + $0x233] sm:$0xff]
    %v2869 = vld [vmem:[%s0 + $0x23b] sm:$0xff]
    %v2870 = vld [vmem:[%s0 + $0x243] sm:$0xff]
    %v2871 = vld [vmem:[%s0 + $0x24b] sm:$0xff]
    %v2872 = vld [vmem:[%s0 + $0x253] sm:$0xff]
    %v2873 = vld [vmem:[%s0 + $0x25b] sm:$0xff]
    %v2874 = vld [vmem:[%s0 + $0x263] sm:$0xff]
    %v2875 = vld [vmem:[%s0 + $0x26b] sm:$0xff]
    %v2876 = vld [vmem:[%s0 + $0x273] sm:$0xff]
    %v2877 = vld [vmem:[%s0 + $0x283] sm:$0xff]
    %v2878 = vld [vmem:[%s0 + $0x28b] sm:$0xff]
    %v2879 = vld [vmem:[%s0 + $0x293] sm:$0xff]
    %v2880 = vld [vmem:[%s0 + $0x29b] sm:$0xff]
    %v2881 = vld [vmem:[%s0 + $0x2a3] sm:$0xff]
    %v2882 = vld [vmem:[%s0 + $0x2ab] sm:$0xff]
    %v2883 = vld [vmem:[%s0 + $0x2b3] sm:$0xff]
    %v2884 = vld [vmem:[%s0 + $0x2bb] sm:$0xff]
    %v2885 = vld [vmem:[%s0 + $0x2c3] sm:$0xff]
    %v2886 = vld [vmem:[%s0 + $0x2cb] sm:$0xff]
    %v2887 = vld [vmem:[%s0 + $0x2d3] sm:$0xff]
    %v2888 = vld [vmem:[%s0 + $0x2db] sm:$0xff]
    %v2889 = vld [vmem:[%s0 + $0x2e3] sm:$0xff]
    %v2890 = vld [vmem:[%s0 + $0x2eb] sm:$0xff]
    %v2891 = vld [vmem:[%s0 + $0x2f3] sm:$0xff]
    %v2892 = vld [vmem:[%s0 + $0x303] sm:$0xff]
    %v2893 = vld [vmem:[%s0 + $0x30b] sm:$0xff]
    %v2894 = vld [vmem:[%s0 + $0x313] sm:$0xff]
    %v2895 = vld [vmem:[%s0 + $0x31b] sm:$0xff]
    %v2896 = vld [vmem:[%s0 + $0x323] sm:$0xff]
    %v2897 = vld [vmem:[%s0 + $0x32b] sm:$0xff]
    %v2898 = vld [vmem:[%s0 + $0x333] sm:$0xff]
    %v2899 = vld [vmem:[%s0 + $0x33b] sm:$0xff]
    %v2900 = vld [vmem:[%s0 + $0x343] sm:$0xff]
    %v2901 = vld [vmem:[%s0 + $0x34b] sm:$0xff]
    %v2902 = vld [vmem:[%s0 + $0x353] sm:$0xff]
    %v2903 = vld [vmem:[%s0 + $0x35b] sm:$0xff]
    %v2904 = vld [vmem:[%s0 + $0x363] sm:$0xff]
    %v2905 = vld [vmem:[%s0 + $0x36b] sm:$0xff]
    %v2906 = vld [vmem:[%s0 + $0x373] sm:$0xff]
    %v2907 = vld [vmem:[%s0 + $0x383] sm:$0xff]
    %v2908 = vld [vmem:[%s0 + $0x38b] sm:$0xff]
    %v2909 = vld [vmem:[%s0 + $0x393] sm:$0xff]
    %v2910 = vld [vmem:[%s0 + $0x39b] sm:$0xff]
    %v2911 = vld [vmem:[%s0 + $0x3a3] sm:$0xff]
    %v2912 = vld [vmem:[%s0 + $0x3ab] sm:$0xff]
    %v2913 = vld [vmem:[%s0 + $0x3b3] sm:$0xff]
    %v2914 = vld [vmem:[%s0 + $0x3bb] sm:$0xff]
    %v2915 = vld [vmem:[%s0 + $0x3c3] sm:$0xff]
    %v2916 = vld [vmem:[%s0 + $0x3cb] sm:$0xff]
    %v2917 = vld [vmem:[%s0 + $0x3d3] sm:$0xff]
    %v2918 = vld [vmem:[%s0 + $0x3db] sm:$0xff]
    %v2919 = vld [vmem:[%s0 + $0x3e3] sm:$0xff]
    %v2920 = vld [vmem:[%s0 + $0x3eb] sm:$0xff]
    %v2921 = vld [vmem:[%s0 + $0x3f3] sm:$0xff]
    %v2922 = vld [vmem:[%s1 + $0x3] sm:$0x1]
    %2924 = vset.pattern.permute.xlu0 0
    %2925 = vperm.xlu0 %2924, %v2802
    %v2926 = vpop.permute.xlu0 %2925
    %2929 = vset.pattern.permute.xlu0 0
    %2930 = vperm.xlu0 %2929, %v2803
    %v2931 = vpop.permute.xlu0 %2930
    %2934 = vset.pattern.permute.xlu0 0
    %2935 = vperm.xlu0 %2934, %v2804
    %v2936 = vpop.permute.xlu0 %2935
    %2939 = vset.pattern.permute.xlu0 0
    %2940 = vperm.xlu0 %2939, %v2805
    %v2941 = vpop.permute.xlu0 %2940
    %2944 = vset.pattern.permute.xlu0 0
    %2945 = vperm.xlu0 %2944, %v2806
    %v2946 = vpop.permute.xlu0 %2945
    %2949 = vset.pattern.permute.xlu0 0
    %2950 = vperm.xlu0 %2949, %v2807
    %v2951 = vpop.permute.xlu0 %2950
    %2954 = vset.pattern.permute.xlu0 0
    %2955 = vperm.xlu0 %2954, %v2808
    %v2956 = vpop.permute.xlu0 %2955
    %2959 = vset.pattern.permute.xlu0 0
    %2960 = vperm.xlu0 %2959, %v2809
    %v2961 = vpop.permute.xlu0 %2960
    %2964 = vset.pattern.permute.xlu0 0
    %2965 = vperm.xlu0 %2964, %v2810
    %v2966 = vpop.permute.xlu0 %2965
    %2969 = vset.pattern.permute.xlu0 0
    %2970 = vperm.xlu0 %2969, %v2811
    %v2971 = vpop.permute.xlu0 %2970
    %2974 = vset.pattern.permute.xlu0 0
    %2975 = vperm.xlu0 %2974, %v2812
    %v2976 = vpop.permute.xlu0 %2975
    %2979 = vset.pattern.permute.xlu0 0
    %2980 = vperm.xlu0 %2979, %v2813
    %v2981 = vpop.permute.xlu0 %2980
    %2984 = vset.pattern.permute.xlu0 0
    %2985 = vperm.xlu0 %2984, %v2814
    %v2986 = vpop.permute.xlu0 %2985
    %2989 = vset.pattern.permute.xlu0 0
    %2990 = vperm.xlu0 %2989, %v2815
    %v2991 = vpop.permute.xlu0 %2990
    %2994 = vset.pattern.permute.xlu0 0
    %2995 = vperm.xlu0 %2994, %v2816
    %v2996 = vpop.permute.xlu0 %2995
    %2999 = vset.pattern.permute.xlu0 0
    %3000 = vperm.xlu0 %2999, %v2817
    %v3001 = vpop.permute.xlu0 %3000
    %3004 = vset.pattern.permute.xlu0 0
    %3005 = vperm.xlu0 %3004, %v2818
    %v3006 = vpop.permute.xlu0 %3005
    %3009 = vset.pattern.permute.xlu0 0
    %3010 = vperm.xlu0 %3009, %v2819
    %v3011 = vpop.permute.xlu0 %3010
    %3014 = vset.pattern.permute.xlu0 0
    %3015 = vperm.xlu0 %3014, %v2820
    %v3016 = vpop.permute.xlu0 %3015
    %3019 = vset.pattern.permute.xlu0 0
    %3020 = vperm.xlu0 %3019, %v2821
    %v3021 = vpop.permute.xlu0 %3020
    %3024 = vset.pattern.permute.xlu0 0
    %3025 = vperm.xlu0 %3024, %v2822
    %v3026 = vpop.permute.xlu0 %3025
    %3029 = vset.pattern.permute.xlu0 0
    %3030 = vperm.xlu0 %3029, %v2823
    %v3031 = vpop.permute.xlu0 %3030
    %3034 = vset.pattern.permute.xlu0 0
    %3035 = vperm.xlu0 %3034, %v2824
    %v3036 = vpop.permute.xlu0 %3035
    %3039 = vset.pattern.permute.xlu0 0
    %3040 = vperm.xlu0 %3039, %v2825
    %v3041 = vpop.permute.xlu0 %3040
    %3044 = vset.pattern.permute.xlu0 0
    %3045 = vperm.xlu0 %3044, %v2826
    %v3046 = vpop.permute.xlu0 %3045
    %3049 = vset.pattern.permute.xlu0 0
    %3050 = vperm.xlu0 %3049, %v2827
    %v3051 = vpop.permute.xlu0 %3050
    %3054 = vset.pattern.permute.xlu0 0
    %3055 = vperm.xlu0 %3054, %v2828
    %v3056 = vpop.permute.xlu0 %3055
    %3059 = vset.pattern.permute.xlu0 0
    %3060 = vperm.xlu0 %3059, %v2829
    %v3061 = vpop.permute.xlu0 %3060
    %3064 = vset.pattern.permute.xlu0 0
    %3065 = vperm.xlu0 %3064, %v2830
    %v3066 = vpop.permute.xlu0 %3065
    %3069 = vset.pattern.permute.xlu0 0
    %3070 = vperm.xlu0 %3069, %v2831
    %v3071 = vpop.permute.xlu0 %3070
    %3074 = vset.pattern.permute.xlu0 0
    %3075 = vperm.xlu0 %3074, %v2832
    %v3076 = vpop.permute.xlu0 %3075
    %3079 = vset.pattern.permute.xlu0 0
    %3080 = vperm.xlu0 %3079, %v2833
    %v3081 = vpop.permute.xlu0 %3080
    %3084 = vset.pattern.permute.xlu0 0
    %3085 = vperm.xlu0 %3084, %v2834
    %v3086 = vpop.permute.xlu0 %3085
    %3089 = vset.pattern.permute.xlu0 0
    %3090 = vperm.xlu0 %3089, %v2835
    %v3091 = vpop.permute.xlu0 %3090
    %3094 = vset.pattern.permute.xlu0 0
    %3095 = vperm.xlu0 %3094, %v2836
    %v3096 = vpop.permute.xlu0 %3095
    %3099 = vset.pattern.permute.xlu0 0
    %3100 = vperm.xlu0 %3099, %v2837
    %v3101 = vpop.permute.xlu0 %3100
    %3104 = vset.pattern.permute.xlu0 0
    %3105 = vperm.xlu0 %3104, %v2838
    %v3106 = vpop.permute.xlu0 %3105
    %3109 = vset.pattern.permute.xlu0 0
    %3110 = vperm.xlu0 %3109, %v2839
    %v3111 = vpop.permute.xlu0 %3110
    %3114 = vset.pattern.permute.xlu0 0
    %3115 = vperm.xlu0 %3114, %v2840
    %v3116 = vpop.permute.xlu0 %3115
    %3119 = vset.pattern.permute.xlu0 0
    %3120 = vperm.xlu0 %3119, %v2841
    %v3121 = vpop.permute.xlu0 %3120
    %3124 = vset.pattern.permute.xlu0 0
    %3125 = vperm.xlu0 %3124, %v2842
    %v3126 = vpop.permute.xlu0 %3125
    %3129 = vset.pattern.permute.xlu0 0
    %3130 = vperm.xlu0 %3129, %v2843
    %v3131 = vpop.permute.xlu0 %3130
    %3134 = vset.pattern.permute.xlu0 0
    %3135 = vperm.xlu0 %3134, %v2844
    %v3136 = vpop.permute.xlu0 %3135
    %3139 = vset.pattern.permute.xlu0 0
    %3140 = vperm.xlu0 %3139, %v2845
    %v3141 = vpop.permute.xlu0 %3140
    %3144 = vset.pattern.permute.xlu0 0
    %3145 = vperm.xlu0 %3144, %v2846
    %v3146 = vpop.permute.xlu0 %3145
    %3149 = vset.pattern.permute.xlu0 0
    %3150 = vperm.xlu0 %3149, %v2847
    %v3151 = vpop.permute.xlu0 %3150
    %3154 = vset.pattern.permute.xlu0 0
    %3155 = vperm.xlu0 %3154, %v2848
    %v3156 = vpop.permute.xlu0 %3155
    %3159 = vset.pattern.permute.xlu0 0
    %3160 = vperm.xlu0 %3159, %v2849
    %v3161 = vpop.permute.xlu0 %3160
    %3164 = vset.pattern.permute.xlu0 0
    %3165 = vperm.xlu0 %3164, %v2850
    %v3166 = vpop.permute.xlu0 %3165
    %3169 = vset.pattern.permute.xlu0 0
    %3170 = vperm.xlu0 %3169, %v2851
    %v3171 = vpop.permute.xlu0 %3170
    %3174 = vset.pattern.permute.xlu0 0
    %3175 = vperm.xlu0 %3174, %v2852
    %v3176 = vpop.permute.xlu0 %3175
    %3179 = vset.pattern.permute.xlu0 0
    %3180 = vperm.xlu0 %3179, %v2853
    %v3181 = vpop.permute.xlu0 %3180
    %3184 = vset.pattern.permute.xlu0 0
    %3185 = vperm.xlu0 %3184, %v2854
    %v3186 = vpop.permute.xlu0 %3185
    %3189 = vset.pattern.permute.xlu0 0
    %3190 = vperm.xlu0 %3189, %v2855
    %v3191 = vpop.permute.xlu0 %3190
    %3194 = vset.pattern.permute.xlu0 0
    %3195 = vperm.xlu0 %3194, %v2856
    %v3196 = vpop.permute.xlu0 %3195
    %3199 = vset.pattern.permute.xlu0 0
    %3200 = vperm.xlu0 %3199, %v2857
    %v3201 = vpop.permute.xlu0 %3200
    %3204 = vset.pattern.permute.xlu0 0
    %3205 = vperm.xlu0 %3204, %v2858
    %v3206 = vpop.permute.xlu0 %3205
    %3209 = vset.pattern.permute.xlu0 0
    %3210 = vperm.xlu0 %3209, %v2859
    %v3211 = vpop.permute.xlu0 %3210
    %3214 = vset.pattern.permute.xlu0 0
    %3215 = vperm.xlu0 %3214, %v2860
    %v3216 = vpop.permute.xlu0 %3215
    %3219 = vset.pattern.permute.xlu0 0
    %3220 = vperm.xlu0 %3219, %v2861
    %v3221 = vpop.permute.xlu0 %3220
    %3224 = vset.pattern.permute.xlu0 0
    %3225 = vperm.xlu0 %3224, %v2862
    %v3226 = vpop.permute.xlu0 %3225
    %3229 = vset.pattern.permute.xlu0 0
    %3230 = vperm.xlu0 %3229, %v2863
    %v3231 = vpop.permute.xlu0 %3230
    %3234 = vset.pattern.permute.xlu0 0
    %3235 = vperm.xlu0 %3234, %v2864
    %v3236 = vpop.permute.xlu0 %3235
    %3239 = vset.pattern.permute.xlu0 0
    %3240 = vperm.xlu0 %3239, %v2865
    %v3241 = vpop.permute.xlu0 %3240
    %3244 = vset.pattern.permute.xlu0 0
    %3245 = vperm.xlu0 %3244, %v2866
    %v3246 = vpop.permute.xlu0 %3245
    %3249 = vset.pattern.permute.xlu0 0
    %3250 = vperm.xlu0 %3249, %v2867
    %v3251 = vpop.permute.xlu0 %3250
    %3254 = vset.pattern.permute.xlu0 0
    %3255 = vperm.xlu0 %3254, %v2868
    %v3256 = vpop.permute.xlu0 %3255
    %3259 = vset.pattern.permute.xlu0 0
    %3260 = vperm.xlu0 %3259, %v2869
    %v3261 = vpop.permute.xlu0 %3260
    %3264 = vset.pattern.permute.xlu0 0
    %3265 = vperm.xlu0 %3264, %v2870
    %v3266 = vpop.permute.xlu0 %3265
    %3269 = vset.pattern.permute.xlu0 0
    %3270 = vperm.xlu0 %3269, %v2871
    %v3271 = vpop.permute.xlu0 %3270
    %3274 = vset.pattern.permute.xlu0 0
    %3275 = vperm.xlu0 %3274, %v2872
    %v3276 = vpop.permute.xlu0 %3275
    %3279 = vset.pattern.permute.xlu0 0
    %3280 = vperm.xlu0 %3279, %v2873
    %v3281 = vpop.permute.xlu0 %3280
    %3284 = vset.pattern.permute.xlu0 0
    %3285 = vperm.xlu0 %3284, %v2874
    %v3286 = vpop.permute.xlu0 %3285
    %3289 = vset.pattern.permute.xlu0 0
    %3290 = vperm.xlu0 %3289, %v2875
    %v3291 = vpop.permute.xlu0 %3290
    %3294 = vset.pattern.permute.xlu0 0
    %3295 = vperm.xlu0 %3294, %v2876
    %v3296 = vpop.permute.xlu0 %3295
    %3299 = vset.pattern.permute.xlu0 0
    %3300 = vperm.xlu0 %3299, %v2877
    %v3301 = vpop.permute.xlu0 %3300
    %3304 = vset.pattern.permute.xlu0 0
    %3305 = vperm.xlu0 %3304, %v2878
    %v3306 = vpop.permute.xlu0 %3305
    %3309 = vset.pattern.permute.xlu0 0
    %3310 = vperm.xlu0 %3309, %v2879
    %v3311 = vpop.permute.xlu0 %3310
    %3314 = vset.pattern.permute.xlu0 0
    %3315 = vperm.xlu0 %3314, %v2880
    %v3316 = vpop.permute.xlu0 %3315
    %3319 = vset.pattern.permute.xlu0 0
    %3320 = vperm.xlu0 %3319, %v2881
    %v3321 = vpop.permute.xlu0 %3320
    %3324 = vset.pattern.permute.xlu0 0
    %3325 = vperm.xlu0 %3324, %v2882
    %v3326 = vpop.permute.xlu0 %3325
    %3329 = vset.pattern.permute.xlu0 0
    %3330 = vperm.xlu0 %3329, %v2883
    %v3331 = vpop.permute.xlu0 %3330
    %3334 = vset.pattern.permute.xlu0 0
    %3335 = vperm.xlu0 %3334, %v2884
    %v3336 = vpop.permute.xlu0 %3335
    %3339 = vset.pattern.permute.xlu0 0
    %3340 = vperm.xlu0 %3339, %v2885
    %v3341 = vpop.permute.xlu0 %3340
    %3344 = vset.pattern.permute.xlu0 0
    %3345 = vperm.xlu0 %3344, %v2886
    %v3346 = vpop.permute.xlu0 %3345
    %3349 = vset.pattern.permute.xlu0 0
    %3350 = vperm.xlu0 %3349, %v2887
    %v3351 = vpop.permute.xlu0 %3350
    %3354 = vset.pattern.permute.xlu0 0
    %3355 = vperm.xlu0 %3354, %v2888
    %v3356 = vpop.permute.xlu0 %3355
    %3359 = vset.pattern.permute.xlu0 0
    %3360 = vperm.xlu0 %3359, %v2889
    %v3361 = vpop.permute.xlu0 %3360
    %3364 = vset.pattern.permute.xlu0 0
    %3365 = vperm.xlu0 %3364, %v2890
    %v3366 = vpop.permute.xlu0 %3365
    %3369 = vset.pattern.permute.xlu0 0
    %3370 = vperm.xlu0 %3369, %v2891
    %v3371 = vpop.permute.xlu0 %3370
    %3374 = vset.pattern.permute.xlu0 0
    %3375 = vperm.xlu0 %3374, %v2892
    %v3376 = vpop.permute.xlu0 %3375
    %3379 = vset.pattern.permute.xlu0 0
    %3380 = vperm.xlu0 %3379, %v2893
    %v3381 = vpop.permute.xlu0 %3380
    %3384 = vset.pattern.permute.xlu0 0
    %3385 = vperm.xlu0 %3384, %v2894
    %v3386 = vpop.permute.xlu0 %3385
    %3389 = vset.pattern.permute.xlu0 0
    %3390 = vperm.xlu0 %3389, %v2895
    %v3391 = vpop.permute.xlu0 %3390
    %3394 = vset.pattern.permute.xlu0 0
    %3395 = vperm.xlu0 %3394, %v2896
    %v3396 = vpop.permute.xlu0 %3395
    %3399 = vset.pattern.permute.xlu0 0
    %3400 = vperm.xlu0 %3399, %v2897
    %v3401 = vpop.permute.xlu0 %3400
    %3404 = vset.pattern.permute.xlu0 0
    %3405 = vperm.xlu0 %3404, %v2898
    %v3406 = vpop.permute.xlu0 %3405
    %3409 = vset.pattern.permute.xlu0 0
    %3410 = vperm.xlu0 %3409, %v2899
    %v3411 = vpop.permute.xlu0 %3410
    %3414 = vset.pattern.permute.xlu0 0
    %3415 = vperm.xlu0 %3414, %v2900
    %v3416 = vpop.permute.xlu0 %3415
    %3419 = vset.pattern.permute.xlu0 0
    %3420 = vperm.xlu0 %3419, %v2901
    %v3421 = vpop.permute.xlu0 %3420
    %3424 = vset.pattern.permute.xlu0 0
    %3425 = vperm.xlu0 %3424, %v2902
    %v3426 = vpop.permute.xlu0 %3425
    %3429 = vset.pattern.permute.xlu0 0
    %3430 = vperm.xlu0 %3429, %v2903
    %v3431 = vpop.permute.xlu0 %3430
    %3434 = vset.pattern.permute.xlu0 0
    %3435 = vperm.xlu0 %3434, %v2904
    %v3436 = vpop.permute.xlu0 %3435
    %3439 = vset.pattern.permute.xlu0 0
    %3440 = vperm.xlu0 %3439, %v2905
    %v3441 = vpop.permute.xlu0 %3440
    %3444 = vset.pattern.permute.xlu0 0
    %3445 = vperm.xlu0 %3444, %v2906
    %v3446 = vpop.permute.xlu0 %3445
    %3449 = vset.pattern.permute.xlu0 0
    %3450 = vperm.xlu0 %3449, %v2907
    %v3451 = vpop.permute.xlu0 %3450
    %3454 = vset.pattern.permute.xlu0 0
    %3455 = vperm.xlu0 %3454, %v2908
    %v3456 = vpop.permute.xlu0 %3455
    %3459 = vset.pattern.permute.xlu0 0
    %3460 = vperm.xlu0 %3459, %v2909
    %v3461 = vpop.permute.xlu0 %3460
    %3464 = vset.pattern.permute.xlu0 0
    %3465 = vperm.xlu0 %3464, %v2910
    %v3466 = vpop.permute.xlu0 %3465
    %3469 = vset.pattern.permute.xlu0 0
    %3470 = vperm.xlu0 %3469, %v2911
    %v3471 = vpop.permute.xlu0 %3470
    %3474 = vset.pattern.permute.xlu0 0
    %3475 = vperm.xlu0 %3474, %v2912
    %v3476 = vpop.permute.xlu0 %3475
    %3479 = vset.pattern.permute.xlu0 0
    %3480 = vperm.xlu0 %3479, %v2913
    %v3481 = vpop.permute.xlu0 %3480
    %3484 = vset.pattern.permute.xlu0 0
    %3485 = vperm.xlu0 %3484, %v2914
    %v3486 = vpop.permute.xlu0 %3485
    %3489 = vset.pattern.permute.xlu0 0
    %3490 = vperm.xlu0 %3489, %v2915
    %v3491 = vpop.permute.xlu0 %3490
    %3494 = vset.pattern.permute.xlu0 0
    %3495 = vperm.xlu0 %3494, %v2916
    %v3496 = vpop.permute.xlu0 %3495
    %3499 = vset.pattern.permute.xlu0 0
    %3500 = vperm.xlu0 %3499, %v2917
    %v3501 = vpop.permute.xlu0 %3500
    %3504 = vset.pattern.permute.xlu0 0
    %3505 = vperm.xlu0 %3504, %v2918
    %v3506 = vpop.permute.xlu0 %3505
    %3509 = vset.pattern.permute.xlu0 0
    %3510 = vperm.xlu0 %3509, %v2919
    %v3511 = vpop.permute.xlu0 %3510
    %3514 = vset.pattern.permute.xlu0 0
    %3515 = vperm.xlu0 %3514, %v2920
    %v3516 = vpop.permute.xlu0 %3515
    %3519 = vset.pattern.permute.xlu0 0
    %3520 = vperm.xlu0 %3519, %v2921
    %v3521 = vpop.permute.xlu0 %3520
    %v3523 = vlaneseq
    %v3524 = vshrl.u32 %v3523, 7
    %v3525 = vsub.s32 0, %v3524
    %v3526 = vrot.slane %v2922, %v3525
    %v3527 = vmul.f32 %v2926, %v3526
    %v3528 = vmul.f32 %v2931, %v3526
    %v3529 = vmul.f32 %v2936, %v3526
    %v3530 = vmul.f32 %v2941, %v3526
    %v3531 = vmul.f32 %v2946, %v3526
    %v3532 = vmul.f32 %v2951, %v3526
    %v3533 = vmul.f32 %v2956, %v3526
    %v3534 = vmul.f32 %v2961, %v3526
    %v3535 = vmul.f32 %v2966, %v3526
    %v3536 = vmul.f32 %v2971, %v3526
    %v3537 = vmul.f32 %v2976, %v3526
    %v3538 = vmul.f32 %v2981, %v3526
    %v3539 = vmul.f32 %v2986, %v3526
    %v3540 = vmul.f32 %v2991, %v3526
    %v3541 = vmul.f32 %v2996, %v3526
    %v3542 = vmul.f32 %v3001, %v3526
    %v3543 = vmul.f32 %v3006, %v3526
    %v3544 = vmul.f32 %v3011, %v3526
    %v3545 = vmul.f32 %v3016, %v3526
    %v3546 = vmul.f32 %v3021, %v3526
    %v3547 = vmul.f32 %v3026, %v3526
    %v3548 = vmul.f32 %v3031, %v3526
    %v3549 = vmul.f32 %v3036, %v3526
    %v3550 = vmul.f32 %v3041, %v3526
    %v3551 = vmul.f32 %v3046, %v3526
    %v3552 = vmul.f32 %v3051, %v3526
    %v3553 = vmul.f32 %v3056, %v3526
    %v3554 = vmul.f32 %v3061, %v3526
    %v3555 = vmul.f32 %v3066, %v3526
    %v3556 = vmul.f32 %v3071, %v3526
    %v3557 = vmul.f32 %v3076, %v3526
    %v3558 = vmul.f32 %v3081, %v3526
    %v3559 = vmul.f32 %v3086, %v3526
    %v3560 = vmul.f32 %v3091, %v3526
    %v3561 = vmul.f32 %v3096, %v3526
    %v3562 = vmul.f32 %v3101, %v3526
    %v3563 = vmul.f32 %v3106, %v3526
    %v3564 = vmul.f32 %v3111, %v3526
    %v3565 = vmul.f32 %v3116, %v3526
    %v3566 = vmul.f32 %v3121, %v3526
    %v3567 = vmul.f32 %v3126, %v3526
    %v3568 = vmul.f32 %v3131, %v3526
    %v3569 = vmul.f32 %v3136, %v3526
    %v3570 = vmul.f32 %v3141, %v3526
    %v3571 = vmul.f32 %v3146, %v3526
    %v3572 = vmul.f32 %v3151, %v3526
    %v3573 = vmul.f32 %v3156, %v3526
    %v3574 = vmul.f32 %v3161, %v3526
    %v3575 = vmul.f32 %v3166, %v3526
    %v3576 = vmul.f32 %v3171, %v3526
    %v3577 = vmul.f32 %v3176, %v3526
    %v3578 = vmul.f32 %v3181, %v3526
    %v3579 = vmul.f32 %v3186, %v3526
    %v3580 = vmul.f32 %v3191, %v3526
    %v3581 = vmul.f32 %v3196, %v3526
    %v3582 = vmul.f32 %v3201, %v3526
    %v3583 = vmul.f32 %v3206, %v3526
    %v3584 = vmul.f32 %v3211, %v3526
    %v3585 = vmul.f32 %v3216, %v3526
    %v3586 = vmul.f32 %v3221, %v3526
    %v3587 = vmul.f32 %v3226, %v3526
    %v3588 = vmul.f32 %v3231, %v3526
    %v3589 = vmul.f32 %v3236, %v3526
    %v3590 = vmul.f32 %v3241, %v3526
    %v3591 = vmul.f32 %v3246, %v3526
    %v3592 = vmul.f32 %v3251, %v3526
    %v3593 = vmul.f32 %v3256, %v3526
    %v3594 = vmul.f32 %v3261, %v3526
    %v3595 = vmul.f32 %v3266, %v3526
    %v3596 = vmul.f32 %v3271, %v3526
    %v3597 = vmul.f32 %v3276, %v3526
    %v3598 = vmul.f32 %v3281, %v3526
    %v3599 = vmul.f32 %v3286, %v3526
    %v3600 = vmul.f32 %v3291, %v3526
    %v3601 = vmul.f32 %v3296, %v3526
    %v3602 = vmul.f32 %v3301, %v3526
    %v3603 = vmul.f32 %v3306, %v3526
    %v3604 = vmul.f32 %v3311, %v3526
    %v3605 = vmul.f32 %v3316, %v3526
    %v3606 = vmul.f32 %v3321, %v3526
    %v3607 = vmul.f32 %v3326, %v3526
    %v3608 = vmul.f32 %v3331, %v3526
    %v3609 = vmul.f32 %v3336, %v3526
    %v3610 = vmul.f32 %v3341, %v3526
    %v3611 = vmul.f32 %v3346, %v3526
    %v3612 = vmul.f32 %v3351, %v3526
    %v3613 = vmul.f32 %v3356, %v3526
    %v3614 = vmul.f32 %v3361, %v3526
    %v3615 = vmul.f32 %v3366, %v3526
    %v3616 = vmul.f32 %v3371, %v3526
    %v3617 = vmul.f32 %v3376, %v3526
    %v3618 = vmul.f32 %v3381, %v3526
    %v3619 = vmul.f32 %v3386, %v3526
    %v3620 = vmul.f32 %v3391, %v3526
    %v3621 = vmul.f32 %v3396, %v3526
    %v3622 = vmul.f32 %v3401, %v3526
    %v3623 = vmul.f32 %v3406, %v3526
    %v3624 = vmul.f32 %v3411, %v3526
    %v3625 = vmul.f32 %v3416, %v3526
    %v3626 = vmul.f32 %v3421, %v3526
    %v3627 = vmul.f32 %v3426, %v3526
    %v3628 = vmul.f32 %v3431, %v3526
    %v3629 = vmul.f32 %v3436, %v3526
    %v3630 = vmul.f32 %v3441, %v3526
    %v3631 = vmul.f32 %v3446, %v3526
    %v3632 = vmul.f32 %v3451, %v3526
    %v3633 = vmul.f32 %v3456, %v3526
    %v3634 = vmul.f32 %v3461, %v3526
    %v3635 = vmul.f32 %v3466, %v3526
    %v3636 = vmul.f32 %v3471, %v3526
    %v3637 = vmul.f32 %v3476, %v3526
    %v3638 = vmul.f32 %v3481, %v3526
    %v3639 = vmul.f32 %v3486, %v3526
    %v3640 = vmul.f32 %v3491, %v3526
    %v3641 = vmul.f32 %v3496, %v3526
    %v3642 = vmul.f32 %v3501, %v3526
    %v3643 = vmul.f32 %v3506, %v3526
    %v3644 = vmul.f32 %v3511, %v3526
    %v3645 = vmul.f32 %v3516, %v3526
    %v3646 = vmul.f32 %v3521, %v3526
    %v3647 = vadd.f32 %v2682, %v3527
    %v3648 = vadd.f32 %v2683, %v3528
    %v3649 = vadd.f32 %v2684, %v3529
    %v3650 = vadd.f32 %v2685, %v3530
    %v3651 = vadd.f32 %v2686, %v3531
    %v3652 = vadd.f32 %v2687, %v3532
    %v3653 = vadd.f32 %v2688, %v3533
    %v3654 = vadd.f32 %v2689, %v3534
    %v3655 = vadd.f32 %v2690, %v3535
    %v3656 = vadd.f32 %v2691, %v3536
    %v3657 = vadd.f32 %v2692, %v3537
    %v3658 = vadd.f32 %v2693, %v3538
    %v3659 = vadd.f32 %v2694, %v3539
    %v3660 = vadd.f32 %v2695, %v3540
    %v3661 = vadd.f32 %v2696, %v3541
    %v3662 = vadd.f32 %v2697, %v3542
    %v3663 = vadd.f32 %v2698, %v3543
    %v3664 = vadd.f32 %v2699, %v3544
    %v3665 = vadd.f32 %v2700, %v3545
    %v3666 = vadd.f32 %v2701, %v3546
    %v3667 = vadd.f32 %v2702, %v3547
    %v3668 = vadd.f32 %v2703, %v3548
    %v3669 = vadd.f32 %v2704, %v3549
    %v3670 = vadd.f32 %v2705, %v3550
    %v3671 = vadd.f32 %v2706, %v3551
    %v3672 = vadd.f32 %v2707, %v3552
    %v3673 = vadd.f32 %v2708, %v3553
    %v3674 = vadd.f32 %v2709, %v3554
    %v3675 = vadd.f32 %v2710, %v3555
    %v3676 = vadd.f32 %v2711, %v3556
    %v3677 = vadd.f32 %v2712, %v3557
    %v3678 = vadd.f32 %v2713, %v3558
    %v3679 = vadd.f32 %v2714, %v3559
    %v3680 = vadd.f32 %v2715, %v3560
    %v3681 = vadd.f32 %v2716, %v3561
    %v3682 = vadd.f32 %v2717, %v3562
    %v3683 = vadd.f32 %v2718, %v3563
    %v3684 = vadd.f32 %v2719, %v3564
    %v3685 = vadd.f32 %v2720, %v3565
    %v3686 = vadd.f32 %v2721, %v3566
    %v3687 = vadd.f32 %v2722, %v3567
    %v3688 = vadd.f32 %v2723, %v3568
    %v3689 = vadd.f32 %v2724, %v3569
    %v3690 = vadd.f32 %v2725, %v3570
    %v3691 = vadd.f32 %v2726, %v3571
    %v3692 = vadd.f32 %v2727, %v3572
    %v3693 = vadd.f32 %v2728, %v3573
    %v3694 = vadd.f32 %v2729, %v3574
    %v3695 = vadd.f32 %v2730, %v3575
    %v3696 = vadd.f32 %v2731, %v3576
    %v3697 = vadd.f32 %v2732, %v3577
    %v3698 = vadd.f32 %v2733, %v3578
    %v3699 = vadd.f32 %v2734, %v3579
    %v3700 = vadd.f32 %v2735, %v3580
    %v3701 = vadd.f32 %v2736, %v3581
    %v3702 = vadd.f32 %v2737, %v3582
    %v3703 = vadd.f32 %v2738, %v3583
    %v3704 = vadd.f32 %v2739, %v3584
    %v3705 = vadd.f32 %v2740, %v3585
    %v3706 = vadd.f32 %v2741, %v3586
    %v3707 = vadd.f32 %v2742, %v3587
    %v3708 = vadd.f32 %v2743, %v3588
    %v3709 = vadd.f32 %v2744, %v3589
    %v3710 = vadd.f32 %v2745, %v3590
    %v3711 = vadd.f32 %v2746, %v3591
    %v3712 = vadd.f32 %v2747, %v3592
    %v3713 = vadd.f32 %v2748, %v3593
    %v3714 = vadd.f32 %v2749, %v3594
    %v3715 = vadd.f32 %v2750, %v3595
    %v3716 = vadd.f32 %v2751, %v3596
    %v3717 = vadd.f32 %v2752, %v3597
    %v3718 = vadd.f32 %v2753, %v3598
    %v3719 = vadd.f32 %v2754, %v3599
    %v3720 = vadd.f32 %v2755, %v3600
    %v3721 = vadd.f32 %v2756, %v3601
    %v3722 = vadd.f32 %v2757, %v3602
    %v3723 = vadd.f32 %v2758, %v3603
    %v3724 = vadd.f32 %v2759, %v3604
    %v3725 = vadd.f32 %v2760, %v3605
    %v3726 = vadd.f32 %v2761, %v3606
    %v3727 = vadd.f32 %v2762, %v3607
    %v3728 = vadd.f32 %v2763, %v3608
    %v3729 = vadd.f32 %v2764, %v3609
    %v3730 = vadd.f32 %v2765, %v3610
    %v3731 = vadd.f32 %v2766, %v3611
    %v3732 = vadd.f32 %v2767, %v3612
    %v3733 = vadd.f32 %v2768, %v3613
    %v3734 = vadd.f32 %v2769, %v3614
    %v3735 = vadd.f32 %v2770, %v3615
    %v3736 = vadd.f32 %v2771, %v3616
    %v3737 = vadd.f32 %v2772, %v3617
    %v3738 = vadd.f32 %v2773, %v3618
    %v3739 = vadd.f32 %v2774, %v3619
    %v3740 = vadd.f32 %v2775, %v3620
    %v3741 = vadd.f32 %v2776, %v3621
    %v3742 = vadd.f32 %v2777, %v3622
    %v3743 = vadd.f32 %v2778, %v3623
    %v3744 = vadd.f32 %v2779, %v3624
    %v3745 = vadd.f32 %v2780, %v3625
    %v3746 = vadd.f32 %v2781, %v3626
    %v3747 = vadd.f32 %v2782, %v3627
    %v3748 = vadd.f32 %v2783, %v3628
    %v3749 = vadd.f32 %v2784, %v3629
    %v3750 = vadd.f32 %v2785, %v3630
    %v3751 = vadd.f32 %v2786, %v3631
    %v3752 = vadd.f32 %v2787, %v3632
    %v3753 = vadd.f32 %v2788, %v3633
    %v3754 = vadd.f32 %v2789, %v3634
    %v3755 = vadd.f32 %v2790, %v3635
    %v3756 = vadd.f32 %v2791, %v3636
    %v3757 = vadd.f32 %v2792, %v3637
    %v3758 = vadd.f32 %v2793, %v3638
    %v3759 = vadd.f32 %v2794, %v3639
    %v3760 = vadd.f32 %v2795, %v3640
    %v3761 = vadd.f32 %v2796, %v3641
    %v3762 = vadd.f32 %v2797, %v3642
    %v3763 = vadd.f32 %v2798, %v3643
    %v3764 = vadd.f32 %v2799, %v3644
    %v3765 = vadd.f32 %v2800, %v3645
    %v3766 = vadd.f32 %v2801, %v3646
    %v3767 = vld [vmem:[%s0 + $0x4] sm:$0xff]
    %v3768 = vld [vmem:[%s0 + $0xc] sm:$0xff]
    %v3769 = vld [vmem:[%s0 + $0x14] sm:$0xff]
    %v3770 = vld [vmem:[%s0 + $0x1c] sm:$0xff]
    %v3771 = vld [vmem:[%s0 + $0x24] sm:$0xff]
    %v3772 = vld [vmem:[%s0 + $0x2c] sm:$0xff]
    %v3773 = vld [vmem:[%s0 + $0x34] sm:$0xff]
    %v3774 = vld [vmem:[%s0 + $0x3c] sm:$0xff]
    %v3775 = vld [vmem:[%s0 + $0x44] sm:$0xff]
    %v3776 = vld [vmem:[%s0 + $0x4c] sm:$0xff]
    %v3777 = vld [vmem:[%s0 + $0x54] sm:$0xff]
    %v3778 = vld [vmem:[%s0 + $0x5c] sm:$0xff]
    %v3779 = vld [vmem:[%s0 + $0x64] sm:$0xff]
    %v3780 = vld [vmem:[%s0 + $0x6c] sm:$0xff]
    %v3781 = vld [vmem:[%s0 + $0x74] sm:$0xff]
    %v3782 = vld [vmem:[%s0 + $0x84] sm:$0xff]
    %v3783 = vld [vmem:[%s0 + $0x8c] sm:$0xff]
    %v3784 = vld [vmem:[%s0 + $0x94] sm:$0xff]
    %v3785 = vld [vmem:[%s0 + $0x9c] sm:$0xff]
    %v3786 = vld [vmem:[%s0 + $0xa4] sm:$0xff]
    %v3787 = vld [vmem:[%s0 + $0xac] sm:$0xff]
    %v3788 = vld [vmem:[%s0 + $0xb4] sm:$0xff]
    %v3789 = vld [vmem:[%s0 + $0xbc] sm:$0xff]
    %v3790 = vld [vmem:[%s0 + $0xc4] sm:$0xff]
    %v3791 = vld [vmem:[%s0 + $0xcc] sm:$0xff]
    %v3792 = vld [vmem:[%s0 + $0xd4] sm:$0xff]
    %v3793 = vld [vmem:[%s0 + $0xdc] sm:$0xff]
    %v3794 = vld [vmem:[%s0 + $0xe4] sm:$0xff]
    %v3795 = vld [vmem:[%s0 + $0xec] sm:$0xff]
    %v3796 = vld [vmem:[%s0 + $0xf4] sm:$0xff]
    %v3797 = vld [vmem:[%s0 + $0x104] sm:$0xff]
    %v3798 = vld [vmem:[%s0 + $0x10c] sm:$0xff]
    %v3799 = vld [vmem:[%s0 + $0x114] sm:$0xff]
    %v3800 = vld [vmem:[%s0 + $0x11c] sm:$0xff]
    %v3801 = vld [vmem:[%s0 + $0x124] sm:$0xff]
    %v3802 = vld [vmem:[%s0 + $0x12c] sm:$0xff]
    %v3803 = vld [vmem:[%s0 + $0x134] sm:$0xff]
    %v3804 = vld [vmem:[%s0 + $0x13c] sm:$0xff]
    %v3805 = vld [vmem:[%s0 + $0x144] sm:$0xff]
    %v3806 = vld [vmem:[%s0 + $0x14c] sm:$0xff]
    %v3807 = vld [vmem:[%s0 + $0x154] sm:$0xff]
    %v3808 = vld [vmem:[%s0 + $0x15c] sm:$0xff]
    %v3809 = vld [vmem:[%s0 + $0x164] sm:$0xff]
    %v3810 = vld [vmem:[%s0 + $0x16c] sm:$0xff]
    %v3811 = vld [vmem:[%s0 + $0x174] sm:$0xff]
    %v3812 = vld [vmem:[%s0 + $0x184] sm:$0xff]
    %v3813 = vld [vmem:[%s0 + $0x18c] sm:$0xff]
    %v3814 = vld [vmem:[%s0 + $0x194] sm:$0xff]
    %v3815 = vld [vmem:[%s0 + $0x19c] sm:$0xff]
    %v3816 = vld [vmem:[%s0 + $0x1a4] sm:$0xff]
    %v3817 = vld [vmem:[%s0 + $0x1ac] sm:$0xff]
    %v3818 = vld [vmem:[%s0 + $0x1b4] sm:$0xff]
    %v3819 = vld [vmem:[%s0 + $0x1bc] sm:$0xff]
    %v3820 = vld [vmem:[%s0 + $0x1c4] sm:$0xff]
    %v3821 = vld [vmem:[%s0 + $0x1cc] sm:$0xff]
    %v3822 = vld [vmem:[%s0 + $0x1d4] sm:$0xff]
    %v3823 = vld [vmem:[%s0 + $0x1dc] sm:$0xff]
    %v3824 = vld [vmem:[%s0 + $0x1e4] sm:$0xff]
    %v3825 = vld [vmem:[%s0 + $0x1ec] sm:$0xff]
    %v3826 = vld [vmem:[%s0 + $0x1f4] sm:$0xff]
    %v3827 = vld [vmem:[%s0 + $0x204] sm:$0xff]
    %v3828 = vld [vmem:[%s0 + $0x20c] sm:$0xff]
    %v3829 = vld [vmem:[%s0 + $0x214] sm:$0xff]
    %v3830 = vld [vmem:[%s0 + $0x21c] sm:$0xff]
    %v3831 = vld [vmem:[%s0 + $0x224] sm:$0xff]
    %v3832 = vld [vmem:[%s0 + $0x22c] sm:$0xff]
    %v3833 = vld [vmem:[%s0 + $0x234] sm:$0xff]
    %v3834 = vld [vmem:[%s0 + $0x23c] sm:$0xff]
    %v3835 = vld [vmem:[%s0 + $0x244] sm:$0xff]
    %v3836 = vld [vmem:[%s0 + $0x24c] sm:$0xff]
    %v3837 = vld [vmem:[%s0 + $0x254] sm:$0xff]
    %v3838 = vld [vmem:[%s0 + $0x25c] sm:$0xff]
    %v3839 = vld [vmem:[%s0 + $0x264] sm:$0xff]
    %v3840 = vld [vmem:[%s0 + $0x26c] sm:$0xff]
    %v3841 = vld [vmem:[%s0 + $0x274] sm:$0xff]
    %v3842 = vld [vmem:[%s0 + $0x284] sm:$0xff]
    %v3843 = vld [vmem:[%s0 + $0x28c] sm:$0xff]
    %v3844 = vld [vmem:[%s0 + $0x294] sm:$0xff]
    %v3845 = vld [vmem:[%s0 + $0x29c] sm:$0xff]
    %v3846 = vld [vmem:[%s0 + $0x2a4] sm:$0xff]
    %v3847 = vld [vmem:[%s0 + $0x2ac] sm:$0xff]
    %v3848 = vld [vmem:[%s0 + $0x2b4] sm:$0xff]
    %v3849 = vld [vmem:[%s0 + $0x2bc] sm:$0xff]
    %v3850 = vld [vmem:[%s0 + $0x2c4] sm:$0xff]
    %v3851 = vld [vmem:[%s0 + $0x2cc] sm:$0xff]
    %v3852 = vld [vmem:[%s0 + $0x2d4] sm:$0xff]
    %v3853 = vld [vmem:[%s0 + $0x2dc] sm:$0xff]
    %v3854 = vld [vmem:[%s0 + $0x2e4] sm:$0xff]
    %v3855 = vld [vmem:[%s0 + $0x2ec] sm:$0xff]
    %v3856 = vld [vmem:[%s0 + $0x2f4] sm:$0xff]
    %v3857 = vld [vmem:[%s0 + $0x304] sm:$0xff]
    %v3858 = vld [vmem:[%s0 + $0x30c] sm:$0xff]
    %v3859 = vld [vmem:[%s0 + $0x314] sm:$0xff]
    %v3860 = vld [vmem:[%s0 + $0x31c] sm:$0xff]
    %v3861 = vld [vmem:[%s0 + $0x324] sm:$0xff]
    %v3862 = vld [vmem:[%s0 + $0x32c] sm:$0xff]
    %v3863 = vld [vmem:[%s0 + $0x334] sm:$0xff]
    %v3864 = vld [vmem:[%s0 + $0x33c] sm:$0xff]
    %v3865 = vld [vmem:[%s0 + $0x344] sm:$0xff]
    %v3866 = vld [vmem:[%s0 + $0x34c] sm:$0xff]
    %v3867 = vld [vmem:[%s0 + $0x354] sm:$0xff]
    %v3868 = vld [vmem:[%s0 + $0x35c] sm:$0xff]
    %v3869 = vld [vmem:[%s0 + $0x364] sm:$0xff]
    %v3870 = vld [vmem:[%s0 + $0x36c] sm:$0xff]
    %v3871 = vld [vmem:[%s0 + $0x374] sm:$0xff]
    %v3872 = vld [vmem:[%s0 + $0x384] sm:$0xff]
    %v3873 = vld [vmem:[%s0 + $0x38c] sm:$0xff]
    %v3874 = vld [vmem:[%s0 + $0x394] sm:$0xff]
    %v3875 = vld [vmem:[%s0 + $0x39c] sm:$0xff]
    %v3876 = vld [vmem:[%s0 + $0x3a4] sm:$0xff]
    %v3877 = vld [vmem:[%s0 + $0x3ac] sm:$0xff]
    %v3878 = vld [vmem:[%s0 + $0x3b4] sm:$0xff]
    %v3879 = vld [vmem:[%s0 + $0x3bc] sm:$0xff]
    %v3880 = vld [vmem:[%s0 + $0x3c4] sm:$0xff]
    %v3881 = vld [vmem:[%s0 + $0x3cc] sm:$0xff]
    %v3882 = vld [vmem:[%s0 + $0x3d4] sm:$0xff]
    %v3883 = vld [vmem:[%s0 + $0x3dc] sm:$0xff]
    %v3884 = vld [vmem:[%s0 + $0x3e4] sm:$0xff]
    %v3885 = vld [vmem:[%s0 + $0x3ec] sm:$0xff]
    %v3886 = vld [vmem:[%s0 + $0x3f4] sm:$0xff]
    %v3887 = vld [vmem:[%s1 + $0x4] sm:$0x1]
    %3889 = vset.pattern.permute.xlu0 0
    %3890 = vperm.xlu0 %3889, %v3767
    %v3891 = vpop.permute.xlu0 %3890
    %3894 = vset.pattern.permute.xlu0 0
    %3895 = vperm.xlu0 %3894, %v3768
    %v3896 = vpop.permute.xlu0 %3895
    %3899 = vset.pattern.permute.xlu0 0
    %3900 = vperm.xlu0 %3899, %v3769
    %v3901 = vpop.permute.xlu0 %3900
    %3904 = vset.pattern.permute.xlu0 0
    %3905 = vperm.xlu0 %3904, %v3770
    %v3906 = vpop.permute.xlu0 %3905
    %3909 = vset.pattern.permute.xlu0 0
    %3910 = vperm.xlu0 %3909, %v3771
    %v3911 = vpop.permute.xlu0 %3910
    %3914 = vset.pattern.permute.xlu0 0
    %3915 = vperm.xlu0 %3914, %v3772
    %v3916 = vpop.permute.xlu0 %3915
    %3919 = vset.pattern.permute.xlu0 0
    %3920 = vperm.xlu0 %3919, %v3773
    %v3921 = vpop.permute.xlu0 %3920
    %3924 = vset.pattern.permute.xlu0 0
    %3925 = vperm.xlu0 %3924, %v3774
    %v3926 = vpop.permute.xlu0 %3925
    %3929 = vset.pattern.permute.xlu0 0
    %3930 = vperm.xlu0 %3929, %v3775
    %v3931 = vpop.permute.xlu0 %3930
    %3934 = vset.pattern.permute.xlu0 0
    %3935 = vperm.xlu0 %3934, %v3776
    %v3936 = vpop.permute.xlu0 %3935
    %3939 = vset.pattern.permute.xlu0 0
    %3940 = vperm.xlu0 %3939, %v3777
    %v3941 = vpop.permute.xlu0 %3940
    %3944 = vset.pattern.permute.xlu0 0
    %3945 = vperm.xlu0 %3944, %v3778
    %v3946 = vpop.permute.xlu0 %3945
    %3949 = vset.pattern.permute.xlu0 0
    %3950 = vperm.xlu0 %3949, %v3779
    %v3951 = vpop.permute.xlu0 %3950
    %3954 = vset.pattern.permute.xlu0 0
    %3955 = vperm.xlu0 %3954, %v3780
    %v3956 = vpop.permute.xlu0 %3955
    %3959 = vset.pattern.permute.xlu0 0
    %3960 = vperm.xlu0 %3959, %v3781
    %v3961 = vpop.permute.xlu0 %3960
    %3964 = vset.pattern.permute.xlu0 0
    %3965 = vperm.xlu0 %3964, %v3782
    %v3966 = vpop.permute.xlu0 %3965
    %3969 = vset.pattern.permute.xlu0 0
    %3970 = vperm.xlu0 %3969, %v3783
    %v3971 = vpop.permute.xlu0 %3970
    %3974 = vset.pattern.permute.xlu0 0
    %3975 = vperm.xlu0 %3974, %v3784
    %v3976 = vpop.permute.xlu0 %3975
    %3979 = vset.pattern.permute.xlu0 0
    %3980 = vperm.xlu0 %3979, %v3785
    %v3981 = vpop.permute.xlu0 %3980
    %3984 = vset.pattern.permute.xlu0 0
    %3985 = vperm.xlu0 %3984, %v3786
    %v3986 = vpop.permute.xlu0 %3985
    %3989 = vset.pattern.permute.xlu0 0
    %3990 = vperm.xlu0 %3989, %v3787
    %v3991 = vpop.permute.xlu0 %3990
    %3994 = vset.pattern.permute.xlu0 0
    %3995 = vperm.xlu0 %3994, %v3788
    %v3996 = vpop.permute.xlu0 %3995
    %3999 = vset.pattern.permute.xlu0 0
    %4000 = vperm.xlu0 %3999, %v3789
    %v4001 = vpop.permute.xlu0 %4000
    %4004 = vset.pattern.permute.xlu0 0
    %4005 = vperm.xlu0 %4004, %v3790
    %v4006 = vpop.permute.xlu0 %4005
    %4009 = vset.pattern.permute.xlu0 0
    %4010 = vperm.xlu0 %4009, %v3791
    %v4011 = vpop.permute.xlu0 %4010
    %4014 = vset.pattern.permute.xlu0 0
    %4015 = vperm.xlu0 %4014, %v3792
    %v4016 = vpop.permute.xlu0 %4015
    %4019 = vset.pattern.permute.xlu0 0
    %4020 = vperm.xlu0 %4019, %v3793
    %v4021 = vpop.permute.xlu0 %4020
    %4024 = vset.pattern.permute.xlu0 0
    %4025 = vperm.xlu0 %4024, %v3794
    %v4026 = vpop.permute.xlu0 %4025
    %4029 = vset.pattern.permute.xlu0 0
    %4030 = vperm.xlu0 %4029, %v3795
    %v4031 = vpop.permute.xlu0 %4030
    %4034 = vset.pattern.permute.xlu0 0
    %4035 = vperm.xlu0 %4034, %v3796
    %v4036 = vpop.permute.xlu0 %4035
    %4039 = vset.pattern.permute.xlu0 0
    %4040 = vperm.xlu0 %4039, %v3797
    %v4041 = vpop.permute.xlu0 %4040
    %4044 = vset.pattern.permute.xlu0 0
    %4045 = vperm.xlu0 %4044, %v3798
    %v4046 = vpop.permute.xlu0 %4045
    %4049 = vset.pattern.permute.xlu0 0
    %4050 = vperm.xlu0 %4049, %v3799
    %v4051 = vpop.permute.xlu0 %4050
    %4054 = vset.pattern.permute.xlu0 0
    %4055 = vperm.xlu0 %4054, %v3800
    %v4056 = vpop.permute.xlu0 %4055
    %4059 = vset.pattern.permute.xlu0 0
    %4060 = vperm.xlu0 %4059, %v3801
    %v4061 = vpop.permute.xlu0 %4060
    %4064 = vset.pattern.permute.xlu0 0
    %4065 = vperm.xlu0 %4064, %v3802
    %v4066 = vpop.permute.xlu0 %4065
    %4069 = vset.pattern.permute.xlu0 0
    %4070 = vperm.xlu0 %4069, %v3803
    %v4071 = vpop.permute.xlu0 %4070
    %4074 = vset.pattern.permute.xlu0 0
    %4075 = vperm.xlu0 %4074, %v3804
    %v4076 = vpop.permute.xlu0 %4075
    %4079 = vset.pattern.permute.xlu0 0
    %4080 = vperm.xlu0 %4079, %v3805
    %v4081 = vpop.permute.xlu0 %4080
    %4084 = vset.pattern.permute.xlu0 0
    %4085 = vperm.xlu0 %4084, %v3806
    %v4086 = vpop.permute.xlu0 %4085
    %4089 = vset.pattern.permute.xlu0 0
    %4090 = vperm.xlu0 %4089, %v3807
    %v4091 = vpop.permute.xlu0 %4090
    %4094 = vset.pattern.permute.xlu0 0
    %4095 = vperm.xlu0 %4094, %v3808
    %v4096 = vpop.permute.xlu0 %4095
    %4099 = vset.pattern.permute.xlu0 0
    %4100 = vperm.xlu0 %4099, %v3809
    %v4101 = vpop.permute.xlu0 %4100
    %4104 = vset.pattern.permute.xlu0 0
    %4105 = vperm.xlu0 %4104, %v3810
    %v4106 = vpop.permute.xlu0 %4105
    %4109 = vset.pattern.permute.xlu0 0
    %4110 = vperm.xlu0 %4109, %v3811
    %v4111 = vpop.permute.xlu0 %4110
    %4114 = vset.pattern.permute.xlu0 0
    %4115 = vperm.xlu0 %4114, %v3812
    %v4116 = vpop.permute.xlu0 %4115
    %4119 = vset.pattern.permute.xlu0 0
    %4120 = vperm.xlu0 %4119, %v3813
    %v4121 = vpop.permute.xlu0 %4120
    %4124 = vset.pattern.permute.xlu0 0
    %4125 = vperm.xlu0 %4124, %v3814
    %v4126 = vpop.permute.xlu0 %4125
    %4129 = vset.pattern.permute.xlu0 0
    %4130 = vperm.xlu0 %4129, %v3815
    %v4131 = vpop.permute.xlu0 %4130
    %4134 = vset.pattern.permute.xlu0 0
    %4135 = vperm.xlu0 %4134, %v3816
    %v4136 = vpop.permute.xlu0 %4135
    %4139 = vset.pattern.permute.xlu0 0
    %4140 = vperm.xlu0 %4139, %v3817
    %v4141 = vpop.permute.xlu0 %4140
    %4144 = vset.pattern.permute.xlu0 0
    %4145 = vperm.xlu0 %4144, %v3818
    %v4146 = vpop.permute.xlu0 %4145
    %4149 = vset.pattern.permute.xlu0 0
    %4150 = vperm.xlu0 %4149, %v3819
    %v4151 = vpop.permute.xlu0 %4150
    %4154 = vset.pattern.permute.xlu0 0
    %4155 = vperm.xlu0 %4154, %v3820
    %v4156 = vpop.permute.xlu0 %4155
    %4159 = vset.pattern.permute.xlu0 0
    %4160 = vperm.xlu0 %4159, %v3821
    %v4161 = vpop.permute.xlu0 %4160
    %4164 = vset.pattern.permute.xlu0 0
    %4165 = vperm.xlu0 %4164, %v3822
    %v4166 = vpop.permute.xlu0 %4165
    %4169 = vset.pattern.permute.xlu0 0
    %4170 = vperm.xlu0 %4169, %v3823
    %v4171 = vpop.permute.xlu0 %4170
    %4174 = vset.pattern.permute.xlu0 0
    %4175 = vperm.xlu0 %4174, %v3824
    %v4176 = vpop.permute.xlu0 %4175
    %4179 = vset.pattern.permute.xlu0 0
    %4180 = vperm.xlu0 %4179, %v3825
    %v4181 = vpop.permute.xlu0 %4180
    %4184 = vset.pattern.permute.xlu0 0
    %4185 = vperm.xlu0 %4184, %v3826
    %v4186 = vpop.permute.xlu0 %4185
    %4189 = vset.pattern.permute.xlu0 0
    %4190 = vperm.xlu0 %4189, %v3827
    %v4191 = vpop.permute.xlu0 %4190
    %4194 = vset.pattern.permute.xlu0 0
    %4195 = vperm.xlu0 %4194, %v3828
    %v4196 = vpop.permute.xlu0 %4195
    %4199 = vset.pattern.permute.xlu0 0
    %4200 = vperm.xlu0 %4199, %v3829
    %v4201 = vpop.permute.xlu0 %4200
    %4204 = vset.pattern.permute.xlu0 0
    %4205 = vperm.xlu0 %4204, %v3830
    %v4206 = vpop.permute.xlu0 %4205
    %4209 = vset.pattern.permute.xlu0 0
    %4210 = vperm.xlu0 %4209, %v3831
    %v4211 = vpop.permute.xlu0 %4210
    %4214 = vset.pattern.permute.xlu0 0
    %4215 = vperm.xlu0 %4214, %v3832
    %v4216 = vpop.permute.xlu0 %4215
    %4219 = vset.pattern.permute.xlu0 0
    %4220 = vperm.xlu0 %4219, %v3833
    %v4221 = vpop.permute.xlu0 %4220
    %4224 = vset.pattern.permute.xlu0 0
    %4225 = vperm.xlu0 %4224, %v3834
    %v4226 = vpop.permute.xlu0 %4225
    %4229 = vset.pattern.permute.xlu0 0
    %4230 = vperm.xlu0 %4229, %v3835
    %v4231 = vpop.permute.xlu0 %4230
    %4234 = vset.pattern.permute.xlu0 0
    %4235 = vperm.xlu0 %4234, %v3836
    %v4236 = vpop.permute.xlu0 %4235
    %4239 = vset.pattern.permute.xlu0 0
    %4240 = vperm.xlu0 %4239, %v3837
    %v4241 = vpop.permute.xlu0 %4240
    %4244 = vset.pattern.permute.xlu0 0
    %4245 = vperm.xlu0 %4244, %v3838
    %v4246 = vpop.permute.xlu0 %4245
    %4249 = vset.pattern.permute.xlu0 0
    %4250 = vperm.xlu0 %4249, %v3839
    %v4251 = vpop.permute.xlu0 %4250
    %4254 = vset.pattern.permute.xlu0 0
    %4255 = vperm.xlu0 %4254, %v3840
    %v4256 = vpop.permute.xlu0 %4255
    %4259 = vset.pattern.permute.xlu0 0
    %4260 = vperm.xlu0 %4259, %v3841
    %v4261 = vpop.permute.xlu0 %4260
    %4264 = vset.pattern.permute.xlu0 0
    %4265 = vperm.xlu0 %4264, %v3842
    %v4266 = vpop.permute.xlu0 %4265
    %4269 = vset.pattern.permute.xlu0 0
    %4270 = vperm.xlu0 %4269, %v3843
    %v4271 = vpop.permute.xlu0 %4270
    %4274 = vset.pattern.permute.xlu0 0
    %4275 = vperm.xlu0 %4274, %v3844
    %v4276 = vpop.permute.xlu0 %4275
    %4279 = vset.pattern.permute.xlu0 0
    %4280 = vperm.xlu0 %4279, %v3845
    %v4281 = vpop.permute.xlu0 %4280
    %4284 = vset.pattern.permute.xlu0 0
    %4285 = vperm.xlu0 %4284, %v3846
    %v4286 = vpop.permute.xlu0 %4285
    %4289 = vset.pattern.permute.xlu0 0
    %4290 = vperm.xlu0 %4289, %v3847
    %v4291 = vpop.permute.xlu0 %4290
    %4294 = vset.pattern.permute.xlu0 0
    %4295 = vperm.xlu0 %4294, %v3848
    %v4296 = vpop.permute.xlu0 %4295
    %4299 = vset.pattern.permute.xlu0 0
    %4300 = vperm.xlu0 %4299, %v3849
    %v4301 = vpop.permute.xlu0 %4300
    %4304 = vset.pattern.permute.xlu0 0
    %4305 = vperm.xlu0 %4304, %v3850
    %v4306 = vpop.permute.xlu0 %4305
    %4309 = vset.pattern.permute.xlu0 0
    %4310 = vperm.xlu0 %4309, %v3851
    %v4311 = vpop.permute.xlu0 %4310
    %4314 = vset.pattern.permute.xlu0 0
    %4315 = vperm.xlu0 %4314, %v3852
    %v4316 = vpop.permute.xlu0 %4315
    %4319 = vset.pattern.permute.xlu0 0
    %4320 = vperm.xlu0 %4319, %v3853
    %v4321 = vpop.permute.xlu0 %4320
    %4324 = vset.pattern.permute.xlu0 0
    %4325 = vperm.xlu0 %4324, %v3854
    %v4326 = vpop.permute.xlu0 %4325
    %4329 = vset.pattern.permute.xlu0 0
    %4330 = vperm.xlu0 %4329, %v3855
    %v4331 = vpop.permute.xlu0 %4330
    %4334 = vset.pattern.permute.xlu0 0
    %4335 = vperm.xlu0 %4334, %v3856
    %v4336 = vpop.permute.xlu0 %4335
    %4339 = vset.pattern.permute.xlu0 0
    %4340 = vperm.xlu0 %4339, %v3857
    %v4341 = vpop.permute.xlu0 %4340
    %4344 = vset.pattern.permute.xlu0 0
    %4345 = vperm.xlu0 %4344, %v3858
    %v4346 = vpop.permute.xlu0 %4345
    %4349 = vset.pattern.permute.xlu0 0
    %4350 = vperm.xlu0 %4349, %v3859
    %v4351 = vpop.permute.xlu0 %4350
    %4354 = vset.pattern.permute.xlu0 0
    %4355 = vperm.xlu0 %4354, %v3860
    %v4356 = vpop.permute.xlu0 %4355
    %4359 = vset.pattern.permute.xlu0 0
    %4360 = vperm.xlu0 %4359, %v3861
    %v4361 = vpop.permute.xlu0 %4360
    %4364 = vset.pattern.permute.xlu0 0
    %4365 = vperm.xlu0 %4364, %v3862
    %v4366 = vpop.permute.xlu0 %4365
    %4369 = vset.pattern.permute.xlu0 0
    %4370 = vperm.xlu0 %4369, %v3863
    %v4371 = vpop.permute.xlu0 %4370
    %4374 = vset.pattern.permute.xlu0 0
    %4375 = vperm.xlu0 %4374, %v3864
    %v4376 = vpop.permute.xlu0 %4375
    %4379 = vset.pattern.permute.xlu0 0
    %4380 = vperm.xlu0 %4379, %v3865
    %v4381 = vpop.permute.xlu0 %4380
    %4384 = vset.pattern.permute.xlu0 0
    %4385 = vperm.xlu0 %4384, %v3866
    %v4386 = vpop.permute.xlu0 %4385
    %4389 = vset.pattern.permute.xlu0 0
    %4390 = vperm.xlu0 %4389, %v3867
    %v4391 = vpop.permute.xlu0 %4390
    %4394 = vset.pattern.permute.xlu0 0
    %4395 = vperm.xlu0 %4394, %v3868
    %v4396 = vpop.permute.xlu0 %4395
    %4399 = vset.pattern.permute.xlu0 0
    %4400 = vperm.xlu0 %4399, %v3869
    %v4401 = vpop.permute.xlu0 %4400
    %4404 = vset.pattern.permute.xlu0 0
    %4405 = vperm.xlu0 %4404, %v3870
    %v4406 = vpop.permute.xlu0 %4405
    %4409 = vset.pattern.permute.xlu0 0
    %4410 = vperm.xlu0 %4409, %v3871
    %v4411 = vpop.permute.xlu0 %4410
    %4414 = vset.pattern.permute.xlu0 0
    %4415 = vperm.xlu0 %4414, %v3872
    %v4416 = vpop.permute.xlu0 %4415
    %4419 = vset.pattern.permute.xlu0 0
    %4420 = vperm.xlu0 %4419, %v3873
    %v4421 = vpop.permute.xlu0 %4420
    %4424 = vset.pattern.permute.xlu0 0
    %4425 = vperm.xlu0 %4424, %v3874
    %v4426 = vpop.permute.xlu0 %4425
    %4429 = vset.pattern.permute.xlu0 0
    %4430 = vperm.xlu0 %4429, %v3875
    %v4431 = vpop.permute.xlu0 %4430
    %4434 = vset.pattern.permute.xlu0 0
    %4435 = vperm.xlu0 %4434, %v3876
    %v4436 = vpop.permute.xlu0 %4435
    %4439 = vset.pattern.permute.xlu0 0
    %4440 = vperm.xlu0 %4439, %v3877
    %v4441 = vpop.permute.xlu0 %4440
    %4444 = vset.pattern.permute.xlu0 0
    %4445 = vperm.xlu0 %4444, %v3878
    %v4446 = vpop.permute.xlu0 %4445
    %4449 = vset.pattern.permute.xlu0 0
    %4450 = vperm.xlu0 %4449, %v3879
    %v4451 = vpop.permute.xlu0 %4450
    %4454 = vset.pattern.permute.xlu0 0
    %4455 = vperm.xlu0 %4454, %v3880
    %v4456 = vpop.permute.xlu0 %4455
    %4459 = vset.pattern.permute.xlu0 0
    %4460 = vperm.xlu0 %4459, %v3881
    %v4461 = vpop.permute.xlu0 %4460
    %4464 = vset.pattern.permute.xlu0 0
    %4465 = vperm.xlu0 %4464, %v3882
    %v4466 = vpop.permute.xlu0 %4465
    %4469 = vset.pattern.permute.xlu0 0
    %4470 = vperm.xlu0 %4469, %v3883
    %v4471 = vpop.permute.xlu0 %4470
    %4474 = vset.pattern.permute.xlu0 0
    %4475 = vperm.xlu0 %4474, %v3884
    %v4476 = vpop.permute.xlu0 %4475
    %4479 = vset.pattern.permute.xlu0 0
    %4480 = vperm.xlu0 %4479, %v3885
    %v4481 = vpop.permute.xlu0 %4480
    %4484 = vset.pattern.permute.xlu0 0
    %4485 = vperm.xlu0 %4484, %v3886
    %v4486 = vpop.permute.xlu0 %4485
    %v4488 = vlaneseq
    %v4489 = vshrl.u32 %v4488, 7
    %v4490 = vsub.s32 0, %v4489
    %v4491 = vrot.slane %v3887, %v4490
    %v4492 = vmul.f32 %v3891, %v4491
    %v4493 = vmul.f32 %v3896, %v4491
    %v4494 = vmul.f32 %v3901, %v4491
    %v4495 = vmul.f32 %v3906, %v4491
    %v4496 = vmul.f32 %v3911, %v4491
    %v4497 = vmul.f32 %v3916, %v4491
    %v4498 = vmul.f32 %v3921, %v4491
    %v4499 = vmul.f32 %v3926, %v4491
    %v4500 = vmul.f32 %v3931, %v4491
    %v4501 = vmul.f32 %v3936, %v4491
    %v4502 = vmul.f32 %v3941, %v4491
    %v4503 = vmul.f32 %v3946, %v4491
    %v4504 = vmul.f32 %v3951, %v4491
    %v4505 = vmul.f32 %v3956, %v4491
    %v4506 = vmul.f32 %v3961, %v4491
    %v4507 = vmul.f32 %v3966, %v4491
    %v4508 = vmul.f32 %v3971, %v4491
    %v4509 = vmul.f32 %v3976, %v4491
    %v4510 = vmul.f32 %v3981, %v4491
    %v4511 = vmul.f32 %v3986, %v4491
    %v4512 = vmul.f32 %v3991, %v4491
    %v4513 = vmul.f32 %v3996, %v4491
    %v4514 = vmul.f32 %v4001, %v4491
    %v4515 = vmul.f32 %v4006, %v4491
    %v4516 = vmul.f32 %v4011, %v4491
    %v4517 = vmul.f32 %v4016, %v4491
    %v4518 = vmul.f32 %v4021, %v4491
    %v4519 = vmul.f32 %v4026, %v4491
    %v4520 = vmul.f32 %v4031, %v4491
    %v4521 = vmul.f32 %v4036, %v4491
    %v4522 = vmul.f32 %v4041, %v4491
    %v4523 = vmul.f32 %v4046, %v4491
    %v4524 = vmul.f32 %v4051, %v4491
    %v4525 = vmul.f32 %v4056, %v4491
    %v4526 = vmul.f32 %v4061, %v4491
    %v4527 = vmul.f32 %v4066, %v4491
    %v4528 = vmul.f32 %v4071, %v4491
    %v4529 = vmul.f32 %v4076, %v4491
    %v4530 = vmul.f32 %v4081, %v4491
    %v4531 = vmul.f32 %v4086, %v4491
    %v4532 = vmul.f32 %v4091, %v4491
    %v4533 = vmul.f32 %v4096, %v4491
    %v4534 = vmul.f32 %v4101, %v4491
    %v4535 = vmul.f32 %v4106, %v4491
    %v4536 = vmul.f32 %v4111, %v4491
    %v4537 = vmul.f32 %v4116, %v4491
    %v4538 = vmul.f32 %v4121, %v4491
    %v4539 = vmul.f32 %v4126, %v4491
    %v4540 = vmul.f32 %v4131, %v4491
    %v4541 = vmul.f32 %v4136, %v4491
    %v4542 = vmul.f32 %v4141, %v4491
    %v4543 = vmul.f32 %v4146, %v4491
    %v4544 = vmul.f32 %v4151, %v4491
    %v4545 = vmul.f32 %v4156, %v4491
    %v4546 = vmul.f32 %v4161, %v4491
    %v4547 = vmul.f32 %v4166, %v4491
    %v4548 = vmul.f32 %v4171, %v4491
    %v4549 = vmul.f32 %v4176, %v4491
    %v4550 = vmul.f32 %v4181, %v4491
    %v4551 = vmul.f32 %v4186, %v4491
    %v4552 = vmul.f32 %v4191, %v4491
    %v4553 = vmul.f32 %v4196, %v4491
    %v4554 = vmul.f32 %v4201, %v4491
    %v4555 = vmul.f32 %v4206, %v4491
    %v4556 = vmul.f32 %v4211, %v4491
    %v4557 = vmul.f32 %v4216, %v4491
    %v4558 = vmul.f32 %v4221, %v4491
    %v4559 = vmul.f32 %v4226, %v4491
    %v4560 = vmul.f32 %v4231, %v4491
    %v4561 = vmul.f32 %v4236, %v4491
    %v4562 = vmul.f32 %v4241, %v4491
    %v4563 = vmul.f32 %v4246, %v4491
    %v4564 = vmul.f32 %v4251, %v4491
    %v4565 = vmul.f32 %v4256, %v4491
    %v4566 = vmul.f32 %v4261, %v4491
    %v4567 = vmul.f32 %v4266, %v4491
    %v4568 = vmul.f32 %v4271, %v4491
    %v4569 = vmul.f32 %v4276, %v4491
    %v4570 = vmul.f32 %v4281, %v4491
    %v4571 = vmul.f32 %v4286, %v4491
    %v4572 = vmul.f32 %v4291, %v4491
    %v4573 = vmul.f32 %v4296, %v4491
    %v4574 = vmul.f32 %v4301, %v4491
    %v4575 = vmul.f32 %v4306, %v4491
    %v4576 = vmul.f32 %v4311, %v4491
    %v4577 = vmul.f32 %v4316, %v4491
    %v4578 = vmul.f32 %v4321, %v4491
    %v4579 = vmul.f32 %v4326, %v4491
    %v4580 = vmul.f32 %v4331, %v4491
    %v4581 = vmul.f32 %v4336, %v4491
    %v4582 = vmul.f32 %v4341, %v4491
    %v4583 = vmul.f32 %v4346, %v4491
    %v4584 = vmul.f32 %v4351, %v4491
    %v4585 = vmul.f32 %v4356, %v4491
    %v4586 = vmul.f32 %v4361, %v4491
    %v4587 = vmul.f32 %v4366, %v4491
    %v4588 = vmul.f32 %v4371, %v4491
    %v4589 = vmul.f32 %v4376, %v4491
    %v4590 = vmul.f32 %v4381, %v4491
    %v4591 = vmul.f32 %v4386, %v4491
    %v4592 = vmul.f32 %v4391, %v4491
    %v4593 = vmul.f32 %v4396, %v4491
    %v4594 = vmul.f32 %v4401, %v4491
    %v4595 = vmul.f32 %v4406, %v4491
    %v4596 = vmul.f32 %v4411, %v4491
    %v4597 = vmul.f32 %v4416, %v4491
    %v4598 = vmul.f32 %v4421, %v4491
    %v4599 = vmul.f32 %v4426, %v4491
    %v4600 = vmul.f32 %v4431, %v4491
    %v4601 = vmul.f32 %v4436, %v4491
    %v4602 = vmul.f32 %v4441, %v4491
    %v4603 = vmul.f32 %v4446, %v4491
    %v4604 = vmul.f32 %v4451, %v4491
    %v4605 = vmul.f32 %v4456, %v4491
    %v4606 = vmul.f32 %v4461, %v4491
    %v4607 = vmul.f32 %v4466, %v4491
    %v4608 = vmul.f32 %v4471, %v4491
    %v4609 = vmul.f32 %v4476, %v4491
    %v4610 = vmul.f32 %v4481, %v4491
    %v4611 = vmul.f32 %v4486, %v4491
    %v4612 = vadd.f32 %v3647, %v4492
    %v4613 = vadd.f32 %v3648, %v4493
    %v4614 = vadd.f32 %v3649, %v4494
    %v4615 = vadd.f32 %v3650, %v4495
    %v4616 = vadd.f32 %v3651, %v4496
    %v4617 = vadd.f32 %v3652, %v4497
    %v4618 = vadd.f32 %v3653, %v4498
    %v4619 = vadd.f32 %v3654, %v4499
    %v4620 = vadd.f32 %v3655, %v4500
    %v4621 = vadd.f32 %v3656, %v4501
    %v4622 = vadd.f32 %v3657, %v4502
    %v4623 = vadd.f32 %v3658, %v4503
    %v4624 = vadd.f32 %v3659, %v4504
    %v4625 = vadd.f32 %v3660, %v4505
    %v4626 = vadd.f32 %v3661, %v4506
    %v4627 = vadd.f32 %v3662, %v4507
    %v4628 = vadd.f32 %v3663, %v4508
    %v4629 = vadd.f32 %v3664, %v4509
    %v4630 = vadd.f32 %v3665, %v4510
    %v4631 = vadd.f32 %v3666, %v4511
    %v4632 = vadd.f32 %v3667, %v4512
    %v4633 = vadd.f32 %v3668, %v4513
    %v4634 = vadd.f32 %v3669, %v4514
    %v4635 = vadd.f32 %v3670, %v4515
    %v4636 = vadd.f32 %v3671, %v4516
    %v4637 = vadd.f32 %v3672, %v4517
    %v4638 = vadd.f32 %v3673, %v4518
    %v4639 = vadd.f32 %v3674, %v4519
    %v4640 = vadd.f32 %v3675, %v4520
    %v4641 = vadd.f32 %v3676, %v4521
    %v4642 = vadd.f32 %v3677, %v4522
    %v4643 = vadd.f32 %v3678, %v4523
    %v4644 = vadd.f32 %v3679, %v4524
    %v4645 = vadd.f32 %v3680, %v4525
    %v4646 = vadd.f32 %v3681, %v4526
    %v4647 = vadd.f32 %v3682, %v4527
    %v4648 = vadd.f32 %v3683, %v4528
    %v4649 = vadd.f32 %v3684, %v4529
    %v4650 = vadd.f32 %v3685, %v4530
    %v4651 = vadd.f32 %v3686, %v4531
    %v4652 = vadd.f32 %v3687, %v4532
    %v4653 = vadd.f32 %v3688, %v4533
    %v4654 = vadd.f32 %v3689, %v4534
    %v4655 = vadd.f32 %v3690, %v4535
    %v4656 = vadd.f32 %v3691, %v4536
    %v4657 = vadd.f32 %v3692, %v4537
    %v4658 = vadd.f32 %v3693, %v4538
    %v4659 = vadd.f32 %v3694, %v4539
    %v4660 = vadd.f32 %v3695, %v4540
    %v4661 = vadd.f32 %v3696, %v4541
    %v4662 = vadd.f32 %v3697, %v4542
    %v4663 = vadd.f32 %v3698, %v4543
    %v4664 = vadd.f32 %v3699, %v4544
    %v4665 = vadd.f32 %v3700, %v4545
    %v4666 = vadd.f32 %v3701, %v4546
    %v4667 = vadd.f32 %v3702, %v4547
    %v4668 = vadd.f32 %v3703, %v4548
    %v4669 = vadd.f32 %v3704, %v4549
    %v4670 = vadd.f32 %v3705, %v4550
    %v4671 = vadd.f32 %v3706, %v4551
    %v4672 = vadd.f32 %v3707, %v4552
    %v4673 = vadd.f32 %v3708, %v4553
    %v4674 = vadd.f32 %v3709, %v4554
    %v4675 = vadd.f32 %v3710, %v4555
    %v4676 = vadd.f32 %v3711, %v4556
    %v4677 = vadd.f32 %v3712, %v4557
    %v4678 = vadd.f32 %v3713, %v4558
    %v4679 = vadd.f32 %v3714, %v4559
    %v4680 = vadd.f32 %v3715, %v4560
    %v4681 = vadd.f32 %v3716, %v4561
    %v4682 = vadd.f32 %v3717, %v4562
    %v4683 = vadd.f32 %v3718, %v4563
    %v4684 = vadd.f32 %v3719, %v4564
    %v4685 = vadd.f32 %v3720, %v4565
    %v4686 = vadd.f32 %v3721, %v4566
    %v4687 = vadd.f32 %v3722, %v4567
    %v4688 = vadd.f32 %v3723, %v4568
    %v4689 = vadd.f32 %v3724, %v4569
    %v4690 = vadd.f32 %v3725, %v4570
    %v4691 = vadd.f32 %v3726, %v4571
    %v4692 = vadd.f32 %v3727, %v4572
    %v4693 = vadd.f32 %v3728, %v4573
    %v4694 = vadd.f32 %v3729, %v4574
    %v4695 = vadd.f32 %v3730, %v4575
    %v4696 = vadd.f32 %v3731, %v4576
    %v4697 = vadd.f32 %v3732, %v4577
    %v4698 = vadd.f32 %v3733, %v4578
    %v4699 = vadd.f32 %v3734, %v4579
    %v4700 = vadd.f32 %v3735, %v4580
    %v4701 = vadd.f32 %v3736, %v4581
    %v4702 = vadd.f32 %v3737, %v4582
    %v4703 = vadd.f32 %v3738, %v4583
    %v4704 = vadd.f32 %v3739, %v4584
    %v4705 = vadd.f32 %v3740, %v4585
    %v4706 = vadd.f32 %v3741, %v4586
    %v4707 = vadd.f32 %v3742, %v4587
    %v4708 = vadd.f32 %v3743, %v4588
    %v4709 = vadd.f32 %v3744, %v4589
    %v4710 = vadd.f32 %v3745, %v4590
    %v4711 = vadd.f32 %v3746, %v4591
    %v4712 = vadd.f32 %v3747, %v4592
    %v4713 = vadd.f32 %v3748, %v4593
    %v4714 = vadd.f32 %v3749, %v4594
    %v4715 = vadd.f32 %v3750, %v4595
    %v4716 = vadd.f32 %v3751, %v4596
    %v4717 = vadd.f32 %v3752, %v4597
    %v4718 = vadd.f32 %v3753, %v4598
    %v4719 = vadd.f32 %v3754, %v4599
    %v4720 = vadd.f32 %v3755, %v4600
    %v4721 = vadd.f32 %v3756, %v4601
    %v4722 = vadd.f32 %v3757, %v4602
    %v4723 = vadd.f32 %v3758, %v4603
    %v4724 = vadd.f32 %v3759, %v4604
    %v4725 = vadd.f32 %v3760, %v4605
    %v4726 = vadd.f32 %v3761, %v4606
    %v4727 = vadd.f32 %v3762, %v4607
    %v4728 = vadd.f32 %v3763, %v4608
    %v4729 = vadd.f32 %v3764, %v4609
    %v4730 = vadd.f32 %v3765, %v4610
    %v4731 = vadd.f32 %v3766, %v4611
    %v4732 = vld [vmem:[%s2] sm:$0x1]
    %v4734 = vlaneseq
    %v4735 = vshrl.u32 %v4734, 7
    %v4736 = vsub.s32 0, %v4735
    %v4737 = vrot.slane %v4732, %v4736
    %v4739 = vadd.f32 %v4612, %v4737
    %v4740 = vadd.f32 %v4613, %v4737
    %v4741 = vadd.f32 %v4614, %v4737
    %v4742 = vadd.f32 %v4615, %v4737
    %v4743 = vadd.f32 %v4616, %v4737
    %v4744 = vadd.f32 %v4617, %v4737
    %v4745 = vadd.f32 %v4618, %v4737
    %v4746 = vadd.f32 %v4619, %v4737
    %v4747 = vadd.f32 %v4620, %v4737
    %v4748 = vadd.f32 %v4621, %v4737
    %v4749 = vadd.f32 %v4622, %v4737
    %v4750 = vadd.f32 %v4623, %v4737
    %v4751 = vadd.f32 %v4624, %v4737
    %v4752 = vadd.f32 %v4625, %v4737
    %v4753 = vadd.f32 %v4626, %v4737
    %v4754 = vadd.f32 %v4627, %v4737
    %v4755 = vadd.f32 %v4628, %v4737
    %v4756 = vadd.f32 %v4629, %v4737
    %v4757 = vadd.f32 %v4630, %v4737
    %v4758 = vadd.f32 %v4631, %v4737
    %v4759 = vadd.f32 %v4632, %v4737
    %v4760 = vadd.f32 %v4633, %v4737
    %v4761 = vadd.f32 %v4634, %v4737
    %v4762 = vadd.f32 %v4635, %v4737
    %v4763 = vadd.f32 %v4636, %v4737
    %v4764 = vadd.f32 %v4637, %v4737
    %v4765 = vadd.f32 %v4638, %v4737
    %v4766 = vadd.f32 %v4639, %v4737
    %v4767 = vadd.f32 %v4640, %v4737
    %v4768 = vadd.f32 %v4641, %v4737
    %v4769 = vadd.f32 %v4642, %v4737
    %v4770 = vadd.f32 %v4643, %v4737
    %v4771 = vadd.f32 %v4644, %v4737
    %v4772 = vadd.f32 %v4645, %v4737
    %v4773 = vadd.f32 %v4646, %v4737
    %v4774 = vadd.f32 %v4647, %v4737
    %v4775 = vadd.f32 %v4648, %v4737
    %v4776 = vadd.f32 %v4649, %v4737
    %v4777 = vadd.f32 %v4650, %v4737
    %v4778 = vadd.f32 %v4651, %v4737
    %v4779 = vadd.f32 %v4652, %v4737
    %v4780 = vadd.f32 %v4653, %v4737
    %v4781 = vadd.f32 %v4654, %v4737
    %v4782 = vadd.f32 %v4655, %v4737
    %v4783 = vadd.f32 %v4656, %v4737
    %v4784 = vadd.f32 %v4657, %v4737
    %v4785 = vadd.f32 %v4658, %v4737
    %v4786 = vadd.f32 %v4659, %v4737
    %v4787 = vadd.f32 %v4660, %v4737
    %v4788 = vadd.f32 %v4661, %v4737
    %v4789 = vadd.f32 %v4662, %v4737
    %v4790 = vadd.f32 %v4663, %v4737
    %v4791 = vadd.f32 %v4664, %v4737
    %v4792 = vadd.f32 %v4665, %v4737
    %v4793 = vadd.f32 %v4666, %v4737
    %v4794 = vadd.f32 %v4667, %v4737
    %v4795 = vadd.f32 %v4668, %v4737
    %v4796 = vadd.f32 %v4669, %v4737
    %v4797 = vadd.f32 %v4670, %v4737
    %v4798 = vadd.f32 %v4671, %v4737
    %v4799 = vadd.f32 %v4672, %v4737
    %v4800 = vadd.f32 %v4673, %v4737
    %v4801 = vadd.f32 %v4674, %v4737
    %v4802 = vadd.f32 %v4675, %v4737
    %v4803 = vadd.f32 %v4676, %v4737
    %v4804 = vadd.f32 %v4677, %v4737
    %v4805 = vadd.f32 %v4678, %v4737
    %v4806 = vadd.f32 %v4679, %v4737
    %v4807 = vadd.f32 %v4680, %v4737
    %v4808 = vadd.f32 %v4681, %v4737
    %v4809 = vadd.f32 %v4682, %v4737
    %v4810 = vadd.f32 %v4683, %v4737
    %v4811 = vadd.f32 %v4684, %v4737
    %v4812 = vadd.f32 %v4685, %v4737
    %v4813 = vadd.f32 %v4686, %v4737
    %v4814 = vadd.f32 %v4687, %v4737
    %v4815 = vadd.f32 %v4688, %v4737
    %v4816 = vadd.f32 %v4689, %v4737
    %v4817 = vadd.f32 %v4690, %v4737
    %v4818 = vadd.f32 %v4691, %v4737
    %v4819 = vadd.f32 %v4692, %v4737
    %v4820 = vadd.f32 %v4693, %v4737
    %v4821 = vadd.f32 %v4694, %v4737
    %v4822 = vadd.f32 %v4695, %v4737
    %v4823 = vadd.f32 %v4696, %v4737
    %v4824 = vadd.f32 %v4697, %v4737
    %v4825 = vadd.f32 %v4698, %v4737
    %v4826 = vadd.f32 %v4699, %v4737
    %v4827 = vadd.f32 %v4700, %v4737
    %v4828 = vadd.f32 %v4701, %v4737
    %v4829 = vadd.f32 %v4702, %v4737
    %v4830 = vadd.f32 %v4703, %v4737
    %v4831 = vadd.f32 %v4704, %v4737
    %v4832 = vadd.f32 %v4705, %v4737
    %v4833 = vadd.f32 %v4706, %v4737
    %v4834 = vadd.f32 %v4707, %v4737
    %v4835 = vadd.f32 %v4708, %v4737
    %v4836 = vadd.f32 %v4709, %v4737
    %v4837 = vadd.f32 %v4710, %v4737
    %v4838 = vadd.f32 %v4711, %v4737
    %v4839 = vadd.f32 %v4712, %v4737
    %v4840 = vadd.f32 %v4713, %v4737
    %v4841 = vadd.f32 %v4714, %v4737
    %v4842 = vadd.f32 %v4715, %v4737
    %v4843 = vadd.f32 %v4716, %v4737
    %v4844 = vadd.f32 %v4717, %v4737
    %v4845 = vadd.f32 %v4718, %v4737
    %v4846 = vadd.f32 %v4719, %v4737
    %v4847 = vadd.f32 %v4720, %v4737
    %v4848 = vadd.f32 %v4721, %v4737
    %v4849 = vadd.f32 %v4722, %v4737
    %v4850 = vadd.f32 %v4723, %v4737
    %v4851 = vadd.f32 %v4724, %v4737
    %v4852 = vadd.f32 %v4725, %v4737
    %v4853 = vadd.f32 %v4726, %v4737
    %v4854 = vadd.f32 %v4727, %v4737
    %v4855 = vadd.f32 %v4728, %v4737
    %v4856 = vadd.f32 %v4729, %v4737
    %v4857 = vadd.f32 %v4730, %v4737
    %v4858 = vadd.f32 %v4731, %v4737
    %v4859 = vmax.f32 %v4739, 0.0
    %v4860 = vmax.f32 %v4740, 0.0
    %v4861 = vmax.f32 %v4741, 0.0
    %v4862 = vmax.f32 %v4742, 0.0
    %v4863 = vmax.f32 %v4743, 0.0
    %v4864 = vmax.f32 %v4744, 0.0
    %v4865 = vmax.f32 %v4745, 0.0
    %v4866 = vmax.f32 %v4746, 0.0
    %v4867 = vmax.f32 %v4747, 0.0
    %v4868 = vmax.f32 %v4748, 0.0
    %v4869 = vmax.f32 %v4749, 0.0
    %v4870 = vmax.f32 %v4750, 0.0
    %v4871 = vmax.f32 %v4751, 0.0
    %v4872 = vmax.f32 %v4752, 0.0
    %v4873 = vmax.f32 %v4753, 0.0
    %v4874 = vmax.f32 %v4754, 0.0
    %v4875 = vmax.f32 %v4755, 0.0
    %v4876 = vmax.f32 %v4756, 0.0
    %v4877 = vmax.f32 %v4757, 0.0
    %v4878 = vmax.f32 %v4758, 0.0
    %v4879 = vmax.f32 %v4759, 0.0
    %v4880 = vmax.f32 %v4760, 0.0
    %v4881 = vmax.f32 %v4761, 0.0
    %v4882 = vmax.f32 %v4762, 0.0
    %v4883 = vmax.f32 %v4763, 0.0
    %v4884 = vmax.f32 %v4764, 0.0
    %v4885 = vmax.f32 %v4765, 0.0
    %v4886 = vmax.f32 %v4766, 0.0
    %v4887 = vmax.f32 %v4767, 0.0
    %v4888 = vmax.f32 %v4768, 0.0
    %v4889 = vmax.f32 %v4769, 0.0
    %v4890 = vmax.f32 %v4770, 0.0
    %v4891 = vmax.f32 %v4771, 0.0
    %v4892 = vmax.f32 %v4772, 0.0
    %v4893 = vmax.f32 %v4773, 0.0
    %v4894 = vmax.f32 %v4774, 0.0
    %v4895 = vmax.f32 %v4775, 0.0
    %v4896 = vmax.f32 %v4776, 0.0
    %v4897 = vmax.f32 %v4777, 0.0
    %v4898 = vmax.f32 %v4778, 0.0
    %v4899 = vmax.f32 %v4779, 0.0
    %v4900 = vmax.f32 %v4780, 0.0
    %v4901 = vmax.f32 %v4781, 0.0
    %v4902 = vmax.f32 %v4782, 0.0
    %v4903 = vmax.f32 %v4783, 0.0
    %v4904 = vmax.f32 %v4784, 0.0
    %v4905 = vmax.f32 %v4785, 0.0
    %v4906 = vmax.f32 %v4786, 0.0
    %v4907 = vmax.f32 %v4787, 0.0
    %v4908 = vmax.f32 %v4788, 0.0
    %v4909 = vmax.f32 %v4789, 0.0
    %v4910 = vmax.f32 %v4790, 0.0
    %v4911 = vmax.f32 %v4791, 0.0
    %v4912 = vmax.f32 %v4792, 0.0
    %v4913 = vmax.f32 %v4793, 0.0
    %v4914 = vmax.f32 %v4794, 0.0
    %v4915 = vmax.f32 %v4795, 0.0
    %v4916 = vmax.f32 %v4796, 0.0
    %v4917 = vmax.f32 %v4797, 0.0
    %v4918 = vmax.f32 %v4798, 0.0
    %v4919 = vmax.f32 %v4799, 0.0
    %v4920 = vmax.f32 %v4800, 0.0
    %v4921 = vmax.f32 %v4801, 0.0
    %v4922 = vmax.f32 %v4802, 0.0
    %v4923 = vmax.f32 %v4803, 0.0
    %v4924 = vmax.f32 %v4804, 0.0
    %v4925 = vmax.f32 %v4805, 0.0
    %v4926 = vmax.f32 %v4806, 0.0
    %v4927 = vmax.f32 %v4807, 0.0
    %v4928 = vmax.f32 %v4808, 0.0
    %v4929 = vmax.f32 %v4809, 0.0
    %v4930 = vmax.f32 %v4810, 0.0
    %v4931 = vmax.f32 %v4811, 0.0
    %v4932 = vmax.f32 %v4812, 0.0
    %v4933 = vmax.f32 %v4813, 0.0
    %v4934 = vmax.f32 %v4814, 0.0
    %v4935 = vmax.f32 %v4815, 0.0
    %v4936 = vmax.f32 %v4816, 0.0
    %v4937 = vmax.f32 %v4817, 0.0
    %v4938 = vmax.f32 %v4818, 0.0
    %v4939 = vmax.f32 %v4819, 0.0
    %v4940 = vmax.f32 %v4820, 0.0
    %v4941 = vmax.f32 %v4821, 0.0
    %v4942 = vmax.f32 %v4822, 0.0
    %v4943 = vmax.f32 %v4823, 0.0
    %v4944 = vmax.f32 %v4824, 0.0
    %v4945 = vmax.f32 %v4825, 0.0
    %v4946 = vmax.f32 %v4826, 0.0
    %v4947 = vmax.f32 %v4827, 0.0
    %v4948 = vmax.f32 %v4828, 0.0
    %v4949 = vmax.f32 %v4829, 0.0
    %v4950 = vmax.f32 %v4830, 0.0
    %v4951 = vmax.f32 %v4831, 0.0
    %v4952 = vmax.f32 %v4832, 0.0
    %v4953 = vmax.f32 %v4833, 0.0
    %v4954 = vmax.f32 %v4834, 0.0
    %v4955 = vmax.f32 %v4835, 0.0
    %v4956 = vmax.f32 %v4836, 0.0
    %v4957 = vmax.f32 %v4837, 0.0
    %v4958 = vmax.f32 %v4838, 0.0
    %v4959 = vmax.f32 %v4839, 0.0
    %v4960 = vmax.f32 %v4840, 0.0
    %v4961 = vmax.f32 %v4841, 0.0
    %v4962 = vmax.f32 %v4842, 0.0
    %v4963 = vmax.f32 %v4843, 0.0
    %v4964 = vmax.f32 %v4844, 0.0
    %v4965 = vmax.f32 %v4845, 0.0
    %v4966 = vmax.f32 %v4846, 0.0
    %v4967 = vmax.f32 %v4847, 0.0
    %v4968 = vmax.f32 %v4848, 0.0
    %v4969 = vmax.f32 %v4849, 0.0
    %v4970 = vmax.f32 %v4850, 0.0
    %v4971 = vmax.f32 %v4851, 0.0
    %v4972 = vmax.f32 %v4852, 0.0
    %v4973 = vmax.f32 %v4853, 0.0
    %v4974 = vmax.f32 %v4854, 0.0
    %v4975 = vmax.f32 %v4855, 0.0
    %v4976 = vmax.f32 %v4856, 0.0
    %v4977 = vmax.f32 %v4857, 0.0
    %v4978 = vmax.f32 %v4858, 0.0
    %vm4979 = vcmask 523264
    %v4980 = vsel %vm4979, %v4859, -inf
    %vm4981 = vcmask 517120
    %v4982 = vsel %vm4981, %v4860, -inf
    %v4983 = vmax.f32 %v4980, %v4982
    %v4984 = vrot.slane %v4983, 4
    %v4985 = vmax.f32 %v4983, %v4984
    %v4986 = vrot.slane %v4985, 2
    %v4987 = vmax.f32 %v4985, %v4986
    %v4988 = vrot.slane %v4987, 1
    %v4989 = vmax.f32 %v4987, %v4988
    %v4990 = vsel %vm4979, %v4874, -inf
    %v4991 = vsel %vm4981, %v4875, -inf
    %v4992 = vmax.f32 %v4990, %v4991
    %v4993 = vrot.slane %v4992, 4
    %v4994 = vmax.f32 %v4992, %v4993
    %v4995 = vrot.slane %v4994, 2
    %v4996 = vmax.f32 %v4994, %v4995
    %v4997 = vrot.slane %v4996, 1
    %v4998 = vmax.f32 %v4996, %v4997
    %v4999 = vsel %vm4979, %v4889, -inf
    %v5000 = vsel %vm4981, %v4890, -inf
    %v5001 = vmax.f32 %v4999, %v5000
    %v5002 = vrot.slane %v5001, 4
    %v5003 = vmax.f32 %v5001, %v5002
    %v5004 = vrot.slane %v5003, 2
    %v5005 = vmax.f32 %v5003, %v5004
    %v5006 = vrot.slane %v5005, 1
    %v5007 = vmax.f32 %v5005, %v5006
    %v5008 = vsel %vm4979, %v4904, -inf
    %v5009 = vsel %vm4981, %v4905, -inf
    %v5010 = vmax.f32 %v5008, %v5009
    %v5011 = vrot.slane %v5010, 4
    %v5012 = vmax.f32 %v5010, %v5011
    %v5013 = vrot.slane %v5012, 2
    %v5014 = vmax.f32 %v5012, %v5013
    %v5015 = vrot.slane %v5014, 1
    %v5016 = vmax.f32 %v5014, %v5015
    %v5017 = vsel %vm4979, %v4919, -inf
    %v5018 = vsel %vm4981, %v4920, -inf
    %v5019 = vmax.f32 %v5017, %v5018
    %v5020 = vrot.slane %v5019, 4
    %v5021 = vmax.f32 %v5019, %v5020
    %v5022 = vrot.slane %v5021, 2
    %v5023 = vmax.f32 %v5021, %v5022
    %v5024 = vrot.slane %v5023, 1
    %v5025 = vmax.f32 %v5023, %v5024
    %v5026 = vsel %vm4979, %v4934, -inf
    %v5027 = vsel %vm4981, %v4935, -inf
    %v5028 = vmax.f32 %v5026, %v5027
    %v5029 = vrot.slane %v5028, 4
    %v5030 = vmax.f32 %v5028, %v5029
    %v5031 = vrot.slane %v5030, 2
    %v5032 = vmax.f32 %v5030, %v5031
    %v5033 = vrot.slane %v5032, 1
    %v5034 = vmax.f32 %v5032, %v5033
    %v5035 = vsel %vm4979, %v4949, -inf
    %v5036 = vsel %vm4981, %v4950, -inf
    %v5037 = vmax.f32 %v5035, %v5036
    %v5038 = vrot.slane %v5037, 4
    %v5039 = vmax.f32 %v5037, %v5038
    %v5040 = vrot.slane %v5039, 2
    %v5041 = vmax.f32 %v5039, %v5040
    %v5042 = vrot.slane %v5041, 1
    %v5043 = vmax.f32 %v5041, %v5042
    %v5044 = vsel %vm4979, %v4964, -inf
    %v5045 = vsel %vm4981, %v4965, -inf
    %v5046 = vmax.f32 %v5044, %v5045
    %v5047 = vrot.slane %v5046, 4
    %v5048 = vmax.f32 %v5046, %v5047
    %v5049 = vrot.slane %v5048, 2
    %v5050 = vmax.f32 %v5048, %v5049
    %v5051 = vrot.slane %v5050, 1
    %v5052 = vmax.f32 %v5050, %v5051
    %v5053 = vld [vmem:[%s3] sm:$0xff]
    %v5054 = vld [vmem:[%s3 + $0x8] sm:$0xff]
    %v5055 = vld [vmem:[%s3 + $0x10] sm:$0xff]
    %v5056 = vld [vmem:[%s3 + $0x18] sm:$0xff]
    %v5057 = vld [vmem:[%s3 + $0x20] sm:$0xff]
    %v5058 = vld [vmem:[%s3 + $0x28] sm:$0xff]
    %v5059 = vld [vmem:[%s3 + $0x30] sm:$0xff]
    %v5060 = vld [vmem:[%s3 + $0x38] sm:$0xff]
    %vm5061 = vcmask 523266
    %v5062 = vsel %vm5061, %v4860, -inf
    %vm5063 = vcmask 519168
    %v5064 = vsel %vm5063, %v4861, -inf
    %v5065 = vmax.f32 %v5062, %v5064
    %v5066 = vrot.slane %v5065, 4
    %v5067 = vmax.f32 %v5065, %v5066
    %v5068 = vrot.slane %v5067, 2
    %v5069 = vmax.f32 %v5067, %v5068
    %v5070 = vrot.slane %v5069, 1
    %v5071 = vmax.f32 %v5069, %v5070
    %v5072 = vsel %vm5061, %v4875, -inf
    %v5073 = vsel %vm5063, %v4876, -inf
    %v5074 = vmax.f32 %v5072, %v5073
    %v5075 = vrot.slane %v5074, 4
    %v5076 = vmax.f32 %v5074, %v5075
    %v5077 = vrot.slane %v5076, 2
    %v5078 = vmax.f32 %v5076, %v5077
    %v5079 = vrot.slane %v5078, 1
    %v5080 = vmax.f32 %v5078, %v5079
    %v5081 = vsel %vm5061, %v4890, -inf
    %v5082 = vsel %vm5063, %v4891, -inf
    %v5083 = vmax.f32 %v5081, %v5082
    %v5084 = vrot.slane %v5083, 4
    %v5085 = vmax.f32 %v5083, %v5084
    %v5086 = vrot.slane %v5085, 2
    %v5087 = vmax.f32 %v5085, %v5086
    %v5088 = vrot.slane %v5087, 1
    %v5089 = vmax.f32 %v5087, %v5088
    %v5090 = vsel %vm5061, %v4905, -inf
    %v5091 = vsel %vm5063, %v4906, -inf
    %v5092 = vmax.f32 %v5090, %v5091
    %v5093 = vrot.slane %v5092, 4
    %v5094 = vmax.f32 %v5092, %v5093
    %v5095 = vrot.slane %v5094, 2
    %v5096 = vmax.f32 %v5094, %v5095
    %v5097 = vrot.slane %v5096, 1
    %v5098 = vmax.f32 %v5096, %v5097
    %v5099 = vsel %vm5061, %v4920, -inf
    %v5100 = vsel %vm5063, %v4921, -inf
    %v5101 = vmax.f32 %v5099, %v5100
    %v5102 = vrot.slane %v5101, 4
    %v5103 = vmax.f32 %v5101, %v5102
    %v5104 = vrot.slane %v5103, 2
    %v5105 = vmax.f32 %v5103, %v5104
    %v5106 = vrot.slane %v5105, 1
    %v5107 = vmax.f32 %v5105, %v5106
    %v5108 = vsel %vm5061, %v4935, -inf
    %v5109 = vsel %vm5063, %v4936, -inf
    %v5110 = vmax.f32 %v5108, %v5109
    %v5111 = vrot.slane %v5110, 4
    %v5112 = vmax.f32 %v5110, %v5111
    %v5113 = vrot.slane %v5112, 2
    %v5114 = vmax.f32 %v5112, %v5113
    %v5115 = vrot.slane %v5114, 1
    %v5116 = vmax.f32 %v5114, %v5115
    %v5117 = vsel %vm5061, %v4950, -inf
    %v5118 = vsel %vm5063, %v4951, -inf
    %v5119 = vmax.f32 %v5117, %v5118
    %v5120 = vrot.slane %v5119, 4
    %v5121 = vmax.f32 %v5119, %v5120
    %v5122 = vrot.slane %v5121, 2
    %v5123 = vmax.f32 %v5121, %v5122
    %v5124 = vrot.slane %v5123, 1
    %v5125 = vmax.f32 %v5123, %v5124
    %v5126 = vsel %vm5061, %v4965, -inf
    %v5127 = vsel %vm5063, %v4966, -inf
    %v5128 = vmax.f32 %v5126, %v5127
    %v5129 = vrot.slane %v5128, 4
    %v5130 = vmax.f32 %v5128, %v5129
    %v5131 = vrot.slane %v5130, 2
    %v5132 = vmax.f32 %v5130, %v5131
    %v5133 = vrot.slane %v5132, 1
    %v5134 = vmax.f32 %v5132, %v5133
    %v5135 = vld [vmem:[%s3 + $0x40] sm:$0xff]
    %v5136 = vld [vmem:[%s3 + $0x48] sm:$0xff]
    %v5137 = vld [vmem:[%s3 + $0x50] sm:$0xff]
    %v5138 = vld [vmem:[%s3 + $0x58] sm:$0xff]
    %v5139 = vld [vmem:[%s3 + $0x60] sm:$0xff]
    %v5140 = vld [vmem:[%s3 + $0x68] sm:$0xff]
    %v5141 = vld [vmem:[%s3 + $0x70] sm:$0xff]
    %v5142 = vld [vmem:[%s3 + $0x78] sm:$0xff]
    %vm5151 = vcmask 1041409
    %v5152 = vsel %vm5151, %v5080, %v5071
    %vm5153 = vcmask 1042434
    %v5154 = vsel %vm5153, %v5089, %v5152
    %vm5155 = vcmask 1043459
    %v5156 = vsel %vm5155, %v5098, %v5154
    %vm5157 = vcmask 1044484
    %v5158 = vsel %vm5157, %v5107, %v5156
    %vm5159 = vcmask 1045509
    %v5160 = vsel %vm5159, %v5116, %v5158
    %vm5161 = vcmask 1046534
    %v5162 = vsel %vm5161, %v5125, %v5160
    %vm5163 = vcmask 1047559
    %v5164 = vsel %vm5163, %v5134, %v5162
    %v5165 = vsel %vm4979, %v5164, 0
    %5167 = vmatprep.subr.mxu0 0.0
    %5168 = vmatpush1.msra.mxu0 %v5135
    %5169 = vmatprep.subr.mxu0 0.0
    %5170 = vmatpush1.msra.mxu0 %v5136
    %5171 = vmatprep.subr.mxu0 0.0
    %5172 = vmatpush1.msra.mxu0 %v5137
    %5173 = vmatprep.subr.mxu0 0.0
    %5174 = vmatpush1.msra.mxu0 %v5138
    %5175 = vmatprep.subr.mxu0 0.0
    %5176 = vmatpush1.msra.mxu0 %v5139
    %5177 = vmatprep.subr.mxu0 0.0
    %5178 = vmatpush1.msra.mxu0 %v5140
    %5179 = vmatprep.subr.mxu0 0.0
    %5180 = vmatpush1.msra.mxu0 %v5141
    %5181 = vmatprep.subr.mxu0 0.0
    %5182 = vmatpush1.msra.mxu0 %v5142
    %5183 = vmatprep.subr.mxu0 0.0
    %5184 = vmatpush1.msra.mxu0 0.0
    %5185 = vmatprep.subr.mxu0 0.0
    %5186 = vmatpush1.msra.mxu0 0.0
    %5187 = vmatprep.subr.mxu0 0.0
    %5188 = vmatpush1.msra.mxu0 0.0
    %5189 = vmatprep.subr.mxu0 0.0
    %5190 = vmatpush1.msra.mxu0 0.0
    %5191 = vmatprep.subr.mxu0 0.0
    %5192 = vmatpush1.msra.mxu0 0.0
    %5193 = vmatprep.subr.mxu0 0.0
    %5194 = vmatpush1.msra.mxu0 0.0
    %5195 = vmatprep.subr.mxu0 0.0
    %5196 = vmatpush1.msra.mxu0 0.0
    %5197 = vmatprep.subr.mxu0 0.0
    %5198 = vmatpush1.msra.mxu0 0.0
    %5199 = vmatprep.subr.mxu0 0.0
    %5200 = vmatpush1.msra.mxu0 0.0
    %5201 = vmatprep.subr.mxu0 0.0
    %5202 = vmatpush1.msra.mxu0 0.0
    %5203 = vmatprep.subr.mxu0 0.0
    %5204 = vmatpush1.msra.mxu0 0.0
    %5205 = vmatprep.subr.mxu0 0.0
    %5206 = vmatpush1.msra.mxu0 0.0
    %5207 = vmatprep.subr.mxu0 0.0
    %5208 = vmatpush1.msra.mxu0 0.0
    %5209 = vmatprep.subr.mxu0 0.0
    %5210 = vmatpush1.msra.mxu0 0.0
    %5211 = vmatprep.subr.mxu0 0.0
    %5212 = vmatpush1.msra.mxu0 0.0
    %5213 = vmatprep.subr.mxu0 0.0
    %5214 = vmatpush1.msra.mxu0 0.0
    %5215 = vmatprep.subr.mxu0 0.0
    %5216 = vmatpush1.msra.mxu0 0.0
    %5217 = vmatprep.subr.mxu0 0.0
    %5218 = vmatpush1.msra.mxu0 0.0
    %5219 = vmatprep.subr.mxu0 0.0
    %5220 = vmatpush1.msra.mxu0 0.0
    %5221 = vmatprep.subr.mxu0 0.0
    %5222 = vmatpush1.msra.mxu0 0.0
    %5223 = vmatprep.subr.mxu0 0.0
    %5224 = vmatpush1.msra.mxu0 0.0
    %5225 = vmatprep.subr.mxu0 0.0
    %5226 = vmatpush1.msra.mxu0 0.0
    %5227 = vmatprep.subr.mxu0 0.0
    %5228 = vmatpush1.msra.mxu0 0.0
    %5229 = vmatprep.subr.mxu0 0.0
    %5230 = vmatpush1.msra.mxu0 0.0
    %5231 = vmatprep.mubr.f32.mxu0 0.0
    %5232 = vmatmul.mubr.f32.gmra.mrb[0].mxu0 %v5165
    %v5233 = vpop.f32.mrb[0].mxu0
    %v5234 = vadd.f32 0.0, %v5233
    %v5235 = vpop.f32.mrb[0].mxu0
    %5236 = vdwg.mxu0
    %v5245 = vsel %vm5151, %v4998, %v4989
    %v5246 = vsel %vm5153, %v5007, %v5245
    %v5247 = vsel %vm5155, %v5016, %v5246
    %v5248 = vsel %vm5157, %v5025, %v5247
    %v5249 = vsel %vm5159, %v5034, %v5248
    %v5250 = vsel %vm5161, %v5043, %v5249
    %v5251 = vsel %vm5163, %v5052, %v5250
    %v5252 = vsel %vm4979, %v5251, 0
    %5254 = vmatprep.subr.mxu0 0.0
    %5255 = vmatpush1.msra.mxu0 %v5053
    %5256 = vmatprep.subr.mxu0 0.0
    %5257 = vmatpush1.msra.mxu0 %v5054
    %5258 = vmatprep.subr.mxu0 0.0
    %5259 = vmatpush1.msra.mxu0 %v5055
    %5260 = vmatprep.subr.mxu0 0.0
    %5261 = vmatpush1.msra.mxu0 %v5056
    %5262 = vmatprep.subr.mxu0 0.0
    %5263 = vmatpush1.msra.mxu0 %v5057
    %5264 = vmatprep.subr.mxu0 0.0
    %5265 = vmatpush1.msra.mxu0 %v5058
    %5266 = vmatprep.subr.mxu0 0.0
    %5267 = vmatpush1.msra.mxu0 %v5059
    %5268 = vmatprep.subr.mxu0 0.0
    %5269 = vmatpush1.msra.mxu0 %v5060
    %5270 = vmatprep.subr.mxu0 0.0
    %5271 = vmatpush1.msra.mxu0 0.0
    %5272 = vmatprep.subr.mxu0 0.0
    %5273 = vmatpush1.msra.mxu0 0.0
    %5274 = vmatprep.subr.mxu0 0.0
    %5275 = vmatpush1.msra.mxu0 0.0
    %5276 = vmatprep.subr.mxu0 0.0
    %5277 = vmatpush1.msra.mxu0 0.0
    %5278 = vmatprep.subr.mxu0 0.0
    %5279 = vmatpush1.msra.mxu0 0.0
    %5280 = vmatprep.subr.mxu0 0.0
    %5281 = vmatpush1.msra.mxu0 0.0
    %5282 = vmatprep.subr.mxu0 0.0
    %5283 = vmatpush1.msra.mxu0 0.0
    %5284 = vmatprep.subr.mxu0 0.0
    %5285 = vmatpush1.msra.mxu0 0.0
    %5286 = vmatprep.subr.mxu0 0.0
    %5287 = vmatpush1.msra.mxu0 0.0
    %5288 = vmatprep.subr.mxu0 0.0
    %5289 = vmatpush1.msra.mxu0 0.0
    %5290 = vmatprep.subr.mxu0 0.0
    %5291 = vmatpush1.msra.mxu0 0.0
    %5292 = vmatprep.subr.mxu0 0.0
    %5293 = vmatpush1.msra.mxu0 0.0
    %5294 = vmatprep.subr.mxu0 0.0
    %5295 = vmatpush1.msra.mxu0 0.0
    %5296 = vmatprep.subr.mxu0 0.0
    %5297 = vmatpush1.msra.mxu0 0.0
    %5298 = vmatprep.subr.mxu0 0.0
    %5299 = vmatpush1.msra.mxu0 0.0
    %5300 = vmatprep.subr.mxu0 0.0
    %5301 = vmatpush1.msra.mxu0 0.0
    %5302 = vmatprep.subr.mxu0 0.0
    %5303 = vmatpush1.msra.mxu0 0.0
    %5304 = vmatprep.subr.mxu0 0.0
    %5305 = vmatpush1.msra.mxu0 0.0
    %5306 = vmatprep.subr.mxu0 0.0
    %5307 = vmatpush1.msra.mxu0 0.0
    %5308 = vmatprep.subr.mxu0 0.0
    %5309 = vmatpush1.msra.mxu0 0.0
    %5310 = vmatprep.subr.mxu0 0.0
    %5311 = vmatpush1.msra.mxu0 0.0
    %5312 = vmatprep.subr.mxu0 0.0
    %5313 = vmatpush1.msra.mxu0 0.0
    %5314 = vmatprep.subr.mxu0 0.0
    %5315 = vmatpush1.msra.mxu0 0.0
    %5316 = vmatprep.subr.mxu0 0.0
    %5317 = vmatpush1.msra.mxu0 0.0
    %5318 = vmatprep.mubr.f32.mxu0 0.0
    %5319 = vmatmul.mubr.f32.gmra.mrb[0].mxu0 %v5252
    %v5320 = vpop.f32.mrb[0].mxu0
    %v5321 = vadd.f32 %v5234, %v5320
    %v5322 = vpop.f32.mrb[0].mxu0
    %5323 = vdwg.mxu0
    %vm5324 = vcmask 523268
    %v5325 = vsel %vm5324, %v4861, -inf
    %vm5326 = vcmask 521216
    %v5327 = vsel %vm5326, %v4862, -inf
    %v5328 = vmax.f32 %v5325, %v5327
    %v5329 = vrot.slane %v5328, 4
    %v5330 = vmax.f32 %v5328, %v5329
    %v5331 = vrot.slane %v5330, 2
    %v5332 = vmax.f32 %v5330, %v5331
    %v5333 = vrot.slane %v5332, 1
    %v5334 = vmax.f32 %v5332, %v5333
    %v5335 = vsel %vm5324, %v4876, -inf
    %v5336 = vsel %vm5326, %v4877, -inf
    %v5337 = vmax.f32 %v5335, %v5336
    %v5338 = vrot.slane %v5337, 4
    %v5339 = vmax.f32 %v5337, %v5338
    %v5340 = vrot.slane %v5339, 2
    %v5341 = vmax.f32 %v5339, %v5340
    %v5342 = vrot.slane %v5341, 1
    %v5343 = vmax.f32 %v5341, %v5342
    %v5344 = vsel %vm5324, %v4891, -inf
    %v5345 = vsel %vm5326, %v4892, -inf
    %v5346 = vmax.f32 %v5344, %v5345
    %v5347 = vrot.slane %v5346, 4
    %v5348 = vmax.f32 %v5346, %v5347
    %v5349 = vrot.slane %v5348, 2
    %v5350 = vmax.f32 %v5348, %v5349
    %v5351 = vrot.slane %v5350, 1
    %v5352 = vmax.f32 %v5350, %v5351
    %v5353 = vsel %vm5324, %v4906, -inf
    %v5354 = vsel %vm5326, %v4907, -inf
    %v5355 = vmax.f32 %v5353, %v5354
    %v5356 = vrot.slane %v5355, 4
    %v5357 = vmax.f32 %v5355, %v5356
    %v5358 = vrot.slane %v5357, 2
    %v5359 = vmax.f32 %v5357, %v5358
    %v5360 = vrot.slane %v5359, 1
    %v5361 = vmax.f32 %v5359, %v5360
    %v5362 = vsel %vm5324, %v4921, -inf
    %v5363 = vsel %vm5326, %v4922, -inf
    %v5364 = vmax.f32 %v5362, %v5363
    %v5365 = vrot.slane %v5364, 4
    %v5366 = vmax.f32 %v5364, %v5365
    %v5367 = vrot.slane %v5366, 2
    %v5368 = vmax.f32 %v5366, %v5367
    %v5369 = vrot.slane %v5368, 1
    %v5370 = vmax.f32 %v5368, %v5369
    %v5371 = vsel %vm5324, %v4936, -inf
    %v5372 = vsel %vm5326, %v4937, -inf
    %v5373 = vmax.f32 %v5371, %v5372
    %v5374 = vrot.slane %v5373, 4
    %v5375 = vmax.f32 %v5373, %v5374
    %v5376 = vrot.slane %v5375, 2
    %v5377 = vmax.f32 %v5375, %v5376
    %v5378 = vrot.slane %v5377, 1
    %v5379 = vmax.f32 %v5377, %v5378
    %v5380 = vsel %vm5324, %v4951, -inf
    %v5381 = vsel %vm5326, %v4952, -inf
    %v5382 = vmax.f32 %v5380, %v5381
    %v5383 = vrot.slane %v5382, 4
    %v5384 = vmax.f32 %v5382, %v5383
    %v5385 = vrot.slane %v5384, 2
    %v5386 = vmax.f32 %v5384, %v5385
    %v5387 = vrot.slane %v5386, 1
    %v5388 = vmax.f32 %v5386, %v5387
    %v5389 = vsel %vm5324, %v4966, -inf
    %v5390 = vsel %vm5326, %v4967, -inf
    %v5391 = vmax.f32 %v5389, %v5390
    %v5392 = vrot.slane %v5391, 4
    %v5393 = vmax.f32 %v5391, %v5392
    %v5394 = vrot.slane %v5393, 2
    %v5395 = vmax.f32 %v5393, %v5394
    %v5396 = vrot.slane %v5395, 1
    %v5397 = vmax.f32 %v5395, %v5396
    %v5398 = vld [vmem:[%s3 + $0x80] sm:$0xff]
    %v5399 = vld [vmem:[%s3 + $0x88] sm:$0xff]
    %v5400 = vld [vmem:[%s3 + $0x90] sm:$0xff]
    %v5401 = vld [vmem:[%s3 + $0x98] sm:$0xff]
    %v5402 = vld [vmem:[%s3 + $0xa0] sm:$0xff]
    %v5403 = vld [vmem:[%s3 + $0xa8] sm:$0xff]
    %v5404 = vld [vmem:[%s3 + $0xb0] sm:$0xff]
    %v5405 = vld [vmem:[%s3 + $0xb8] sm:$0xff]
    %v5414 = vsel %vm5151, %v5343, %v5334
    %v5415 = vsel %vm5153, %v5352, %v5414
    %v5416 = vsel %vm5155, %v5361, %v5415
    %v5417 = vsel %vm5157, %v5370, %v5416
    %v5418 = vsel %vm5159, %v5379, %v5417
    %v5419 = vsel %vm5161, %v5388, %v5418
    %v5420 = vsel %vm5163, %v5397, %v5419
    %v5421 = vsel %vm4979, %v5420, 0
    %5423 = vmatprep.subr.mxu0 0.0
    %5424 = vmatpush1.msra.mxu0 %v5398
    %5425 = vmatprep.subr.mxu0 0.0
    %5426 = vmatpush1.msra.mxu0 %v5399
    %5427 = vmatprep.subr.mxu0 0.0
    %5428 = vmatpush1.msra.mxu0 %v5400
    %5429 = vmatprep.subr.mxu0 0.0
    %5430 = vmatpush1.msra.mxu0 %v5401
    %5431 = vmatprep.subr.mxu0 0.0
    %5432 = vmatpush1.msra.mxu0 %v5402
    %5433 = vmatprep.subr.mxu0 0.0
    %5434 = vmatpush1.msra.mxu0 %v5403
    %5435 = vmatprep.subr.mxu0 0.0
    %5436 = vmatpush1.msra.mxu0 %v5404
    %5437 = vmatprep.subr.mxu0 0.0
    %5438 = vmatpush1.msra.mxu0 %v5405
    %5439 = vmatprep.subr.mxu0 0.0
    %5440 = vmatpush1.msra.mxu0 0.0
    %5441 = vmatprep.subr.mxu0 0.0
    %5442 = vmatpush1.msra.mxu0 0.0
    %5443 = vmatprep.subr.mxu0 0.0
    %5444 = vmatpush1.msra.mxu0 0.0
    %5445 = vmatprep.subr.mxu0 0.0
    %5446 = vmatpush1.msra.mxu0 0.0
    %5447 = vmatprep.subr.mxu0 0.0
    %5448 = vmatpush1.msra.mxu0 0.0
    %5449 = vmatprep.subr.mxu0 0.0
    %5450 = vmatpush1.msra.mxu0 0.0
    %5451 = vmatprep.subr.mxu0 0.0
    %5452 = vmatpush1.msra.mxu0 0.0
    %5453 = vmatprep.subr.mxu0 0.0
    %5454 = vmatpush1.msra.mxu0 0.0
    %5455 = vmatprep.subr.mxu0 0.0
    %5456 = vmatpush1.msra.mxu0 0.0
    %5457 = vmatprep.subr.mxu0 0.0
    %5458 = vmatpush1.msra.mxu0 0.0
    %5459 = vmatprep.subr.mxu0 0.0
    %5460 = vmatpush1.msra.mxu0 0.0
    %5461 = vmatprep.subr.mxu0 0.0
    %5462 = vmatpush1.msra.mxu0 0.0
    %5463 = vmatprep.subr.mxu0 0.0
    %5464 = vmatpush1.msra.mxu0 0.0
    %5465 = vmatprep.subr.mxu0 0.0
    %5466 = vmatpush1.msra.mxu0 0.0
    %5467 = vmatprep.subr.mxu0 0.0
    %5468 = vmatpush1.msra.mxu0 0.0
    %5469 = vmatprep.subr.mxu0 0.0
    %5470 = vmatpush1.msra.mxu0 0.0
    %5471 = vmatprep.subr.mxu0 0.0
    %5472 = vmatpush1.msra.mxu0 0.0
    %5473 = vmatprep.subr.mxu0 0.0
    %5474 = vmatpush1.msra.mxu0 0.0
    %5475 = vmatprep.subr.mxu0 0.0
    %5476 = vmatpush1.msra.mxu0 0.0
    %5477 = vmatprep.subr.mxu0 0.0
    %5478 = vmatpush1.msra.mxu0 0.0
    %5479 = vmatprep.subr.mxu0 0.0
    %5480 = vmatpush1.msra.mxu0 0.0
    %5481 = vmatprep.subr.mxu0 0.0
    %5482 = vmatpush1.msra.mxu0 0.0
    %5483 = vmatprep.subr.mxu0 0.0
    %5484 = vmatpush1.msra.mxu0 0.0
    %5485 = vmatprep.subr.mxu0 0.0
    %5486 = vmatpush1.msra.mxu0 0.0
    %5487 = vmatprep.mubr.f32.mxu0 0.0
    %5488 = vmatmul.mubr.f32.gmra.mrb[0].mxu0 %v5421
    %v5489 = vpop.f32.mrb[0].mxu0
    %v5490 = vadd.f32 0.0, %v5489
    %v5491 = vpop.f32.mrb[0].mxu0
    %5492 = vdwg.mxu0
    %v5493 = vadd.f32 %v5321, %v5490
    %vm5494 = vcmask 523270
    %v5495 = vsel %vm5494, %v4862, -inf
    %v5496 = vsel %vm4979, %v4863, -inf
    %v5497 = vmax.f32 %v5495, %v5496
    %v5498 = vrot.slane %v5497, 4
    %v5499 = vmax.f32 %v5497, %v5498
    %v5500 = vrot.slane %v5499, 2
    %v5501 = vmax.f32 %v5499, %v5500
    %v5502 = vrot.slane %v5501, 1
    %v5503 = vmax.f32 %v5501, %v5502
    %v5504 = vsel %vm5494, %v4877, -inf
    %v5505 = vsel %vm4979, %v4878, -inf
    %v5506 = vmax.f32 %v5504, %v5505
    %v5507 = vrot.slane %v5506, 4
    %v5508 = vmax.f32 %v5506, %v5507
    %v5509 = vrot.slane %v5508, 2
    %v5510 = vmax.f32 %v5508, %v5509
    %v5511 = vrot.slane %v5510, 1
    %v5512 = vmax.f32 %v5510, %v5511
    %v5513 = vsel %vm5494, %v4892, -inf
    %v5514 = vsel %vm4979, %v4893, -inf
    %v5515 = vmax.f32 %v5513, %v5514
    %v5516 = vrot.slane %v5515, 4
    %v5517 = vmax.f32 %v5515, %v5516
    %v5518 = vrot.slane %v5517, 2
    %v5519 = vmax.f32 %v5517, %v5518
    %v5520 = vrot.slane %v5519, 1
    %v5521 = vmax.f32 %v5519, %v5520
    %v5522 = vsel %vm5494, %v4907, -inf
    %v5523 = vsel %vm4979, %v4908, -inf
    %v5524 = vmax.f32 %v5522, %v5523
    %v5525 = vrot.slane %v5524, 4
    %v5526 = vmax.f32 %v5524, %v5525
    %v5527 = vrot.slane %v5526, 2
    %v5528 = vmax.f32 %v5526, %v5527
    %v5529 = vrot.slane %v5528, 1
    %v5530 = vmax.f32 %v5528, %v5529
    %v5531 = vsel %vm5494, %v4922, -inf
    %v5532 = vsel %vm4979, %v4923, -inf
    %v5533 = vmax.f32 %v5531, %v5532
    %v5534 = vrot.slane %v5533, 4
    %v5535 = vmax.f32 %v5533, %v5534
    %v5536 = vrot.slane %v5535, 2
    %v5537 = vmax.f32 %v5535, %v5536
    %v5538 = vrot.slane %v5537, 1
    %v5539 = vmax.f32 %v5537, %v5538
    %v5540 = vsel %vm5494, %v4937, -inf
    %v5541 = vsel %vm4979, %v4938, -inf
    %v5542 = vmax.f32 %v5540, %v5541
    %v5543 = vrot.slane %v5542, 4
    %v5544 = vmax.f32 %v5542, %v5543
    %v5545 = vrot.slane %v5544, 2
    %v5546 = vmax.f32 %v5544, %v5545
    %v5547 = vrot.slane %v5546, 1
    %v5548 = vmax.f32 %v5546, %v5547
    %v5549 = vsel %vm5494, %v4952, -inf
    %v5550 = vsel %vm4979, %v4953, -inf
    %v5551 = vmax.f32 %v5549, %v5550
    %v5552 = vrot.slane %v5551, 4
    %v5553 = vmax.f32 %v5551, %v5552
    %v5554 = vrot.slane %v5553, 2
    %v5555 = vmax.f32 %v5553, %v5554
    %v5556 = vrot.slane %v5555, 1
    %v5557 = vmax.f32 %v5555, %v5556
    %v5558 = vsel %vm5494, %v4967, -inf
    %v5559 = vsel %vm4979, %v4968, -inf
    %v5560 = vmax.f32 %v5558, %v5559
    %v5561 = vrot.slane %v5560, 4
    %v5562 = vmax.f32 %v5560, %v5561
    %v5563 = vrot.slane %v5562, 2
    %v5564 = vmax.f32 %v5562, %v5563
    %v5565 = vrot.slane %v5564, 1
    %v5566 = vmax.f32 %v5564, %v5565
    %v5567 = vld [vmem:[%s3 + $0xc0] sm:$0xff]
    %v5568 = vld [vmem:[%s3 + $0xc8] sm:$0xff]
    %v5569 = vld [vmem:[%s3 + $0xd0] sm:$0xff]
    %v5570 = vld [vmem:[%s3 + $0xd8] sm:$0xff]
    %v5571 = vld [vmem:[%s3 + $0xe0] sm:$0xff]
    %v5572 = vld [vmem:[%s3 + $0xe8] sm:$0xff]
    %v5573 = vld [vmem:[%s3 + $0xf0] sm:$0xff]
    %v5574 = vld [vmem:[%s3 + $0xf8] sm:$0xff]
    %v5583 = vsel %vm5151, %v5512, %v5503
    %v5584 = vsel %vm5153, %v5521, %v5583
    %v5585 = vsel %vm5155, %v5530, %v5584
    %v5586 = vsel %vm5157, %v5539, %v5585
    %v5587 = vsel %vm5159, %v5548, %v5586
    %v5588 = vsel %vm5161, %v5557, %v5587
    %v5589 = vsel %vm5163, %v5566, %v5588
    %v5590 = vsel %vm4979, %v5589, 0
    %5592 = vmatprep.subr.mxu0 0.0
    %5593 = vmatpush1.msra.mxu0 %v5567
    %5594 = vmatprep.subr.mxu0 0.0
    %5595 = vmatpush1.msra.mxu0 %v5568
    %5596 = vmatprep.subr.mxu0 0.0
    %5597 = vmatpush1.msra.mxu0 %v5569
    %5598 = vmatprep.subr.mxu0 0.0
    %5599 = vmatpush1.msra.mxu0 %v5570
    %5600 = vmatprep.subr.mxu0 0.0
    %5601 = vmatpush1.msra.mxu0 %v5571
    %5602 = vmatprep.subr.mxu0 0.0
    %5603 = vmatpush1.msra.mxu0 %v5572
    %5604 = vmatprep.subr.mxu0 0.0
    %5605 = vmatpush1.msra.mxu0 %v5573
    %5606 = vmatprep.subr.mxu0 0.0
    %5607 = vmatpush1.msra.mxu0 %v5574
    %5608 = vmatprep.subr.mxu0 0.0
    %5609 = vmatpush1.msra.mxu0 0.0
    %5610 = vmatprep.subr.mxu0 0.0
    %5611 = vmatpush1.msra.mxu0 0.0
    %5612 = vmatprep.subr.mxu0 0.0
    %5613 = vmatpush1.msra.mxu0 0.0
    %5614 = vmatprep.subr.mxu0 0.0
    %5615 = vmatpush1.msra.mxu0 0.0
    %5616 = vmatprep.subr.mxu0 0.0
    %5617 = vmatpush1.msra.mxu0 0.0
    %5618 = vmatprep.subr.mxu0 0.0
    %5619 = vmatpush1.msra.mxu0 0.0
    %5620 = vmatprep.subr.mxu0 0.0
    %5621 = vmatpush1.msra.mxu0 0.0
    %5622 = vmatprep.subr.mxu0 0.0
    %5623 = vmatpush1.msra.mxu0 0.0
    %5624 = vmatprep.subr.mxu0 0.0
    %5625 = vmatpush1.msra.mxu0 0.0
    %5626 = vmatprep.subr.mxu0 0.0
    %5627 = vmatpush1.msra.mxu0 0.0
    %5628 = vmatprep.subr.mxu0 0.0
    %5629 = vmatpush1.msra.mxu0 0.0
    %5630 = vmatprep.subr.mxu0 0.0
    %5631 = vmatpush1.msra.mxu0 0.0
    %5632 = vmatprep.subr.mxu0 0.0
    %5633 = vmatpush1.msra.mxu0 0.0
    %5634 = vmatprep.subr.mxu0 0.0
    %5635 = vmatpush1.msra.mxu0 0.0
    %5636 = vmatprep.subr.mxu0 0.0
    %5637 = vmatpush1.msra.mxu0 0.0
    %5638 = vmatprep.subr.mxu0 0.0
    %5639 = vmatpush1.msra.mxu0 0.0
    %5640 = vmatprep.subr.mxu0 0.0
    %5641 = vmatpush1.msra.mxu0 0.0
    %5642 = vmatprep.subr.mxu0 0.0
    %5643 = vmatpush1.msra.mxu0 0.0
    %5644 = vmatprep.subr.mxu0 0.0
    %5645 = vmatpush1.msra.mxu0 0.0
    %5646 = vmatprep.subr.mxu0 0.0
    %5647 = vmatpush1.msra.mxu0 0.0
    %5648 = vmatprep.subr.mxu0 0.0
    %5649 = vmatpush1.msra.mxu0 0.0
    %5650 = vmatprep.subr.mxu0 0.0
    %5651 = vmatpush1.msra.mxu0 0.0
    %5652 = vmatprep.subr.mxu0 0.0
    %5653 = vmatpush1.msra.mxu0 0.0
    %5654 = vmatprep.subr.mxu0 0.0
    %5655 = vmatpush1.msra.mxu0 0.0
    %5656 = vmatprep.mubr.f32.mxu0 0.0
    %5657 = vmatmul.mubr.f32.gmra.mrb[0].mxu0 %v5590
    %v5658 = vpop.f32.mrb[0].mxu0
    %v5659 = vadd.f32 0.0, %v5658
    %v5660 = vpop.f32.mrb[0].mxu0
    %5661 = vdwg.mxu0
    %v5662 = vadd.f32 %v5493, %v5659
    %v5663 = vsel %vm4979, %v4864, -inf
    %v5664 = vsel %vm4981, %v4865, -inf
    %v5665 = vmax.f32 %v5663, %v5664
    %v5666 = vrot.slane %v5665, 4
    %v5667 = vmax.f32 %v5665, %v5666
    %v5668 = vrot.slane %v5667, 2
    %v5669 = vmax.f32 %v5667, %v5668
    %v5670 = vrot.slane %v5669, 1
    %v5671 = vmax.f32 %v5669, %v5670
    %v5672 = vsel %vm4979, %v4879, -inf
    %v5673 = vsel %vm4981, %v4880, -inf
    %v5674 = vmax.f32 %v5672, %v5673
    %v5675 = vrot.slane %v5674, 4
    %v5676 = vmax.f32 %v5674, %v5675
    %v5677 = vrot.slane %v5676, 2
    %v5678 = vmax.f32 %v5676, %v5677
    %v5679 = vrot.slane %v5678, 1
    %v5680 = vmax.f32 %v5678, %v5679
    %v5681 = vsel %vm4979, %v4894, -inf
    %v5682 = vsel %vm4981, %v4895, -inf
    %v5683 = vmax.f32 %v5681, %v5682
    %v5684 = vrot.slane %v5683, 4
    %v5685 = vmax.f32 %v5683, %v5684
    %v5686 = vrot.slane %v5685, 2
    %v5687 = vmax.f32 %v5685, %v5686
    %v5688 = vrot.slane %v5687, 1
    %v5689 = vmax.f32 %v5687, %v5688
    %v5690 = vsel %vm4979, %v4909, -inf
    %v5691 = vsel %vm4981, %v4910, -inf
    %v5692 = vmax.f32 %v5690, %v5691
    %v5693 = vrot.slane %v5692, 4
    %v5694 = vmax.f32 %v5692, %v5693
    %v5695 = vrot.slane %v5694, 2
    %v5696 = vmax.f32 %v5694, %v5695
    %v5697 = vrot.slane %v5696, 1
    %v5698 = vmax.f32 %v5696, %v5697
    %v5699 = vsel %vm4979, %v4924, -inf
    %v5700 = vsel %vm4981, %v4925, -inf
    %v5701 = vmax.f32 %v5699, %v5700
    %v5702 = vrot.slane %v5701, 4
    %v5703 = vmax.f32 %v5701, %v5702
    %v5704 = vrot.slane %v5703, 2
    %v5705 = vmax.f32 %v5703, %v5704
    %v5706 = vrot.slane %v5705, 1
    %v5707 = vmax.f32 %v5705, %v5706
    %v5708 = vsel %vm4979, %v4939, -inf
    %v5709 = vsel %vm4981, %v4940, -inf
    %v5710 = vmax.f32 %v5708, %v5709
    %v5711 = vrot.slane %v5710, 4
    %v5712 = vmax.f32 %v5710, %v5711
    %v5713 = vrot.slane %v5712, 2
    %v5714 = vmax.f32 %v5712, %v5713
    %v5715 = vrot.slane %v5714, 1
    %v5716 = vmax.f32 %v5714, %v5715
    %v5717 = vsel %vm4979, %v4954, -inf
    %v5718 = vsel %vm4981, %v4955, -inf
    %v5719 = vmax.f32 %v5717, %v5718
    %v5720 = vrot.slane %v5719, 4
    %v5721 = vmax.f32 %v5719, %v5720
    %v5722 = vrot.slane %v5721, 2
    %v5723 = vmax.f32 %v5721, %v5722
    %v5724 = vrot.slane %v5723, 1
    %v5725 = vmax.f32 %v5723, %v5724
    %v5726 = vsel %vm4979, %v4969, -inf
    %v5727 = vsel %vm4981, %v4970, -inf
    %v5728 = vmax.f32 %v5726, %v5727
    %v5729 = vrot.slane %v5728, 4
    %v5730 = vmax.f32 %v5728, %v5729
    %v5731 = vrot.slane %v5730, 2
    %v5732 = vmax.f32 %v5730, %v5731
    %v5733 = vrot.slane %v5732, 1
    %v5734 = vmax.f32 %v5732, %v5733
    %v5735 = vld [vmem:[%s3 + $0x100] sm:$0xff]
    %v5736 = vld [vmem:[%s3 + $0x108] sm:$0xff]
    %v5737 = vld [vmem:[%s3 + $0x110] sm:$0xff]
    %v5738 = vld [vmem:[%s3 + $0x118] sm:$0xff]
    %v5739 = vld [vmem:[%s3 + $0x120] sm:$0xff]
    %v5740 = vld [vmem:[%s3 + $0x128] sm:$0xff]
    %v5741 = vld [vmem:[%s3 + $0x130] sm:$0xff]
    %v5742 = vld [vmem:[%s3 + $0x138] sm:$0xff]
    %v5751 = vsel %vm5151, %v5680, %v5671
    %v5752 = vsel %vm5153, %v5689, %v5751
    %v5753 = vsel %vm5155, %v5698, %v5752
    %v5754 = vsel %vm5157, %v5707, %v5753
    %v5755 = vsel %vm5159, %v5716, %v5754
    %v5756 = vsel %vm5161, %v5725, %v5755
    %v5757 = vsel %vm5163, %v5734, %v5756
    %v5758 = vsel %vm4979, %v5757, 0
    %5760 = vmatprep.subr.mxu0 0.0
    %5761 = vmatpush1.msra.mxu0 %v5735
    %5762 = vmatprep.subr.mxu0 0.0
    %5763 = vmatpush1.msra.mxu0 %v5736
    %5764 = vmatprep.subr.mxu0 0.0
    %5765 = vmatpush1.msra.mxu0 %v5737
    %5766 = vmatprep.subr.mxu0 0.0
    %5767 = vmatpush1.msra.mxu0 %v5738
    %5768 = vmatprep.subr.mxu0 0.0
    %5769 = vmatpush1.msra.mxu0 %v5739
    %5770 = vmatprep.subr.mxu0 0.0
    %5771 = vmatpush1.msra.mxu0 %v5740
    %5772 = vmatprep.subr.mxu0 0.0
    %5773 = vmatpush1.msra.mxu0 %v5741
    %5774 = vmatprep.subr.mxu0 0.0
    %5775 = vmatpush1.msra.mxu0 %v5742
    %5776 = vmatprep.subr.mxu0 0.0
    %5777 = vmatpush1.msra.mxu0 0.0
    %5778 = vmatprep.subr.mxu0 0.0
    %5779 = vmatpush1.msra.mxu0 0.0
    %5780 = vmatprep.subr.mxu0 0.0
    %5781 = vmatpush1.msra.mxu0 0.0
    %5782 = vmatprep.subr.mxu0 0.0
    %5783 = vmatpush1.msra.mxu0 0.0
    %5784 = vmatprep.subr.mxu0 0.0
    %5785 = vmatpush1.msra.mxu0 0.0
    %5786 = vmatprep.subr.mxu0 0.0
    %5787 = vmatpush1.msra.mxu0 0.0
    %5788 = vmatprep.subr.mxu0 0.0
    %5789 = vmatpush1.msra.mxu0 0.0
    %5790 = vmatprep.subr.mxu0 0.0
    %5791 = vmatpush1.msra.mxu0 0.0
    %5792 = vmatprep.subr.mxu0 0.0
    %5793 = vmatpush1.msra.mxu0 0.0
    %5794 = vmatprep.subr.mxu0 0.0
    %5795 = vmatpush1.msra.mxu0 0.0
    %5796 = vmatprep.subr.mxu0 0.0
    %5797 = vmatpush1.msra.mxu0 0.0
    %5798 = vmatprep.subr.mxu0 0.0
    %5799 = vmatpush1.msra.mxu0 0.0
    %5800 = vmatprep.subr.mxu0 0.0
    %5801 = vmatpush1.msra.mxu0 0.0
    %5802 = vmatprep.subr.mxu0 0.0
    %5803 = vmatpush1.msra.mxu0 0.0
    %5804 = vmatprep.subr.mxu0 0.0
    %5805 = vmatpush1.msra.mxu0 0.0
    %5806 = vmatprep.subr.mxu0 0.0
    %5807 = vmatpush1.msra.mxu0 0.0
    %5808 = vmatprep.subr.mxu0 0.0
    %5809 = vmatpush1.msra.mxu0 0.0
    %5810 = vmatprep.subr.mxu0 0.0
    %5811 = vmatpush1.msra.mxu0 0.0
    %5812 = vmatprep.subr.mxu0 0.0
    %5813 = vmatpush1.msra.mxu0 0.0
    %5814 = vmatprep.subr.mxu0 0.0
    %5815 = vmatpush1.msra.mxu0 0.0
    %5816 = vmatprep.subr.mxu0 0.0
    %5817 = vmatpush1.msra.mxu0 0.0
    %5818 = vmatprep.subr.mxu0 0.0
    %5819 = vmatpush1.msra.mxu0 0.0
    %5820 = vmatprep.subr.mxu0 0.0
    %5821 = vmatpush1.msra.mxu0 0.0
    %5822 = vmatprep.subr.mxu0 0.0
    %5823 = vmatpush1.msra.mxu0 0.0
    %5824 = vmatprep.mubr.f32.mxu0 0.0
    %5825 = vmatmul.mubr.f32.gmra.mrb[0].mxu0 %v5758
    %v5826 = vpop.f32.mrb[0].mxu0
    %v5827 = vadd.f32 0.0, %v5826
    %v5828 = vpop.f32.mrb[0].mxu0
    %5829 = vdwg.mxu0
    %v5830 = vadd.f32 %v5662, %v5827
    %v5831 = vsel %vm5061, %v4865, -inf
    %v5832 = vsel %vm5063, %v4866, -inf
    %v5833 = vmax.f32 %v5831, %v5832
    %v5834 = vrot.slane %v5833, 4
    %v5835 = vmax.f32 %v5833, %v5834
    %v5836 = vrot.slane %v5835, 2
    %v5837 = vmax.f32 %v5835, %v5836
    %v5838 = vrot.slane %v5837, 1
    %v5839 = vmax.f32 %v5837, %v5838
    %v5840 = vsel %vm5061, %v4880, -inf
    %v5841 = vsel %vm5063, %v4881, -inf
    %v5842 = vmax.f32 %v5840, %v5841
    %v5843 = vrot.slane %v5842, 4
    %v5844 = vmax.f32 %v5842, %v5843
    %v5845 = vrot.slane %v5844, 2
    %v5846 = vmax.f32 %v5844, %v5845
    %v5847 = vrot.slane %v5846, 1
    %v5848 = vmax.f32 %v5846, %v5847
    %v5849 = vsel %vm5061, %v4895, -inf
    %v5850 = vsel %vm5063, %v4896, -inf
    %v5851 = vmax.f32 %v5849, %v5850
    %v5852 = vrot.slane %v5851, 4
    %v5853 = vmax.f32 %v5851, %v5852
    %v5854 = vrot.slane %v5853, 2
    %v5855 = vmax.f32 %v5853, %v5854
    %v5856 = vrot.slane %v5855, 1
    %v5857 = vmax.f32 %v5855, %v5856
    %v5858 = vsel %vm5061, %v4910, -inf
    %v5859 = vsel %vm5063, %v4911, -inf
    %v5860 = vmax.f32 %v5858, %v5859
    %v5861 = vrot.slane %v5860, 4
    %v5862 = vmax.f32 %v5860, %v5861
    %v5863 = vrot.slane %v5862, 2
    %v5864 = vmax.f32 %v5862, %v5863
    %v5865 = vrot.slane %v5864, 1
    %v5866 = vmax.f32 %v5864, %v5865
    %v5867 = vsel %vm5061, %v4925, -inf
    %v5868 = vsel %vm5063, %v4926, -inf
    %v5869 = vmax.f32 %v5867, %v5868
    %v5870 = vrot.slane %v5869, 4
    %v5871 = vmax.f32 %v5869, %v5870
    %v5872 = vrot.slane %v5871, 2
    %v5873 = vmax.f32 %v5871, %v5872
    %v5874 = vrot.slane %v5873, 1
    %v5875 = vmax.f32 %v5873, %v5874
    %v5876 = vsel %vm5061, %v4940, -inf
    %v5877 = vsel %vm5063, %v4941, -inf
    %v5878 = vmax.f32 %v5876, %v5877
    %v5879 = vrot.slane %v5878, 4
    %v5880 = vmax.f32 %v5878, %v5879
    %v5881 = vrot.slane %v5880, 2
    %v5882 = vmax.f32 %v5880, %v5881
    %v5883 = vrot.slane %v5882, 1
    %v5884 = vmax.f32 %v5882, %v5883
    %v5885 = vsel %vm5061, %v4955, -inf
    %v5886 = vsel %vm5063, %v4956, -inf
    %v5887 = vmax.f32 %v5885, %v5886
    %v5888 = vrot.slane %v5887, 4
    %v5889 = vmax.f32 %v5887, %v5888
    %v5890 = vrot.slane %v5889, 2
    %v5891 = vmax.f32 %v5889, %v5890
    %v5892 = vrot.slane %v5891, 1
    %v5893 = vmax.f32 %v5891, %v5892
    %v5894 = vsel %vm5061, %v4970, -inf
    %v5895 = vsel %vm5063, %v4971, -inf
    %v5896 = vmax.f32 %v5894, %v5895
    %v5897 = vrot.slane %v5896, 4
    %v5898 = vmax.f32 %v5896, %v5897
    %v5899 = vrot.slane %v5898, 2
    %v5900 = vmax.f32 %v5898, %v5899
    %v5901 = vrot.slane %v5900, 1
    %v5902 = vmax.f32 %v5900, %v5901
    %v5903 = vld [vmem:[%s3 + $0x140] sm:$0xff]
    %v5904 = vld [vmem:[%s3 + $0x148] sm:$0xff]
    %v5905 = vld [vmem:[%s3 + $0x150] sm:$0xff]
    %v5906 = vld [vmem:[%s3 + $0x158] sm:$0xff]
    %v5907 = vld [vmem:[%s3 + $0x160] sm:$0xff]
    %v5908 = vld [vmem:[%s3 + $0x168] sm:$0xff]
    %v5909 = vld [vmem:[%s3 + $0x170] sm:$0xff]
    %v5910 = vld [vmem:[%s3 + $0x178] sm:$0xff]
    %v5919 = vsel %vm5151, %v5848, %v5839
    %v5920 = vsel %vm5153, %v5857, %v5919
    %v5921 = vsel %vm5155, %v5866, %v5920
    %v5922 = vsel %vm5157, %v5875, %v5921
    %v5923 = vsel %vm5159, %v5884, %v5922
    %v5924 = vsel %vm5161, %v5893, %v5923
    %v5925 = vsel %vm5163, %v5902, %v5924
    %v5926 = vsel %vm4979, %v5925, 0
    %5928 = vmatprep.subr.mxu0 0.0
    %5929 = vmatpush1.msra.mxu0 %v5903
    %5930 = vmatprep.subr.mxu0 0.0
    %5931 = vmatpush1.msra.mxu0 %v5904
    %5932 = vmatprep.subr.mxu0 0.0
    %5933 = vmatpush1.msra.mxu0 %v5905
    %5934 = vmatprep.subr.mxu0 0.0
    %5935 = vmatpush1.msra.mxu0 %v5906
    %5936 = vmatprep.subr.mxu0 0.0
    %5937 = vmatpush1.msra.mxu0 %v5907
    %5938 = vmatprep.subr.mxu0 0.0
    %5939 = vmatpush1.msra.mxu0 %v5908
    %5940 = vmatprep.subr.mxu0 0.0
    %5941 = vmatpush1.msra.mxu0 %v5909
    %5942 = vmatprep.subr.mxu0 0.0
    %5943 = vmatpush1.msra.mxu0 %v5910
    %5944 = vmatprep.subr.mxu0 0.0
    %5945 = vmatpush1.msra.mxu0 0.0
    %5946 = vmatprep.subr.mxu0 0.0
    %5947 = vmatpush1.msra.mxu0 0.0
    %5948 = vmatprep.subr.mxu0 0.0
    %5949 = vmatpush1.msra.mxu0 0.0
    %5950 = vmatprep.subr.mxu0 0.0
    %5951 = vmatpush1.msra.mxu0 0.0
    %5952 = vmatprep.subr.mxu0 0.0
    %5953 = vmatpush1.msra.mxu0 0.0
    %5954 = vmatprep.subr.mxu0 0.0
    %5955 = vmatpush1.msra.mxu0 0.0
    %5956 = vmatprep.subr.mxu0 0.0
    %5957 = vmatpush1.msra.mxu0 0.0
    %5958 = vmatprep.subr.mxu0 0.0
    %5959 = vmatpush1.msra.mxu0 0.0
    %5960 = vmatprep.subr.mxu0 0.0
    %5961 = vmatpush1.msra.mxu0 0.0
    %5962 = vmatprep.subr.mxu0 0.0
    %5963 = vmatpush1.msra.mxu0 0.0
    %5964 = vmatprep.subr.mxu0 0.0
    %5965 = vmatpush1.msra.mxu0 0.0
    %5966 = vmatprep.subr.mxu0 0.0
    %5967 = vmatpush1.msra.mxu0 0.0
    %5968 = vmatprep.subr.mxu0 0.0
    %5969 = vmatpush1.msra.mxu0 0.0
    %5970 = vmatprep.subr.mxu0 0.0
    %5971 = vmatpush1.msra.mxu0 0.0
    %5972 = vmatprep.subr.mxu0 0.0
    %5973 = vmatpush1.msra.mxu0 0.0
    %5974 = vmatprep.subr.mxu0 0.0
    %5975 = vmatpush1.msra.mxu0 0.0
    %5976 = vmatprep.subr.mxu0 0.0
    %5977 = vmatpush1.msra.mxu0 0.0
    %5978 = vmatprep.subr.mxu0 0.0
    %5979 = vmatpush1.msra.mxu0 0.0
    %5980 = vmatprep.subr.mxu0 0.0
    %5981 = vmatpush1.msra.mxu0 0.0
    %5982 = vmatprep.subr.mxu0 0.0
    %5983 = vmatpush1.msra.mxu0 0.0
    %5984 = vmatprep.subr.mxu0 0.0
    %5985 = vmatpush1.msra.mxu0 0.0
    %5986 = vmatprep.subr.mxu0 0.0
    %5987 = vmatpush1.msra.mxu0 0.0
    %5988 = vmatprep.subr.mxu0 0.0
    %5989 = vmatpush1.msra.mxu0 0.0
    %5990 = vmatprep.subr.mxu0 0.0
    %5991 = vmatpush1.msra.mxu0 0.0
    %5992 = vmatprep.mubr.f32.mxu0 0.0
    %5993 = vmatmul.mubr.f32.gmra.mrb[0].mxu0 %v5926
    %v5994 = vpop.f32.mrb[0].mxu0
    %v5995 = vadd.f32 0.0, %v5994
    %v5996 = vpop.f32.mrb[0].mxu0
    %5997 = vdwg.mxu0
    %v5998 = vadd.f32 %v5830, %v5995
    %v5999 = vsel %vm5324, %v4866, -inf
    %v6000 = vsel %vm5326, %v4867, -inf
    %v6001 = vmax.f32 %v5999, %v6000
    %v6002 = vrot.slane %v6001, 4
    %v6003 = vmax.f32 %v6001, %v6002
    %v6004 = vrot.slane %v6003, 2
    %v6005 = vmax.f32 %v6003, %v6004
    %v6006 = vrot.slane %v6005, 1
    %v6007 = vmax.f32 %v6005, %v6006
    %v6008 = vsel %vm5324, %v4881, -inf
    %v6009 = vsel %vm5326, %v4882, -inf
    %v6010 = vmax.f32 %v6008, %v6009
    %v6011 = vrot.slane %v6010, 4
    %v6012 = vmax.f32 %v6010, %v6011
    %v6013 = vrot.slane %v6012, 2
    %v6014 = vmax.f32 %v6012, %v6013
    %v6015 = vrot.slane %v6014, 1
    %v6016 = vmax.f32 %v6014, %v6015
    %v6017 = vsel %vm5324, %v4896, -inf
    %v6018 = vsel %vm5326, %v4897, -inf
    %v6019 = vmax.f32 %v6017, %v6018
    %v6020 = vrot.slane %v6019, 4
    %v6021 = vmax.f32 %v6019, %v6020
    %v6022 = vrot.slane %v6021, 2
    %v6023 = vmax.f32 %v6021, %v6022
    %v6024 = vrot.slane %v6023, 1
    %v6025 = vmax.f32 %v6023, %v6024
    %v6026 = vsel %vm5324, %v4911, -inf
    %v6027 = vsel %vm5326, %v4912, -inf
    %v6028 = vmax.f32 %v6026, %v6027
    %v6029 = vrot.slane %v6028, 4
    %v6030 = vmax.f32 %v6028, %v6029
    %v6031 = vrot.slane %v6030, 2
    %v6032 = vmax.f32 %v6030, %v6031
    %v6033 = vrot.slane %v6032, 1
    %v6034 = vmax.f32 %v6032, %v6033
    %v6035 = vsel %vm5324, %v4926, -inf
    %v6036 = vsel %vm5326, %v4927, -inf
    %v6037 = vmax.f32 %v6035, %v6036
    %v6038 = vrot.slane %v6037, 4
    %v6039 = vmax.f32 %v6037, %v6038
    %v6040 = vrot.slane %v6039, 2
    %v6041 = vmax.f32 %v6039, %v6040
    %v6042 = vrot.slane %v6041, 1
    %v6043 = vmax.f32 %v6041, %v6042
    %v6044 = vsel %vm5324, %v4941, -inf
    %v6045 = vsel %vm5326, %v4942, -inf
    %v6046 = vmax.f32 %v6044, %v6045
    %v6047 = vrot.slane %v6046, 4
    %v6048 = vmax.f32 %v6046, %v6047
    %v6049 = vrot.slane %v6048, 2
    %v6050 = vmax.f32 %v6048, %v6049
    %v6051 = vrot.slane %v6050, 1
    %v6052 = vmax.f32 %v6050, %v6051
    %v6053 = vsel %vm5324, %v4956, -inf
    %v6054 = vsel %vm5326, %v4957, -inf
    %v6055 = vmax.f32 %v6053, %v6054
    %v6056 = vrot.slane %v6055, 4
    %v6057 = vmax.f32 %v6055, %v6056
    %v6058 = vrot.slane %v6057, 2
    %v6059 = vmax.f32 %v6057, %v6058
    %v6060 = vrot.slane %v6059, 1
    %v6061 = vmax.f32 %v6059, %v6060
    %v6062 = vsel %vm5324, %v4971, -inf
    %v6063 = vsel %vm5326, %v4972, -inf
    %v6064 = vmax.f32 %v6062, %v6063
    %v6065 = vrot.slane %v6064, 4
    %v6066 = vmax.f32 %v6064, %v6065
    %v6067 = vrot.slane %v6066, 2
    %v6068 = vmax.f32 %v6066, %v6067
    %v6069 = vrot.slane %v6068, 1
    %v6070 = vmax.f32 %v6068, %v6069
    %v6071 = vld [vmem:[%s3 + $0x180] sm:$0xff]
    %v6072 = vld [vmem:[%s3 + $0x188] sm:$0xff]
    %v6073 = vld [vmem:[%s3 + $0x190] sm:$0xff]
    %v6074 = vld [vmem:[%s3 + $0x198] sm:$0xff]
    %v6075 = vld [vmem:[%s3 + $0x1a0] sm:$0xff]
    %v6076 = vld [vmem:[%s3 + $0x1a8] sm:$0xff]
    %v6077 = vld [vmem:[%s3 + $0x1b0] sm:$0xff]
    %v6078 = vld [vmem:[%s3 + $0x1b8] sm:$0xff]
    %v6087 = vsel %vm5151, %v6016, %v6007
    %v6088 = vsel %vm5153, %v6025, %v6087
    %v6089 = vsel %vm5155, %v6034, %v6088
    %v6090 = vsel %vm5157, %v6043, %v6089
    %v6091 = vsel %vm5159, %v6052, %v6090
    %v6092 = vsel %vm5161, %v6061, %v6091
    %v6093 = vsel %vm5163, %v6070, %v6092
    %v6094 = vsel %vm4979, %v6093, 0
    %6096 = vmatprep.subr.mxu0 0.0
    %6097 = vmatpush1.msra.mxu0 %v6071
    %6098 = vmatprep.subr.mxu0 0.0
    %6099 = vmatpush1.msra.mxu0 %v6072
    %6100 = vmatprep.subr.mxu0 0.0
    %6101 = vmatpush1.msra.mxu0 %v6073
    %6102 = vmatprep.subr.mxu0 0.0
    %6103 = vmatpush1.msra.mxu0 %v6074
    %6104 = vmatprep.subr.mxu0 0.0
    %6105 = vmatpush1.msra.mxu0 %v6075
    %6106 = vmatprep.subr.mxu0 0.0
    %6107 = vmatpush1.msra.mxu0 %v6076
    %6108 = vmatprep.subr.mxu0 0.0
    %6109 = vmatpush1.msra.mxu0 %v6077
    %6110 = vmatprep.subr.mxu0 0.0
    %6111 = vmatpush1.msra.mxu0 %v6078
    %6112 = vmatprep.subr.mxu0 0.0
    %6113 = vmatpush1.msra.mxu0 0.0
    %6114 = vmatprep.subr.mxu0 0.0
    %6115 = vmatpush1.msra.mxu0 0.0
    %6116 = vmatprep.subr.mxu0 0.0
    %6117 = vmatpush1.msra.mxu0 0.0
    %6118 = vmatprep.subr.mxu0 0.0
    %6119 = vmatpush1.msra.mxu0 0.0
    %6120 = vmatprep.subr.mxu0 0.0
    %6121 = vmatpush1.msra.mxu0 0.0
    %6122 = vmatprep.subr.mxu0 0.0
    %6123 = vmatpush1.msra.mxu0 0.0
    %6124 = vmatprep.subr.mxu0 0.0
    %6125 = vmatpush1.msra.mxu0 0.0
    %6126 = vmatprep.subr.mxu0 0.0
    %6127 = vmatpush1.msra.mxu0 0.0
    %6128 = vmatprep.subr.mxu0 0.0
    %6129 = vmatpush1.msra.mxu0 0.0
    %6130 = vmatprep.subr.mxu0 0.0
    %6131 = vmatpush1.msra.mxu0 0.0
    %6132 = vmatprep.subr.mxu0 0.0
    %6133 = vmatpush1.msra.mxu0 0.0
    %6134 = vmatprep.subr.mxu0 0.0
    %6135 = vmatpush1.msra.mxu0 0.0
    %6136 = vmatprep.subr.mxu0 0.0
    %6137 = vmatpush1.msra.mxu0 0.0
    %6138 = vmatprep.subr.mxu0 0.0
    %6139 = vmatpush1.msra.mxu0 0.0
    %6140 = vmatprep.subr.mxu0 0.0
    %6141 = vmatpush1.msra.mxu0 0.0
    %6142 = vmatprep.subr.mxu0 0.0
    %6143 = vmatpush1.msra.mxu0 0.0
    %6144 = vmatprep.subr.mxu0 0.0
    %6145 = vmatpush1.msra.mxu0 0.0
    %6146 = vmatprep.subr.mxu0 0.0
    %6147 = vmatpush1.msra.mxu0 0.0
    %6148 = vmatprep.subr.mxu0 0.0
    %6149 = vmatpush1.msra.mxu0 0.0
    %6150 = vmatprep.subr.mxu0 0.0
    %6151 = vmatpush1.msra.mxu0 0.0
    %6152 = vmatprep.subr.mxu0 0.0
    %6153 = vmatpush1.msra.mxu0 0.0
    %6154 = vmatprep.subr.mxu0 0.0
    %6155 = vmatpush1.msra.mxu0 0.0
    %6156 = vmatprep.subr.mxu0 0.0
    %6157 = vmatpush1.msra.mxu0 0.0
    %6158 = vmatprep.subr.mxu0 0.0
    %6159 = vmatpush1.msra.mxu0 0.0
    %6160 = vmatprep.mubr.f32.mxu0 0.0
    %6161 = vmatmul.mubr.f32.gmra.mrb[0].mxu0 %v6094
    %v6162 = vpop.f32.mrb[0].mxu0
    %v6163 = vadd.f32 0.0, %v6162
    %v6164 = vpop.f32.mrb[0].mxu0
    %6165 = vdwg.mxu0
    %v6166 = vadd.f32 %v5998, %v6163
    %v6167 = vsel %vm5494, %v4867, -inf
    %v6168 = vsel %vm4979, %v4868, -inf
    %v6169 = vmax.f32 %v6167, %v6168
    %v6170 = vrot.slane %v6169, 4
    %v6171 = vmax.f32 %v6169, %v6170
    %v6172 = vrot.slane %v6171, 2
    %v6173 = vmax.f32 %v6171, %v6172
    %v6174 = vrot.slane %v6173, 1
    %v6175 = vmax.f32 %v6173, %v6174
    %v6176 = vsel %vm5494, %v4882, -inf
    %v6177 = vsel %vm4979, %v4883, -inf
    %v6178 = vmax.f32 %v6176, %v6177
    %v6179 = vrot.slane %v6178, 4
    %v6180 = vmax.f32 %v6178, %v6179
    %v6181 = vrot.slane %v6180, 2
    %v6182 = vmax.f32 %v6180, %v6181
    %v6183 = vrot.slane %v6182, 1
    %v6184 = vmax.f32 %v6182, %v6183
    %v6185 = vsel %vm5494, %v4897, -inf
    %v6186 = vsel %vm4979, %v4898, -inf
    %v6187 = vmax.f32 %v6185, %v6186
    %v6188 = vrot.slane %v6187, 4
    %v6189 = vmax.f32 %v6187, %v6188
    %v6190 = vrot.slane %v6189, 2
    %v6191 = vmax.f32 %v6189, %v6190
    %v6192 = vrot.slane %v6191, 1
    %v6193 = vmax.f32 %v6191, %v6192
    %v6194 = vsel %vm5494, %v4912, -inf
    %v6195 = vsel %vm4979, %v4913, -inf
    %v6196 = vmax.f32 %v6194, %v6195
    %v6197 = vrot.slane %v6196, 4
    %v6198 = vmax.f32 %v6196, %v6197
    %v6199 = vrot.slane %v6198, 2
    %v6200 = vmax.f32 %v6198, %v6199
    %v6201 = vrot.slane %v6200, 1
    %v6202 = vmax.f32 %v6200, %v6201
    %v6203 = vsel %vm5494, %v4927, -inf
    %v6204 = vsel %vm4979, %v4928, -inf
    %v6205 = vmax.f32 %v6203, %v6204
    %v6206 = vrot.slane %v6205, 4
    %v6207 = vmax.f32 %v6205, %v6206
    %v6208 = vrot.slane %v6207, 2
    %v6209 = vmax.f32 %v6207, %v6208
    %v6210 = vrot.slane %v6209, 1
    %v6211 = vmax.f32 %v6209, %v6210
    %v6212 = vsel %vm5494, %v4942, -inf
    %v6213 = vsel %vm4979, %v4943, -inf
    %v6214 = vmax.f32 %v6212, %v6213
    %v6215 = vrot.slane %v6214, 4
    %v6216 = vmax.f32 %v6214, %v6215
    %v6217 = vrot.slane %v6216, 2
    %v6218 = vmax.f32 %v6216, %v6217
    %v6219 = vrot.slane %v6218, 1
    %v6220 = vmax.f32 %v6218, %v6219
    %v6221 = vsel %vm5494, %v4957, -inf
    %v6222 = vsel %vm4979, %v4958, -inf
    %v6223 = vmax.f32 %v6221, %v6222
    %v6224 = vrot.slane %v6223, 4
    %v6225 = vmax.f32 %v6223, %v6224
    %v6226 = vrot.slane %v6225, 2
    %v6227 = vmax.f32 %v6225, %v6226
    %v6228 = vrot.slane %v6227, 1
    %v6229 = vmax.f32 %v6227, %v6228
    %v6230 = vsel %vm5494, %v4972, -inf
    %v6231 = vsel %vm4979, %v4973, -inf
    %v6232 = vmax.f32 %v6230, %v6231
    %v6233 = vrot.slane %v6232, 4
    %v6234 = vmax.f32 %v6232, %v6233
    %v6235 = vrot.slane %v6234, 2
    %v6236 = vmax.f32 %v6234, %v6235
    %v6237 = vrot.slane %v6236, 1
    %v6238 = vmax.f32 %v6236, %v6237
    %v6239 = vld [vmem:[%s3 + $0x1c0] sm:$0xff]
    %v6240 = vld [vmem:[%s3 + $0x1c8] sm:$0xff]
    %v6241 = vld [vmem:[%s3 + $0x1d0] sm:$0xff]
    %v6242 = vld [vmem:[%s3 + $0x1d8] sm:$0xff]
    %v6243 = vld [vmem:[%s3 + $0x1e0] sm:$0xff]
    %v6244 = vld [vmem:[%s3 + $0x1e8] sm:$0xff]
    %v6245 = vld [vmem:[%s3 + $0x1f0] sm:$0xff]
    %v6246 = vld [vmem:[%s3 + $0x1f8] sm:$0xff]
    %v6255 = vsel %vm5151, %v6184, %v6175
    %v6256 = vsel %vm5153, %v6193, %v6255
    %v6257 = vsel %vm5155, %v6202, %v6256
    %v6258 = vsel %vm5157, %v6211, %v6257
    %v6259 = vsel %vm5159, %v6220, %v6258
    %v6260 = vsel %vm5161, %v6229, %v6259
    %v6261 = vsel %vm5163, %v6238, %v6260
    %v6262 = vsel %vm4979, %v6261, 0
    %6264 = vmatprep.subr.mxu0 0.0
    %6265 = vmatpush1.msra.mxu0 %v6239
    %6266 = vmatprep.subr.mxu0 0.0
    %6267 = vmatpush1.msra.mxu0 %v6240
    %6268 = vmatprep.subr.mxu0 0.0
    %6269 = vmatpush1.msra.mxu0 %v6241
    %6270 = vmatprep.subr.mxu0 0.0
    %6271 = vmatpush1.msra.mxu0 %v6242
    %6272 = vmatprep.subr.mxu0 0.0
    %6273 = vmatpush1.msra.mxu0 %v6243
    %6274 = vmatprep.subr.mxu0 0.0
    %6275 = vmatpush1.msra.mxu0 %v6244
    %6276 = vmatprep.subr.mxu0 0.0
    %6277 = vmatpush1.msra.mxu0 %v6245
    %6278 = vmatprep.subr.mxu0 0.0
    %6279 = vmatpush1.msra.mxu0 %v6246
    %6280 = vmatprep.subr.mxu0 0.0
    %6281 = vmatpush1.msra.mxu0 0.0
    %6282 = vmatprep.subr.mxu0 0.0
    %6283 = vmatpush1.msra.mxu0 0.0
    %6284 = vmatprep.subr.mxu0 0.0
    %6285 = vmatpush1.msra.mxu0 0.0
    %6286 = vmatprep.subr.mxu0 0.0
    %6287 = vmatpush1.msra.mxu0 0.0
    %6288 = vmatprep.subr.mxu0 0.0
    %6289 = vmatpush1.msra.mxu0 0.0
    %6290 = vmatprep.subr.mxu0 0.0
    %6291 = vmatpush1.msra.mxu0 0.0
    %6292 = vmatprep.subr.mxu0 0.0
    %6293 = vmatpush1.msra.mxu0 0.0
    %6294 = vmatprep.subr.mxu0 0.0
    %6295 = vmatpush1.msra.mxu0 0.0
    %6296 = vmatprep.subr.mxu0 0.0
    %6297 = vmatpush1.msra.mxu0 0.0
    %6298 = vmatprep.subr.mxu0 0.0
    %6299 = vmatpush1.msra.mxu0 0.0
    %6300 = vmatprep.subr.mxu0 0.0
    %6301 = vmatpush1.msra.mxu0 0.0
    %6302 = vmatprep.subr.mxu0 0.0
    %6303 = vmatpush1.msra.mxu0 0.0
    %6304 = vmatprep.subr.mxu0 0.0
    %6305 = vmatpush1.msra.mxu0 0.0
    %6306 = vmatprep.subr.mxu0 0.0
    %6307 = vmatpush1.msra.mxu0 0.0
    %6308 = vmatprep.subr.mxu0 0.0
    %6309 = vmatpush1.msra.mxu0 0.0
    %6310 = vmatprep.subr.mxu0 0.0
    %6311 = vmatpush1.msra.mxu0 0.0
    %6312 = vmatprep.subr.mxu0 0.0
    %6313 = vmatpush1.msra.mxu0 0.0
    %6314 = vmatprep.subr.mxu0 0.0
    %6315 = vmatpush1.msra.mxu0 0.0
    %6316 = vmatprep.subr.mxu0 0.0
    %6317 = vmatpush1.msra.mxu0 0.0
    %6318 = vmatprep.subr.mxu0 0.0
    %6319 = vmatpush1.msra.mxu0 0.0
    %6320 = vmatprep.subr.mxu0 0.0
    %6321 = vmatpush1.msra.mxu0 0.0
    %6322 = vmatprep.subr.mxu0 0.0
    %6323 = vmatpush1.msra.mxu0 0.0
    %6324 = vmatprep.subr.mxu0 0.0
    %6325 = vmatpush1.msra.mxu0 0.0
    %6326 = vmatprep.subr.mxu0 0.0
    %6327 = vmatpush1.msra.mxu0 0.0
    %6328 = vmatprep.mubr.f32.mxu0 0.0
    %6329 = vmatmul.mubr.f32.gmra.mrb[0].mxu0 %v6262
    %v6330 = vpop.f32.mrb[0].mxu0
    %v6331 = vadd.f32 0.0, %v6330
    %v6332 = vpop.f32.mrb[0].mxu0
    %6333 = vdwg.mxu0
    %v6334 = vadd.f32 %v6166, %v6331
    %v6335 = vsel %vm4979, %v4869, -inf
    %v6336 = vsel %vm4981, %v4870, -inf
    %v6337 = vmax.f32 %v6335, %v6336
    %v6338 = vrot.slane %v6337, 4
    %v6339 = vmax.f32 %v6337, %v6338
    %v6340 = vrot.slane %v6339, 2
    %v6341 = vmax.f32 %v6339, %v6340
    %v6342 = vrot.slane %v6341, 1
    %v6343 = vmax.f32 %v6341, %v6342
    %v6344 = vsel %vm4979, %v4884, -inf
    %v6345 = vsel %vm4981, %v4885, -inf
    %v6346 = vmax.f32 %v6344, %v6345
    %v6347 = vrot.slane %v6346, 4
    %v6348 = vmax.f32 %v6346, %v6347
    %v6349 = vrot.slane %v6348, 2
    %v6350 = vmax.f32 %v6348, %v6349
    %v6351 = vrot.slane %v6350, 1
    %v6352 = vmax.f32 %v6350, %v6351
    %v6353 = vsel %vm4979, %v4899, -inf
    %v6354 = vsel %vm4981, %v4900, -inf
    %v6355 = vmax.f32 %v6353, %v6354
    %v6356 = vrot.slane %v6355, 4
    %v6357 = vmax.f32 %v6355, %v6356
    %v6358 = vrot.slane %v6357, 2
    %v6359 = vmax.f32 %v6357, %v6358
    %v6360 = vrot.slane %v6359, 1
    %v6361 = vmax.f32 %v6359, %v6360
    %v6362 = vsel %vm4979, %v4914, -inf
    %v6363 = vsel %vm4981, %v4915, -inf
    %v6364 = vmax.f32 %v6362, %v6363
    %v6365 = vrot.slane %v6364, 4
    %v6366 = vmax.f32 %v6364, %v6365
    %v6367 = vrot.slane %v6366, 2
    %v6368 = vmax.f32 %v6366, %v6367
    %v6369 = vrot.slane %v6368, 1
    %v6370 = vmax.f32 %v6368, %v6369
    %v6371 = vsel %vm4979, %v4929, -inf
    %v6372 = vsel %vm4981, %v4930, -inf
    %v6373 = vmax.f32 %v6371, %v6372
    %v6374 = vrot.slane %v6373, 4
    %v6375 = vmax.f32 %v6373, %v6374
    %v6376 = vrot.slane %v6375, 2
    %v6377 = vmax.f32 %v6375, %v6376
    %v6378 = vrot.slane %v6377, 1
    %v6379 = vmax.f32 %v6377, %v6378
    %v6380 = vsel %vm4979, %v4944, -inf
    %v6381 = vsel %vm4981, %v4945, -inf
    %v6382 = vmax.f32 %v6380, %v6381
    %v6383 = vrot.slane %v6382, 4
    %v6384 = vmax.f32 %v6382, %v6383
    %v6385 = vrot.slane %v6384, 2
    %v6386 = vmax.f32 %v6384, %v6385
    %v6387 = vrot.slane %v6386, 1
    %v6388 = vmax.f32 %v6386, %v6387
    %v6389 = vsel %vm4979, %v4959, -inf
    %v6390 = vsel %vm4981, %v4960, -inf
    %v6391 = vmax.f32 %v6389, %v6390
    %v6392 = vrot.slane %v6391, 4
    %v6393 = vmax.f32 %v6391, %v6392
    %v6394 = vrot.slane %v6393, 2
    %v6395 = vmax.f32 %v6393, %v6394
    %v6396 = vrot.slane %v6395, 1
    %v6397 = vmax.f32 %v6395, %v6396
    %v6398 = vsel %vm4979, %v4974, -inf
    %v6399 = vsel %vm4981, %v4975, -inf
    %v6400 = vmax.f32 %v6398, %v6399
    %v6401 = vrot.slane %v6400, 4
    %v6402 = vmax.f32 %v6400, %v6401
    %v6403 = vrot.slane %v6402, 2
    %v6404 = vmax.f32 %v6402, %v6403
    %v6405 = vrot.slane %v6404, 1
    %v6406 = vmax.f32 %v6404, %v6405
    %v6407 = vld [vmem:[%s3 + $0x200] sm:$0xff]
    %v6408 = vld [vmem:[%s3 + $0x208] sm:$0xff]
    %v6409 = vld [vmem:[%s3 + $0x210] sm:$0xff]
    %v6410 = vld [vmem:[%s3 + $0x218] sm:$0xff]
    %v6411 = vld [vmem:[%s3 + $0x220] sm:$0xff]
    %v6412 = vld [vmem:[%s3 + $0x228] sm:$0xff]
    %v6413 = vld [vmem:[%s3 + $0x230] sm:$0xff]
    %v6414 = vld [vmem:[%s3 + $0x238] sm:$0xff]
    %v6423 = vsel %vm5151, %v6352, %v6343
    %v6424 = vsel %vm5153, %v6361, %v6423
    %v6425 = vsel %vm5155, %v6370, %v6424
    %v6426 = vsel %vm5157, %v6379, %v6425
    %v6427 = vsel %vm5159, %v6388, %v6426
    %v6428 = vsel %vm5161, %v6397, %v6427
    %v6429 = vsel %vm5163, %v6406, %v6428
    %v6430 = vsel %vm4979, %v6429, 0
    %6432 = vmatprep.subr.mxu0 0.0
    %6433 = vmatpush1.msra.mxu0 %v6407
    %6434 = vmatprep.subr.mxu0 0.0
    %6435 = vmatpush1.msra.mxu0 %v6408
    %6436 = vmatprep.subr.mxu0 0.0
    %6437 = vmatpush1.msra.mxu0 %v6409
    %6438 = vmatprep.subr.mxu0 0.0
    %6439 = vmatpush1.msra.mxu0 %v6410
    %6440 = vmatprep.subr.mxu0 0.0
    %6441 = vmatpush1.msra.mxu0 %v6411
    %6442 = vmatprep.subr.mxu0 0.0
    %6443 = vmatpush1.msra.mxu0 %v6412
    %6444 = vmatprep.subr.mxu0 0.0
    %6445 = vmatpush1.msra.mxu0 %v6413
    %6446 = vmatprep.subr.mxu0 0.0
    %6447 = vmatpush1.msra.mxu0 %v6414
    %6448 = vmatprep.subr.mxu0 0.0
    %6449 = vmatpush1.msra.mxu0 0.0
    %6450 = vmatprep.subr.mxu0 0.0
    %6451 = vmatpush1.msra.mxu0 0.0
    %6452 = vmatprep.subr.mxu0 0.0
    %6453 = vmatpush1.msra.mxu0 0.0
    %6454 = vmatprep.subr.mxu0 0.0
    %6455 = vmatpush1.msra.mxu0 0.0
    %6456 = vmatprep.subr.mxu0 0.0
    %6457 = vmatpush1.msra.mxu0 0.0
    %6458 = vmatprep.subr.mxu0 0.0
    %6459 = vmatpush1.msra.mxu0 0.0
    %6460 = vmatprep.subr.mxu0 0.0
    %6461 = vmatpush1.msra.mxu0 0.0
    %6462 = vmatprep.subr.mxu0 0.0
    %6463 = vmatpush1.msra.mxu0 0.0
    %6464 = vmatprep.subr.mxu0 0.0
    %6465 = vmatpush1.msra.mxu0 0.0
    %6466 = vmatprep.subr.mxu0 0.0
    %6467 = vmatpush1.msra.mxu0 0.0
    %6468 = vmatprep.subr.mxu0 0.0
    %6469 = vmatpush1.msra.mxu0 0.0
    %6470 = vmatprep.subr.mxu0 0.0
    %6471 = vmatpush1.msra.mxu0 0.0
    %6472 = vmatprep.subr.mxu0 0.0
    %6473 = vmatpush1.msra.mxu0 0.0
    %6474 = vmatprep.subr.mxu0 0.0
    %6475 = vmatpush1.msra.mxu0 0.0
    %6476 = vmatprep.subr.mxu0 0.0
    %6477 = vmatpush1.msra.mxu0 0.0
    %6478 = vmatprep.subr.mxu0 0.0
    %6479 = vmatpush1.msra.mxu0 0.0
    %6480 = vmatprep.subr.mxu0 0.0
    %6481 = vmatpush1.msra.mxu0 0.0
    %6482 = vmatprep.subr.mxu0 0.0
    %6483 = vmatpush1.msra.mxu0 0.0
    %6484 = vmatprep.subr.mxu0 0.0
    %6485 = vmatpush1.msra.mxu0 0.0
    %6486 = vmatprep.subr.mxu0 0.0
    %6487 = vmatpush1.msra.mxu0 0.0
    %6488 = vmatprep.subr.mxu0 0.0
    %6489 = vmatpush1.msra.mxu0 0.0
    %6490 = vmatprep.subr.mxu0 0.0
    %6491 = vmatpush1.msra.mxu0 0.0
    %6492 = vmatprep.subr.mxu0 0.0
    %6493 = vmatpush1.msra.mxu0 0.0
    %6494 = vmatprep.subr.mxu0 0.0
    %6495 = vmatpush1.msra.mxu0 0.0
    %6496 = vmatprep.mubr.f32.mxu0 0.0
    %6497 = vmatmul.mubr.f32.gmra.mrb[0].mxu0 %v6430
    %v6498 = vpop.f32.mrb[0].mxu0
    %v6499 = vadd.f32 0.0, %v6498
    %v6500 = vpop.f32.mrb[0].mxu0
    %6501 = vdwg.mxu0
    %v6502 = vadd.f32 %v6334, %v6499
    %v6503 = vsel %vm5061, %v4870, -inf
    %v6504 = vsel %vm5063, %v4871, -inf
    %v6505 = vmax.f32 %v6503, %v6504
    %v6506 = vrot.slane %v6505, 4
    %v6507 = vmax.f32 %v6505, %v6506
    %v6508 = vrot.slane %v6507, 2
    %v6509 = vmax.f32 %v6507, %v6508
    %v6510 = vrot.slane %v6509, 1
    %v6511 = vmax.f32 %v6509, %v6510
    %v6512 = vsel %vm5061, %v4885, -inf
    %v6513 = vsel %vm5063, %v4886, -inf
    %v6514 = vmax.f32 %v6512, %v6513
    %v6515 = vrot.slane %v6514, 4
    %v6516 = vmax.f32 %v6514, %v6515
    %v6517 = vrot.slane %v6516, 2
    %v6518 = vmax.f32 %v6516, %v6517
    %v6519 = vrot.slane %v6518, 1
    %v6520 = vmax.f32 %v6518, %v6519
    %v6521 = vsel %vm5061, %v4900, -inf
    %v6522 = vsel %vm5063, %v4901, -inf
    %v6523 = vmax.f32 %v6521, %v6522
    %v6524 = vrot.slane %v6523, 4
    %v6525 = vmax.f32 %v6523, %v6524
    %v6526 = vrot.slane %v6525, 2
    %v6527 = vmax.f32 %v6525, %v6526
    %v6528 = vrot.slane %v6527, 1
    %v6529 = vmax.f32 %v6527, %v6528
    %v6530 = vsel %vm5061, %v4915, -inf
    %v6531 = vsel %vm5063, %v4916, -inf
    %v6532 = vmax.f32 %v6530, %v6531
    %v6533 = vrot.slane %v6532, 4
    %v6534 = vmax.f32 %v6532, %v6533
    %v6535 = vrot.slane %v6534, 2
    %v6536 = vmax.f32 %v6534, %v6535
    %v6537 = vrot.slane %v6536, 1
    %v6538 = vmax.f32 %v6536, %v6537
    %v6539 = vsel %vm5061, %v4930, -inf
    %v6540 = vsel %vm5063, %v4931, -inf
    %v6541 = vmax.f32 %v6539, %v6540
    %v6542 = vrot.slane %v6541, 4
    %v6543 = vmax.f32 %v6541, %v6542
    %v6544 = vrot.slane %v6543, 2
    %v6545 = vmax.f32 %v6543, %v6544
    %v6546 = vrot.slane %v6545, 1
    %v6547 = vmax.f32 %v6545, %v6546
    %v6548 = vsel %vm5061, %v4945, -inf
    %v6549 = vsel %vm5063, %v4946, -inf
    %v6550 = vmax.f32 %v6548, %v6549
    %v6551 = vrot.slane %v6550, 4
    %v6552 = vmax.f32 %v6550, %v6551
    %v6553 = vrot.slane %v6552, 2
    %v6554 = vmax.f32 %v6552, %v6553
    %v6555 = vrot.slane %v6554, 1
    %v6556 = vmax.f32 %v6554, %v6555
    %v6557 = vsel %vm5061, %v4960, -inf
    %v6558 = vsel %vm5063, %v4961, -inf
    %v6559 = vmax.f32 %v6557, %v6558
    %v6560 = vrot.slane %v6559, 4
    %v6561 = vmax.f32 %v6559, %v6560
    %v6562 = vrot.slane %v6561, 2
    %v6563 = vmax.f32 %v6561, %v6562
    %v6564 = vrot.slane %v6563, 1
    %v6565 = vmax.f32 %v6563, %v6564
    %v6566 = vsel %vm5061, %v4975, -inf
    %v6567 = vsel %vm5063, %v4976, -inf
    %v6568 = vmax.f32 %v6566, %v6567
    %v6569 = vrot.slane %v6568, 4
    %v6570 = vmax.f32 %v6568, %v6569
    %v6571 = vrot.slane %v6570, 2
    %v6572 = vmax.f32 %v6570, %v6571
    %v6573 = vrot.slane %v6572, 1
    %v6574 = vmax.f32 %v6572, %v6573
    %v6575 = vld [vmem:[%s3 + $0x240] sm:$0xff]
    %v6576 = vld [vmem:[%s3 + $0x248] sm:$0xff]
    %v6577 = vld [vmem:[%s3 + $0x250] sm:$0xff]
    %v6578 = vld [vmem:[%s3 + $0x258] sm:$0xff]
    %v6579 = vld [vmem:[%s3 + $0x260] sm:$0xff]
    %v6580 = vld [vmem:[%s3 + $0x268] sm:$0xff]
    %v6581 = vld [vmem:[%s3 + $0x270] sm:$0xff]
    %v6582 = vld [vmem:[%s3 + $0x278] sm:$0xff]
    %v6591 = vsel %vm5151, %v6520, %v6511
    %v6592 = vsel %vm5153, %v6529, %v6591
    %v6593 = vsel %vm5155, %v6538, %v6592
    %v6594 = vsel %vm5157, %v6547, %v6593
    %v6595 = vsel %vm5159, %v6556, %v6594
    %v6596 = vsel %vm5161, %v6565, %v6595
    %v6597 = vsel %vm5163, %v6574, %v6596
    %v6598 = vsel %vm4979, %v6597, 0
    %6600 = vmatprep.subr.mxu0 0.0
    %6601 = vmatpush1.msra.mxu0 %v6575
    %6602 = vmatprep.subr.mxu0 0.0
    %6603 = vmatpush1.msra.mxu0 %v6576
    %6604 = vmatprep.subr.mxu0 0.0
    %6605 = vmatpush1.msra.mxu0 %v6577
    %6606 = vmatprep.subr.mxu0 0.0
    %6607 = vmatpush1.msra.mxu0 %v6578
    %6608 = vmatprep.subr.mxu0 0.0
    %6609 = vmatpush1.msra.mxu0 %v6579
    %6610 = vmatprep.subr.mxu0 0.0
    %6611 = vmatpush1.msra.mxu0 %v6580
    %6612 = vmatprep.subr.mxu0 0.0
    %6613 = vmatpush1.msra.mxu0 %v6581
    %6614 = vmatprep.subr.mxu0 0.0
    %6615 = vmatpush1.msra.mxu0 %v6582
    %6616 = vmatprep.subr.mxu0 0.0
    %6617 = vmatpush1.msra.mxu0 0.0
    %6618 = vmatprep.subr.mxu0 0.0
    %6619 = vmatpush1.msra.mxu0 0.0
    %6620 = vmatprep.subr.mxu0 0.0
    %6621 = vmatpush1.msra.mxu0 0.0
    %6622 = vmatprep.subr.mxu0 0.0
    %6623 = vmatpush1.msra.mxu0 0.0
    %6624 = vmatprep.subr.mxu0 0.0
    %6625 = vmatpush1.msra.mxu0 0.0
    %6626 = vmatprep.subr.mxu0 0.0
    %6627 = vmatpush1.msra.mxu0 0.0
    %6628 = vmatprep.subr.mxu0 0.0
    %6629 = vmatpush1.msra.mxu0 0.0
    %6630 = vmatprep.subr.mxu0 0.0
    %6631 = vmatpush1.msra.mxu0 0.0
    %6632 = vmatprep.subr.mxu0 0.0
    %6633 = vmatpush1.msra.mxu0 0.0
    %6634 = vmatprep.subr.mxu0 0.0
    %6635 = vmatpush1.msra.mxu0 0.0
    %6636 = vmatprep.subr.mxu0 0.0
    %6637 = vmatpush1.msra.mxu0 0.0
    %6638 = vmatprep.subr.mxu0 0.0
    %6639 = vmatpush1.msra.mxu0 0.0
    %6640 = vmatprep.subr.mxu0 0.0
    %6641 = vmatpush1.msra.mxu0 0.0
    %6642 = vmatprep.subr.mxu0 0.0
    %6643 = vmatpush1.msra.mxu0 0.0
    %6644 = vmatprep.subr.mxu0 0.0
    %6645 = vmatpush1.msra.mxu0 0.0
    %6646 = vmatprep.subr.mxu0 0.0
    %6647 = vmatpush1.msra.mxu0 0.0
    %6648 = vmatprep.subr.mxu0 0.0
    %6649 = vmatpush1.msra.mxu0 0.0
    %6650 = vmatprep.subr.mxu0 0.0
    %6651 = vmatpush1.msra.mxu0 0.0
    %6652 = vmatprep.subr.mxu0 0.0
    %6653 = vmatpush1.msra.mxu0 0.0
    %6654 = vmatprep.subr.mxu0 0.0
    %6655 = vmatpush1.msra.mxu0 0.0
    %6656 = vmatprep.subr.mxu0 0.0
    %6657 = vmatpush1.msra.mxu0 0.0
    %6658 = vmatprep.subr.mxu0 0.0
    %6659 = vmatpush1.msra.mxu0 0.0
    %6660 = vmatprep.subr.mxu0 0.0
    %6661 = vmatpush1.msra.mxu0 0.0
    %6662 = vmatprep.subr.mxu0 0.0
    %6663 = vmatpush1.msra.mxu0 0.0
    %6664 = vmatprep.mubr.f32.mxu0 0.0
    %6665 = vmatmul.mubr.f32.gmra.mrb[0].mxu0 %v6598
    %v6666 = vpop.f32.mrb[0].mxu0
    %v6667 = vadd.f32 0.0, %v6666
    %v6668 = vpop.f32.mrb[0].mxu0
    %6669 = vdwg.mxu0
    %v6670 = vadd.f32 %v6502, %v6667
    %v6671 = vsel %vm5324, %v4871, -inf
    %v6672 = vsel %vm5326, %v4872, -inf
    %v6673 = vmax.f32 %v6671, %v6672
    %v6674 = vrot.slane %v6673, 4
    %v6675 = vmax.f32 %v6673, %v6674
    %v6676 = vrot.slane %v6675, 2
    %v6677 = vmax.f32 %v6675, %v6676
    %v6678 = vrot.slane %v6677, 1
    %v6679 = vmax.f32 %v6677, %v6678
    %v6680 = vsel %vm5324, %v4886, -inf
    %v6681 = vsel %vm5326, %v4887, -inf
    %v6682 = vmax.f32 %v6680, %v6681
    %v6683 = vrot.slane %v6682, 4
    %v6684 = vmax.f32 %v6682, %v6683
    %v6685 = vrot.slane %v6684, 2
    %v6686 = vmax.f32 %v6684, %v6685
    %v6687 = vrot.slane %v6686, 1
    %v6688 = vmax.f32 %v6686, %v6687
    %v6689 = vsel %vm5324, %v4901, -inf
    %v6690 = vsel %vm5326, %v4902, -inf
    %v6691 = vmax.f32 %v6689, %v6690
    %v6692 = vrot.slane %v6691, 4
    %v6693 = vmax.f32 %v6691, %v6692
    %v6694 = vrot.slane %v6693, 2
    %v6695 = vmax.f32 %v6693, %v6694
    %v6696 = vrot.slane %v6695, 1
    %v6697 = vmax.f32 %v6695, %v6696
    %v6698 = vsel %vm5324, %v4916, -inf
    %v6699 = vsel %vm5326, %v4917, -inf
    %v6700 = vmax.f32 %v6698, %v6699
    %v6701 = vrot.slane %v6700, 4
    %v6702 = vmax.f32 %v6700, %v6701
    %v6703 = vrot.slane %v6702, 2
    %v6704 = vmax.f32 %v6702, %v6703
    %v6705 = vrot.slane %v6704, 1
    %v6706 = vmax.f32 %v6704, %v6705
    %v6707 = vsel %vm5324, %v4931, -inf
    %v6708 = vsel %vm5326, %v4932, -inf
    %v6709 = vmax.f32 %v6707, %v6708
    %v6710 = vrot.slane %v6709, 4
    %v6711 = vmax.f32 %v6709, %v6710
    %v6712 = vrot.slane %v6711, 2
    %v6713 = vmax.f32 %v6711, %v6712
    %v6714 = vrot.slane %v6713, 1
    %v6715 = vmax.f32 %v6713, %v6714
    %v6716 = vsel %vm5324, %v4946, -inf
    %v6717 = vsel %vm5326, %v4947, -inf
    %v6718 = vmax.f32 %v6716, %v6717
    %v6719 = vrot.slane %v6718, 4
    %v6720 = vmax.f32 %v6718, %v6719
    %v6721 = vrot.slane %v6720, 2
    %v6722 = vmax.f32 %v6720, %v6721
    %v6723 = vrot.slane %v6722, 1
    %v6724 = vmax.f32 %v6722, %v6723
    %v6725 = vsel %vm5324, %v4961, -inf
    %v6726 = vsel %vm5326, %v4962, -inf
    %v6727 = vmax.f32 %v6725, %v6726
    %v6728 = vrot.slane %v6727, 4
    %v6729 = vmax.f32 %v6727, %v6728
    %v6730 = vrot.slane %v6729, 2
    %v6731 = vmax.f32 %v6729, %v6730
    %v6732 = vrot.slane %v6731, 1
    %v6733 = vmax.f32 %v6731, %v6732
    %v6734 = vsel %vm5324, %v4976, -inf
    %v6735 = vsel %vm5326, %v4977, -inf
    %v6736 = vmax.f32 %v6734, %v6735
    %v6737 = vrot.slane %v6736, 4
    %v6738 = vmax.f32 %v6736, %v6737
    %v6739 = vrot.slane %v6738, 2
    %v6740 = vmax.f32 %v6738, %v6739
    %v6741 = vrot.slane %v6740, 1
    %v6742 = vmax.f32 %v6740, %v6741
    %v6743 = vld [vmem:[%s3 + $0x280] sm:$0xff]
    %v6744 = vld [vmem:[%s3 + $0x288] sm:$0xff]
    %v6745 = vld [vmem:[%s3 + $0x290] sm:$0xff]
    %v6746 = vld [vmem:[%s3 + $0x298] sm:$0xff]
    %v6747 = vld [vmem:[%s3 + $0x2a0] sm:$0xff]
    %v6748 = vld [vmem:[%s3 + $0x2a8] sm:$0xff]
    %v6749 = vld [vmem:[%s3 + $0x2b0] sm:$0xff]
    %v6750 = vld [vmem:[%s3 + $0x2b8] sm:$0xff]
    %v6759 = vsel %vm5151, %v6688, %v6679
    %v6760 = vsel %vm5153, %v6697, %v6759
    %v6761 = vsel %vm5155, %v6706, %v6760
    %v6762 = vsel %vm5157, %v6715, %v6761
    %v6763 = vsel %vm5159, %v6724, %v6762
    %v6764 = vsel %vm5161, %v6733, %v6763
    %v6765 = vsel %vm5163, %v6742, %v6764
    %v6766 = vsel %vm4979, %v6765, 0
    %6768 = vmatprep.subr.mxu0 0.0
    %6769 = vmatpush1.msra.mxu0 %v6743
    %6770 = vmatprep.subr.mxu0 0.0
    %6771 = vmatpush1.msra.mxu0 %v6744
    %6772 = vmatprep.subr.mxu0 0.0
    %6773 = vmatpush1.msra.mxu0 %v6745
    %6774 = vmatprep.subr.mxu0 0.0
    %6775 = vmatpush1.msra.mxu0 %v6746
    %6776 = vmatprep.subr.mxu0 0.0
    %6777 = vmatpush1.msra.mxu0 %v6747
    %6778 = vmatprep.subr.mxu0 0.0
    %6779 = vmatpush1.msra.mxu0 %v6748
    %6780 = vmatprep.subr.mxu0 0.0
    %6781 = vmatpush1.msra.mxu0 %v6749
    %6782 = vmatprep.subr.mxu0 0.0
    %6783 = vmatpush1.msra.mxu0 %v6750
    %6784 = vmatprep.subr.mxu0 0.0
    %6785 = vmatpush1.msra.mxu0 0.0
    %6786 = vmatprep.subr.mxu0 0.0
    %6787 = vmatpush1.msra.mxu0 0.0
    %6788 = vmatprep.subr.mxu0 0.0
    %6789 = vmatpush1.msra.mxu0 0.0
    %6790 = vmatprep.subr.mxu0 0.0
    %6791 = vmatpush1.msra.mxu0 0.0
    %6792 = vmatprep.subr.mxu0 0.0
    %6793 = vmatpush1.msra.mxu0 0.0
    %6794 = vmatprep.subr.mxu0 0.0
    %6795 = vmatpush1.msra.mxu0 0.0
    %6796 = vmatprep.subr.mxu0 0.0
    %6797 = vmatpush1.msra.mxu0 0.0
    %6798 = vmatprep.subr.mxu0 0.0
    %6799 = vmatpush1.msra.mxu0 0.0
    %6800 = vmatprep.subr.mxu0 0.0
    %6801 = vmatpush1.msra.mxu0 0.0
    %6802 = vmatprep.subr.mxu0 0.0
    %6803 = vmatpush1.msra.mxu0 0.0
    %6804 = vmatprep.subr.mxu0 0.0
    %6805 = vmatpush1.msra.mxu0 0.0
    %6806 = vmatprep.subr.mxu0 0.0
    %6807 = vmatpush1.msra.mxu0 0.0
    %6808 = vmatprep.subr.mxu0 0.0
    %6809 = vmatpush1.msra.mxu0 0.0
    %6810 = vmatprep.subr.mxu0 0.0
    %6811 = vmatpush1.msra.mxu0 0.0
    %6812 = vmatprep.subr.mxu0 0.0
    %6813 = vmatpush1.msra.mxu0 0.0
    %6814 = vmatprep.subr.mxu0 0.0
    %6815 = vmatpush1.msra.mxu0 0.0
    %6816 = vmatprep.subr.mxu0 0.0
    %6817 = vmatpush1.msra.mxu0 0.0
    %6818 = vmatprep.subr.mxu0 0.0
    %6819 = vmatpush1.msra.mxu0 0.0
    %6820 = vmatprep.subr.mxu0 0.0
    %6821 = vmatpush1.msra.mxu0 0.0
    %6822 = vmatprep.subr.mxu0 0.0
    %6823 = vmatpush1.msra.mxu0 0.0
    %6824 = vmatprep.subr.mxu0 0.0
    %6825 = vmatpush1.msra.mxu0 0.0
    %6826 = vmatprep.subr.mxu0 0.0
    %6827 = vmatpush1.msra.mxu0 0.0
    %6828 = vmatprep.subr.mxu0 0.0
    %6829 = vmatpush1.msra.mxu0 0.0
    %6830 = vmatprep.subr.mxu0 0.0
    %6831 = vmatpush1.msra.mxu0 0.0
    %6832 = vmatprep.mubr.f32.mxu0 0.0
    %6833 = vmatmul.mubr.f32.gmra.mrb[0].mxu0 %v6766
    %v6834 = vpop.f32.mrb[0].mxu0
    %v6835 = vadd.f32 0.0, %v6834
    %v6836 = vpop.f32.mrb[0].mxu0
    %6837 = vdwg.mxu0
    %v6838 = vadd.f32 %v6670, %v6835
    %v6839 = vsel %vm5494, %v4872, -inf
    %v6840 = vsel %vm4979, %v4873, -inf
    %v6841 = vmax.f32 %v6839, %v6840
    %v6842 = vrot.slane %v6841, 4
    %v6843 = vmax.f32 %v6841, %v6842
    %v6844 = vrot.slane %v6843, 2
    %v6845 = vmax.f32 %v6843, %v6844
    %v6846 = vrot.slane %v6845, 1
    %v6847 = vmax.f32 %v6845, %v6846
    %v6848 = vsel %vm5494, %v4887, -inf
    %v6849 = vsel %vm4979, %v4888, -inf
    %v6850 = vmax.f32 %v6848, %v6849
    %v6851 = vrot.slane %v6850, 4
    %v6852 = vmax.f32 %v6850, %v6851
    %v6853 = vrot.slane %v6852, 2
    %v6854 = vmax.f32 %v6852, %v6853
    %v6855 = vrot.slane %v6854, 1
    %v6856 = vmax.f32 %v6854, %v6855
    %v6857 = vsel %vm5494, %v4902, -inf
    %v6858 = vsel %vm4979, %v4903, -inf
    %v6859 = vmax.f32 %v6857, %v6858
    %v6860 = vrot.slane %v6859, 4
    %v6861 = vmax.f32 %v6859, %v6860
    %v6862 = vrot.slane %v6861, 2
    %v6863 = vmax.f32 %v6861, %v6862
    %v6864 = vrot.slane %v6863, 1
    %v6865 = vmax.f32 %v6863, %v6864
    %v6866 = vsel %vm5494, %v4917, -inf
    %v6867 = vsel %vm4979, %v4918, -inf
    %v6868 = vmax.f32 %v6866, %v6867
    %v6869 = vrot.slane %v6868, 4
    %v6870 = vmax.f32 %v6868, %v6869
    %v6871 = vrot.slane %v6870, 2
    %v6872 = vmax.f32 %v6870, %v6871
    %v6873 = vrot.slane %v6872, 1
    %v6874 = vmax.f32 %v6872, %v6873
    %v6875 = vsel %vm5494, %v4932, -inf
    %v6876 = vsel %vm4979, %v4933, -inf
    %v6877 = vmax.f32 %v6875, %v6876
    %v6878 = vrot.slane %v6877, 4
    %v6879 = vmax.f32 %v6877, %v6878
    %v6880 = vrot.slane %v6879, 2
    %v6881 = vmax.f32 %v6879, %v6880
    %v6882 = vrot.slane %v6881, 1
    %v6883 = vmax.f32 %v6881, %v6882
    %v6884 = vsel %vm5494, %v4947, -inf
    %v6885 = vsel %vm4979, %v4948, -inf
    %v6886 = vmax.f32 %v6884, %v6885
    %v6887 = vrot.slane %v6886, 4
    %v6888 = vmax.f32 %v6886, %v6887
    %v6889 = vrot.slane %v6888, 2
    %v6890 = vmax.f32 %v6888, %v6889
    %v6891 = vrot.slane %v6890, 1
    %v6892 = vmax.f32 %v6890, %v6891
    %v6893 = vsel %vm5494, %v4962, -inf
    %v6894 = vsel %vm4979, %v4963, -inf
    %v6895 = vmax.f32 %v6893, %v6894
    %v6896 = vrot.slane %v6895, 4
    %v6897 = vmax.f32 %v6895, %v6896
    %v6898 = vrot.slane %v6897, 2
    %v6899 = vmax.f32 %v6897, %v6898
    %v6900 = vrot.slane %v6899, 1
    %v6901 = vmax.f32 %v6899, %v6900
    %v6902 = vsel %vm5494, %v4977, -inf
    %v6903 = vsel %vm4979, %v4978, -inf
    %v6904 = vmax.f32 %v6902, %v6903
    %v6905 = vrot.slane %v6904, 4
    %v6906 = vmax.f32 %v6904, %v6905
    %v6907 = vrot.slane %v6906, 2
    %v6908 = vmax.f32 %v6906, %v6907
    %v6909 = vrot.slane %v6908, 1
    %v6910 = vmax.f32 %v6908, %v6909
    %v6911 = vld [vmem:[%s3 + $0x2c0] sm:$0xff]
    %v6912 = vld [vmem:[%s3 + $0x2c8] sm:$0xff]
    %v6913 = vld [vmem:[%s3 + $0x2d0] sm:$0xff]
    %v6914 = vld [vmem:[%s3 + $0x2d8] sm:$0xff]
    %v6915 = vld [vmem:[%s3 + $0x2e0] sm:$0xff]
    %v6916 = vld [vmem:[%s3 + $0x2e8] sm:$0xff]
    %v6917 = vld [vmem:[%s3 + $0x2f0] sm:$0xff]
    %v6918 = vld [vmem:[%s3 + $0x2f8] sm:$0xff]
    %v6927 = vsel %vm5151, %v6856, %v6847
    %v6928 = vsel %vm5153, %v6865, %v6927
    %v6929 = vsel %vm5155, %v6874, %v6928
    %v6930 = vsel %vm5157, %v6883, %v6929
    %v6931 = vsel %vm5159, %v6892, %v6930
    %v6932 = vsel %vm5161, %v6901, %v6931
    %v6933 = vsel %vm5163, %v6910, %v6932
    %v6934 = vsel %vm4979, %v6933, 0
    %6936 = vmatprep.subr.mxu0 0.0
    %6937 = vmatpush1.msra.mxu0 %v6911
    %6938 = vmatprep.subr.mxu0 0.0
    %6939 = vmatpush1.msra.mxu0 %v6912
    %6940 = vmatprep.subr.mxu0 0.0
    %6941 = vmatpush1.msra.mxu0 %v6913
    %6942 = vmatprep.subr.mxu0 0.0
    %6943 = vmatpush1.msra.mxu0 %v6914
    %6944 = vmatprep.subr.mxu0 0.0
    %6945 = vmatpush1.msra.mxu0 %v6915
    %6946 = vmatprep.subr.mxu0 0.0
    %6947 = vmatpush1.msra.mxu0 %v6916
    %6948 = vmatprep.subr.mxu0 0.0
    %6949 = vmatpush1.msra.mxu0 %v6917
    %6950 = vmatprep.subr.mxu0 0.0
    %6951 = vmatpush1.msra.mxu0 %v6918
    %6952 = vmatprep.subr.mxu0 0.0
    %6953 = vmatpush1.msra.mxu0 0.0
    %6954 = vmatprep.subr.mxu0 0.0
    %6955 = vmatpush1.msra.mxu0 0.0
    %6956 = vmatprep.subr.mxu0 0.0
    %6957 = vmatpush1.msra.mxu0 0.0
    %6958 = vmatprep.subr.mxu0 0.0
    %6959 = vmatpush1.msra.mxu0 0.0
    %6960 = vmatprep.subr.mxu0 0.0
    %6961 = vmatpush1.msra.mxu0 0.0
    %6962 = vmatprep.subr.mxu0 0.0
    %6963 = vmatpush1.msra.mxu0 0.0
    %6964 = vmatprep.subr.mxu0 0.0
    %6965 = vmatpush1.msra.mxu0 0.0
    %6966 = vmatprep.subr.mxu0 0.0
    %6967 = vmatpush1.msra.mxu0 0.0
    %6968 = vmatprep.subr.mxu0 0.0
    %6969 = vmatpush1.msra.mxu0 0.0
    %6970 = vmatprep.subr.mxu0 0.0
    %6971 = vmatpush1.msra.mxu0 0.0
    %6972 = vmatprep.subr.mxu0 0.0
    %6973 = vmatpush1.msra.mxu0 0.0
    %6974 = vmatprep.subr.mxu0 0.0
    %6975 = vmatpush1.msra.mxu0 0.0
    %6976 = vmatprep.subr.mxu0 0.0
    %6977 = vmatpush1.msra.mxu0 0.0
    %6978 = vmatprep.subr.mxu0 0.0
    %6979 = vmatpush1.msra.mxu0 0.0
    %6980 = vmatprep.subr.mxu0 0.0
    %6981 = vmatpush1.msra.mxu0 0.0
    %6982 = vmatprep.subr.mxu0 0.0
    %6983 = vmatpush1.msra.mxu0 0.0
    %6984 = vmatprep.subr.mxu0 0.0
    %6985 = vmatpush1.msra.mxu0 0.0
    %6986 = vmatprep.subr.mxu0 0.0
    %6987 = vmatpush1.msra.mxu0 0.0
    %6988 = vmatprep.subr.mxu0 0.0
    %6989 = vmatpush1.msra.mxu0 0.0
    %6990 = vmatprep.subr.mxu0 0.0
    %6991 = vmatpush1.msra.mxu0 0.0
    %6992 = vmatprep.subr.mxu0 0.0
    %6993 = vmatpush1.msra.mxu0 0.0
    %6994 = vmatprep.subr.mxu0 0.0
    %6995 = vmatpush1.msra.mxu0 0.0
    %6996 = vmatprep.subr.mxu0 0.0
    %6997 = vmatpush1.msra.mxu0 0.0
    %6998 = vmatprep.subr.mxu0 0.0
    %6999 = vmatpush1.msra.mxu0 0.0
    %7000 = vmatprep.mubr.f32.mxu0 0.0
    %7001 = vmatmul.mubr.f32.gmra.mrb[0].mxu0 %v6934
    %v7002 = vpop.f32.mrb[0].mxu0
    %v7003 = vadd.f32 0.0, %v7002
    %v7004 = vpop.f32.mrb[0].mxu0
    %7005 = vdwg.mxu0
    %v7006 = vadd.f32 %v6838, %v7003
    %v7007 = vld [vmem:[%s4] sm:$0x1]
    %v7009 = vlaneseq
    %v7010 = vshrl.u32 %v7009, 7
    %v7011 = vsub.s32 0, %v7010
    %v7012 = vrot.slane %v7007, %v7011
    %v7014 = vadd.f32 %v7006, %v7012
    %v7015 = vmax.f32 %v7014, 0.0
    %v7016 = vld [vmem:[%s5] sm:$0xff]
    %v7017 = vld [vmem:[%s5 + $0x8] sm:$0xff]
    %v7018 = vld [vmem:[%s5 + $0x10] sm:$0xff]
    %v7019 = vld [vmem:[%s5 + $0x18] sm:$0xff]
    %v7020 = vld [vmem:[%s5 + $0x20] sm:$0xff]
    %v7021 = vld [vmem:[%s5 + $0x28] sm:$0xff]
    %v7022 = vld [vmem:[%s5 + $0x30] sm:$0xff]
    %v7023 = vld [vmem:[%s5 + $0x38] sm:$0xff]
    %v7024 = vld [vmem:[%s5 + $0x40] sm:$0xff]
    %v7025 = vld [vmem:[%s5 + $0x48] sm:$0xff]
    %v7026 = vld [vmem:[%s5 + $0x50] sm:$0xff]
    %v7027 = vld [vmem:[%s5 + $0x58] sm:$0xff]
    %v7028 = vld [vmem:[%s5 + $0x60] sm:$0xff]
    %v7029 = vld [vmem:[%s5 + $0x68] sm:$0xff]
    %v7030 = vld [vmem:[%s5 + $0x70] sm:$0xff]
    %v7031 = vld [vmem:[%s5 + $0x78] sm:$0xff]
    %v7032 = vld [vmem:[%s6] sm:$0x1]
    %v7034 = vlaneseq
    %v7035 = vshrl.u32 %v7034, 7
    %v7036 = vsub.s32 0, %v7035
    %v7037 = vrot.slane %v7032, %v7036
    %7039 = vmatprep.subr.mxu0 0.0
    %7040 = vmatpush1.msra.mxu0 %v7016
    %7041 = vmatprep.subr.mxu0 0.0
    %7042 = vmatpush1.msra.mxu0 %v7017
    %7043 = vmatprep.subr.mxu0 0.0
    %7044 = vmatpush1.msra.mxu0 %v7018
    %7045 = vmatprep.subr.mxu0 0.0
    %7046 = vmatpush1.msra.mxu0 %v7019
    %7047 = vmatprep.subr.mxu0 0.0
    %7048 = vmatpush1.msra.mxu0 %v7020
    %7049 = vmatprep.subr.mxu0 0.0
    %7050 = vmatpush1.msra.mxu0 %v7021
    %7051 = vmatprep.subr.mxu0 0.0
    %7052 = vmatpush1.msra.mxu0 %v7022
    %7053 = vmatprep.subr.mxu0 0.0
    %7054 = vmatpush1.msra.mxu0 %v7023
    %7055 = vmatprep.subr.mxu0 0.0
    %7056 = vmatpush1.msra.mxu0 %v7024
    %7057 = vmatprep.subr.mxu0 0.0
    %7058 = vmatpush1.msra.mxu0 %v7025
    %7059 = vmatprep.subr.mxu0 0.0
    %7060 = vmatpush1.msra.mxu0 %v7026
    %7061 = vmatprep.subr.mxu0 0.0
    %7062 = vmatpush1.msra.mxu0 %v7027
    %7063 = vmatprep.subr.mxu0 0.0
    %7064 = vmatpush1.msra.mxu0 %v7028
    %7065 = vmatprep.subr.mxu0 0.0
    %7066 = vmatpush1.msra.mxu0 %v7029
    %7067 = vmatprep.subr.mxu0 0.0
    %7068 = vmatpush1.msra.mxu0 %v7030
    %7069 = vmatprep.subr.mxu0 0.0
    %7070 = vmatpush1.msra.mxu0 %v7031
    %7071 = vmatprep.subr.mxu0 0.0
    %7072 = vmatpush1.msra.mxu0 0.0
    %7073 = vmatprep.subr.mxu0 0.0
    %7074 = vmatpush1.msra.mxu0 0.0
    %7075 = vmatprep.subr.mxu0 0.0
    %7076 = vmatpush1.msra.mxu0 0.0
    %7077 = vmatprep.subr.mxu0 0.0
    %7078 = vmatpush1.msra.mxu0 0.0
    %7079 = vmatprep.subr.mxu0 0.0
    %7080 = vmatpush1.msra.mxu0 0.0
    %7081 = vmatprep.subr.mxu0 0.0
    %7082 = vmatpush1.msra.mxu0 0.0
    %7083 = vmatprep.subr.mxu0 0.0
    %7084 = vmatpush1.msra.mxu0 0.0
    %7085 = vmatprep.subr.mxu0 0.0
    %7086 = vmatpush1.msra.mxu0 0.0
    %7087 = vmatprep.subr.mxu0 0.0
    %7088 = vmatpush1.msra.mxu0 0.0
    %7089 = vmatprep.subr.mxu0 0.0
    %7090 = vmatpush1.msra.mxu0 0.0
    %7091 = vmatprep.subr.mxu0 0.0
    %7092 = vmatpush1.msra.mxu0 0.0
    %7093 = vmatprep.subr.mxu0 0.0
    %7094 = vmatpush1.msra.mxu0 0.0
    %7095 = vmatprep.subr.mxu0 0.0
    %7096 = vmatpush1.msra.mxu0 0.0
    %7097 = vmatprep.subr.mxu0 0.0
    %7098 = vmatpush1.msra.mxu0 0.0
    %7099 = vmatprep.subr.mxu0 0.0
    %7100 = vmatpush1.msra.mxu0 0.0
    %7101 = vmatprep.subr.mxu0 0.0
    %7102 = vmatpush1.msra.mxu0 0.0
    %7103 = vmatprep.mubr.f32.mxu0 0.0
    %7104 = vmatmul.mubr.f32.gmra.mrb[0].mxu0 %v7015
    %v7105 = vpop.f32.mrb[0].mxu0
    %v7106 = vadd.f32 %v7037, %v7105
    %v7107 = vpop.f32.mrb[0].mxu0
    %7108 = vdwg.mxu0
    %7109 = vmax.xlane.f32.xlu0 %v7106
    %v7110 = vpop.xlane.xlu0 %7109
    %v7111 = vsub.f32 %v7106, %v7110
    %v7112 = vmul.f32 %v7111, 1.442695
    %v7113 = vpow.pop %v7112
    %7114 = vadd.xlane.f32.xlu0 %v7113
    %v7115 = vpop.xlane.xlu0 %7114
    %v7116 = vrcp.pop %v7115
    %v7117 = vmul.f32 %v7113, %v7116
    %7118 = vst [vmem:[#allocation2] sm:$0xff] %v7117
    // Predicated region
    $region30: #{tpu_custom_call.1} parent=1 // pred_check
      _
    $region31: #{tpu_custom_call.1} parent=1 // pred_check_branch
      %7120 = sbr.rel (0) target = $region33
    $region32: #{tpu_custom_call.1} parent=1 // pred_region
      %s7122 = ssub.s32 128, 128
      %7123 = vsyncadd [#allocation3], %s7122
      %s7125 = sshll.u32 [#allocation2], 4
      %s7126 = int_to_ptr.vmem [resolvable:$true] %s7125
      %7128 = dma.vmem_to_hbm [thread:$0]  %s7126, 128, %s7, [#allocation3]
    $region33: #{tpu_custom_call.1} parent=1 // pred_fallthru
      _
    // Predicated region
    $region34: #{tpu_custom_call.1} parent=1 // pred_check
      _
    $region35: #{tpu_custom_call.1} parent=1 // pred_check_branch
      %7130 = sbr.rel (0) target = $region37
    $region36: #{tpu_custom_call.1} parent=1 // pred_region
      %7131 = dma.done [#allocation3], 128
    $region37: #{tpu_custom_call.1} parent=1 // pred_fallthru
      _
    %7132 = vsyncpa [#allocation3], 1

</llo_original>
